<compile_context>
chip_gen: v7x
topology: tpu7x:2x2x1
jax: 0.10.0
libtpu: 0.0.40
codegen_flags: <defaults>
</compile_context>

<pallas_src>
import jax
import jax.numpy as jnp
from jax.experimental import pallas as pl
from jax.experimental.pallas import tpu as pltpu

D_MODEL = 512     # mc.in_dim (must be 512: fc = nn.Linear(512, 1))
D_FF = 1024       # dim_feedforward
N_LAYERS = 4
TEXT_LEN = 64     # mc.text_len (small, chosen for the synthetic test)
EPS = 1e-5        # nn.LayerNorm default

# rows of the packed per-layer (8, D_MODEL) f32 vector block
_ROW_B_ATTN, _ROW_G1, _ROW_BE1, _ROW_BF2, _ROW_G2, _ROW_BE2 = 0, 1, 2, 3, 4, 5


def _layernorm(x, gamma, beta):
    mu = jnp.mean(x, axis=-1, keepdims=True)
    xc = x - mu
    var = jnp.mean(xc * xc, axis=-1, keepdims=True)
    return xc * jax.lax.rsqrt(var + EPS) * gamma + beta


# ------------------------------ fused kernel ------------------------------

def fused_kernel(text_ref, enc_w_ref, enc_b_ref,
                 w_attn_ref, w1_ref, w2_ref, vecs_ref, bf1_ref,
                 fc_w_ref, fc_b_ref, out_ref, x_ref):
    l = pl.program_id(0)

    @pl.when(l == 0)
    def _():
        # TODO(synk): TextEncoder definition not provided in the source file; modeled
        # as a Linear(text_len -> in_dim) projection.
        x_ref[...] = (
            jnp.dot(text_ref[...].astype(jnp.bfloat16), enc_w_ref[...],
                    preferred_element_type=jnp.float32)
            + enc_b_ref[...])

    x = x_ref[...]                      # (B, D) f32, carried across layers
    vecs = vecs_ref[0]                  # (8, D) f32 packed per-layer vectors

    # --- self attention (seq len == 1): attn = x @ (Wv@Wo) + (bv@Wo + bo) ---
    attn = (jnp.dot(x.astype(jnp.bfloat16), w_attn_ref[0],
                    preferred_element_type=jnp.float32)
            + vecs[_ROW_B_ATTN:_ROW_B_ATTN + 1])
    x = _layernorm(x + attn,
                   vecs[_ROW_G1:_ROW_G1 + 1], vecs[_ROW_BE1:_ROW_BE1 + 1])

    # --- feed forward: linear2(relu(linear1(x))) ---
    h = jnp.maximum(
        jnp.dot(x.astype(jnp.bfloat16), w1_ref[0],
                preferred_element_type=jnp.float32) + bf1_ref[0],
        0.0)
    ff = (jnp.dot(h.astype(jnp.bfloat16), w2_ref[0],
                  preferred_element_type=jnp.float32)
          + vecs[_ROW_BF2:_ROW_BF2 + 1])
    x = _layernorm(x + ff,
                   vecs[_ROW_G2:_ROW_G2 + 1], vecs[_ROW_BE2:_ROW_BE2 + 1])

    x_ref[...] = x

    @pl.when(l == pl.num_programs(0) - 1)
    def _():
        # fc: Linear(512, 1) then sigmoid -> elementwise mul + lane reduction.
        y = jnp.sum(x * fc_w_ref[...], axis=-1, keepdims=True) + fc_b_ref[...]
        out_ref[...] = jax.nn.sigmoid(y)


# ------------------------------ wrapper ------------------------------

@jax.jit
def text_trans_forward(text, fp):
    b, tlen = text.shape
    grid_spec = pltpu.PrefetchScalarGridSpec(
        num_scalar_prefetch=0,
        grid=(N_LAYERS,),
        in_specs=[
            pl.BlockSpec((b, tlen), lambda l: (0, 0)),                    # text
            pl.BlockSpec((tlen, D_MODEL), lambda l: (0, 0)),              # enc_w (bf16)
            pl.BlockSpec((1, D_MODEL), lambda l: (0, 0)),                 # enc_b
            pl.BlockSpec((1, D_MODEL, D_MODEL), lambda l: (l, 0, 0)),     # w_attn (bf16)
            pl.BlockSpec((1, D_MODEL, D_FF), lambda l: (l, 0, 0)),        # w1 (bf16)
            pl.BlockSpec((1, D_FF, D_MODEL), lambda l: (l, 0, 0)),        # w2 (bf16)
            pl.BlockSpec((1, 8, D_MODEL), lambda l: (l, 0, 0)),           # packed vecs
            pl.BlockSpec((1, 1, D_FF), lambda l: (l, 0, 0)),              # bf1
            pl.BlockSpec((1, D_MODEL), lambda l: (0, 0)),                 # fc_w
            pl.BlockSpec((1, 1), lambda l: (0, 0)),                       # fc_b
        ],
        out_specs=pl.BlockSpec((b, 1), lambda l: (0, 0)),
        scratch_shapes=[pltpu.VMEM((b, D_MODEL), jnp.float32)],
    )
    return pl.pallas_call(
        fused_kernel,
        out_shape=jax.ShapeDtypeStruct((b, 1), jnp.float32),
        grid_spec=grid_spec,
        compiler_params=pltpu.CompilerParams(
            dimension_semantics=("arbitrary",),
            vmem_limit_bytes=24 * 1024 * 1024,
        ),
    )(text, fp["enc_w"], fp["enc_b"], fp["w_attn"], fp["w1"], fp["w2"],
      fp["vecs"], fp["bf1"], fp["fc_w"], fp["fc_b"])


# ------------------------------ params ------------------------------

def init_params(key, text_len=TEXT_LEN):
    """PyTorch-equivalent parameters (linear weights stored pre-transposed)."""
    keys = iter(jax.random.split(key, 8 + 12 * N_LAYERS))

    def w(shape, scale=0.02):
        return jax.random.normal(next(keys), shape, dtype=jnp.float32) * scale

    params = {
        "enc_w": w((text_len, D_MODEL)),
        "enc_b": w((1, D_MODEL)),
        "fc_w": w((1, D_MODEL)),          # nn.Linear(512, 1).weight, shape (1, 512)
        "fc_b": w((1, 1)),
        "layers": [],
    }
    for _ in range(N_LAYERS):
        params["layers"].append(dict(
            wqkv=w((D_MODEL, 3 * D_MODEL)),          # in_proj_weight^T
            bqkv=w((1, 3 * D_MODEL)),
            wo=w((D_MODEL, D_MODEL)),                # out_proj.weight^T
            bo=w((1, D_MODEL)),
            g1=jnp.ones((1, D_MODEL), jnp.float32),
            be1=jnp.zeros((1, D_MODEL), jnp.float32),
            w1=w((D_MODEL, D_FF)),                   # linear1.weight^T
            bf1=w((1, D_FF)),
            w2=w((D_FF, D_MODEL)),                   # linear2.weight^T
            bf2=w((1, D_MODEL)),
            g2=jnp.ones((1, D_MODEL), jnp.float32),
            be2=jnp.zeros((1, D_MODEL), jnp.float32),
        ))
    return params


def prepare_params(params):
    """Host-side folding + stacking + bf16 cast for the fused kernel."""
    w_attn, w1, w2, vecs, bf1 = [], [], [], [], []
    for lp in params["layers"]:
        wv = lp["wqkv"][:, 2 * D_MODEL:]             # only V of QKV is ever used
        bv = lp["bqkv"][:, 2 * D_MODEL:]
        wa = wv @ lp["wo"]                           # fold Wv @ Wo offline (f32)
        ba = bv @ lp["wo"] + lp["bo"]
        w_attn.append(wa)
        w1.append(lp["w1"])
        w2.append(lp["w2"])
        v = jnp.zeros((8, D_MODEL), jnp.float32)
        v = v.at[_ROW_B_ATTN].set(ba[0])
        v = v.at[_ROW_G1].set(lp["g1"][0])
        v = v.at[_ROW_BE1].set(lp["be1"][0])
        v = v.at[_ROW_BF2].set(lp["bf2"][0])
        v = v.at[_ROW_G2].set(lp["g2"][0])
        v = v.at[_ROW_BE2].set(lp["be2"][0])
        vecs.append(v)
        bf1.append(lp["bf1"])
    return {
        "enc_w": params["enc_w"].astype(jnp.bfloat16),
        "enc_b": params["enc_b"],
        "fc_w": params["fc_w"],
        "fc_b": params["fc_b"],
        "w_attn": jnp.stack(w_attn).astype(jnp.bfloat16),   # (4, 512, 512)
        "w1": jnp.stack(w1).astype(jnp.bfloat16),            # (4, 512, 1024)
        "w2": jnp.stack(w2).astype(jnp.bfloat16),            # (4, 1024, 512)
        "vecs": jnp.stack(vecs),                              # (4, 8, 512) f32
        "bf1": jnp.stack(bf1),                                # (4, 1, 1024) f32
    }


def reference_forward(text, fp):
    """Pure-JAX reference that mirrors the kernel's numerics (bf16 dots, f32 acc)."""
    def dot(a, b):
        return jnp.dot(a.astype(jnp.bfloat16), b, preferred_element_type=jnp.float32)

    x = dot(text, fp["enc_w"]) + fp["enc_b"]
    for l in range(N_LAYERS):
        v = fp["vecs"][l]
        attn = dot(x, fp["w_attn"][l]) + v[_ROW_B_ATTN]
        x = _layernorm(x + attn, v[_ROW_G1], v[_ROW_BE1])
        h = jnp.maximum(dot(x, fp["w1"][l]) + fp["bf1"][l], 0.0)
        ff = dot(h, fp["w2"][l]) + v[_ROW_BF2]
        x = _layernorm(x + ff, v[_ROW_G2], v[_ROW_BE2])
    y = jnp.sum(x * fp["fc_w"], axis=-1, keepdims=True) + fp["fc_b"]
    return jax.nn.sigmoid(y)


if __name__ == "__main__":
    key = jax.random.PRNGKey(0)
    k_param, k_text = jax.random.split(key)

    params = init_params(k_param, TEXT_LEN)
    fused = prepare_params(params)
    text = jax.random.normal(k_text, (8, TEXT_LEN), dtype=jnp.float32)

    out = jax.block_until_ready(text_trans_forward(text, fused))
    ref = jax.block_until_ready(reference_forward(text, fused))

    assert out.shape == (8, 1), out.shape
    assert bool(jnp.all(jnp.isfinite(out)))
    assert bool(jnp.all((out > 0.0) & (out < 1.0)))        # sigmoid range
    assert bool(jnp.allclose(out, ref, atol=2e-2, rtol=0)), (out, ref)
    print("KERNEL_OK")
</pallas_src>

<mosaic_0001>
module attributes {stable_mosaic.version = 11 : i64} {
  func.func @fused_kernel(%arg0: i32, %arg1: memref<8x64xf32, #tpu.memory_space<vmem>>, %arg2: memref<64x512xbf16, #tpu.memory_space<vmem>>, %arg3: memref<1x512xf32, #tpu.memory_space<vmem>>, %arg4: memref<1x512x512xbf16, #tpu.memory_space<vmem>>, %arg5: memref<1x512x1024xbf16, #tpu.memory_space<vmem>>, %arg6: memref<1x1024x512xbf16, #tpu.memory_space<vmem>>, %arg7: memref<1x8x512xf32, #tpu.memory_space<vmem>>, %arg8: memref<1x1x1024xf32, #tpu.memory_space<vmem>>, %arg9: memref<1x512xf32, #tpu.memory_space<vmem>>, %arg10: memref<1x1xf32, #tpu.memory_space<vmem>>, %arg11: memref<8x1xf32, #tpu.memory_space<vmem>>, %arg12: memref<8x512xf32, #tpu.memory_space<vmem>>) attributes {dimension_semantics = [#tpu.dimension_semantics<arbitrary>], iteration_bounds = array<i64: 4>, scalar_prefetch = 0 : i64, scratch_operands = 1 : i64, tpu.core_type = #tpu.core_type<tc>, window_params = [{pipeline_mode = #tpu.pipeline_mode<synchronous>, transform_indices = @transform_0, window_bounds = array<i64: 8, 64>}, {pipeline_mode = #tpu.pipeline_mode<synchronous>, transform_indices = @transform_1, window_bounds = array<i64: 64, 512>}, {pipeline_mode = #tpu.pipeline_mode<synchronous>, transform_indices = @transform_2, window_bounds = array<i64: 1, 512>}, {transform_indices = @transform_3, window_bounds = array<i64: 1, 512, 512>}, {transform_indices = @transform_4, window_bounds = array<i64: 1, 512, 1024>}, {transform_indices = @transform_5, window_bounds = array<i64: 1, 1024, 512>}, {transform_indices = @transform_6, window_bounds = array<i64: 1, 8, 512>}, {transform_indices = @transform_7, window_bounds = array<i64: 1, 1, 1024>}, {pipeline_mode = #tpu.pipeline_mode<synchronous>, transform_indices = @transform_8, window_bounds = array<i64: 1, 512>}, {pipeline_mode = #tpu.pipeline_mode<synchronous>, transform_indices = @transform_9, window_bounds = array<i64: 1, 1>}, {pipeline_mode = #tpu.pipeline_mode<synchronous>, transform_indices = @transform_10, window_bounds = array<i64: 8, 1>}]} {
    %c0_i32 = arith.constant 0 : i32
    %0 = arith.cmpi eq, %arg0, %c0_i32 : i32
    %1 = arith.extui %0 : i1 to i32
    %c0_i32_0 = arith.constant 0 : i32
    %2 = arith.cmpi ne, %1, %c0_i32_0 : i32
    scf.if %2 {
      %c0_33 = arith.constant 0 : index
      %c0_34 = arith.constant 0 : index
      %80 = vector.load %arg1[%c0_33, %c0_34] : memref<8x64xf32, #tpu.memory_space<vmem>>, vector<8x64xf32>
      %81 = arith.truncf %80 : vector<8x64xf32> to vector<8x64xbf16>
      %c0_35 = arith.constant 0 : index
      %c0_36 = arith.constant 0 : index
      %82 = vector.load %arg2[%c0_35, %c0_36] : memref<64x512xbf16, #tpu.memory_space<vmem>>, vector<64x512xbf16>
      %cst_37 = arith.constant dense<0.000000e+00> : vector<8x512xf32>
      %83 = tpu.matmul %81, %82, %cst_37 {dimension_numbers = #tpu.dot_dimension_numbers<[1], [0], [0], [1], [0, 0, 1, 1], [], []>} : vector<8x64xbf16>, vector<64x512xbf16>, vector<8x512xf32> -> vector<8x512xf32>
      %c0_38 = arith.constant 0 : index
      %c0_39 = arith.constant 0 : index
      %84 = vector.load %arg3[%c0_38, %c0_39] : memref<1x512xf32, #tpu.memory_space<vmem>>, vector<1x512xf32>
      %85 = vector.broadcast %84 : vector<1x512xf32> to vector<8x512xf32>
      %86 = arith.addf %83, %85 : vector<8x512xf32>
      %c0_40 = arith.constant 0 : index
      %c0_41 = arith.constant 0 : index
      %87 = vector.load %arg12[%c0_40, %c0_41] : memref<8x512xf32, #tpu.memory_space<vmem>>, vector<8x512xf32>
      tpu.vector_store %arg12[%c0_40, %c0_41], %86 {strides = array<i32>} : memref<8x512xf32, #tpu.memory_space<vmem>>, vector<8x512xf32>,
    } else {
    }
    %c0 = arith.constant 0 : index
    %c0_1 = arith.constant 0 : index
    %3 = vector.load %arg12[%c0, %c0_1] : memref<8x512xf32, #tpu.memory_space<vmem>>, vector<8x512xf32>
    %c0_2 = arith.constant 0 : index
    %c0_3 = arith.constant 0 : index
    %c0_4 = arith.constant 0 : index
    %4 = vector.load %arg7[%c0_2, %c0_3, %c0_4] : memref<1x8x512xf32, #tpu.memory_space<vmem>>, vector<1x8x512xf32>
    %5 = vector.shape_cast %4 : vector<1x8x512xf32> to vector<8x512xf32>
    %6 = arith.truncf %3 : vector<8x512xf32> to vector<8x512xbf16>
    %c0_5 = arith.constant 0 : index
    %c0_6 = arith.constant 0 : index
    %c0_7 = arith.constant 0 : index
    %7 = vector.load %arg4[%c0_5, %c0_6, %c0_7] : memref<1x512x512xbf16, #tpu.memory_space<vmem>>, vector<1x512x512xbf16>
    %8 = vector.shape_cast %7 : vector<1x512x512xbf16> to vector<512x512xbf16>
    %cst = arith.constant dense<0.000000e+00> : vector<8x512xf32>
    %9 = tpu.matmul %6, %8, %cst {dimension_numbers = #tpu.dot_dimension_numbers<[1], [0], [0], [1], [0, 0, 1, 1], [], []>} : vector<8x512xbf16>, vector<512x512xbf16>, vector<8x512xf32> -> vector<8x512xf32>
    %10 = vector.extract_strided_slice %5 {offsets = [0, 0], sizes = [1, 512], strides = [1, 1]} : vector<8x512xf32> to vector<1x512xf32>
    %11 = vector.broadcast %10 : vector<1x512xf32> to vector<8x512xf32>
    %12 = arith.addf %9, %11 : vector<8x512xf32>
    %13 = arith.addf %3, %12 : vector<8x512xf32>
    %14 = vector.extract_strided_slice %5 {offsets = [1, 0], sizes = [1, 512], strides = [1, 1]} : vector<8x512xf32> to vector<1x512xf32>
    %15 = vector.extract_strided_slice %5 {offsets = [2, 0], sizes = [1, 512], strides = [1, 1]} : vector<8x512xf32> to vector<1x512xf32>
    %cst_8 = arith.constant dense<0.000000e+00> : vector<8xf32>
    %16 = vector.multi_reduction <add>, %13, %cst_8 [1] : vector<8x512xf32> to vector<8xf32>
    %17 = vector.shape_cast %16 : vector<8xf32> to vector<8x1xf32>
    %cst_9 = arith.constant 5.120000e+02 : f32
    %18 = vector.broadcast %cst_9 : f32 to vector<8x1xf32>
    %19 = arith.divf %17, %18 : vector<8x1xf32>
    %20 = vector.broadcast %19 : vector<8x1xf32> to vector<8x512xf32>
    %21 = arith.subf %13, %20 : vector<8x512xf32>
    %22 = arith.mulf %21, %21 : vector<8x512xf32>
    %cst_10 = arith.constant dense<0.000000e+00> : vector<8xf32>
    %23 = vector.multi_reduction <add>, %22, %cst_10 [1] : vector<8x512xf32> to vector<8xf32>
    %24 = vector.shape_cast %23 : vector<8xf32> to vector<8x1xf32>
    %cst_11 = arith.constant 5.120000e+02 : f32
    %25 = vector.broadcast %cst_11 : f32 to vector<8x1xf32>
    %26 = arith.divf %24, %25 : vector<8x1xf32>
    %cst_12 = arith.constant 9.99999974E-6 : f32
    %27 = vector.broadcast %cst_12 : f32 to vector<8x1xf32>
    %28 = arith.addf %26, %27 : vector<8x1xf32>
    %29 = math.rsqrt %28 : vector<8x1xf32>
    %30 = vector.broadcast %29 : vector<8x1xf32> to vector<8x512xf32>
    %31 = arith.mulf %21, %30 : vector<8x512xf32>
    %32 = vector.broadcast %14 : vector<1x512xf32> to vector<8x512xf32>
    %33 = arith.mulf %31, %32 : vector<8x512xf32>
    %34 = vector.broadcast %15 : vector<1x512xf32> to vector<8x512xf32>
    %35 = arith.addf %33, %34 : vector<8x512xf32>
    %36 = arith.truncf %35 : vector<8x512xf32> to vector<8x512xbf16>
    %c0_13 = arith.constant 0 : index
    %c0_14 = arith.constant 0 : index
    %c0_15 = arith.constant 0 : index
    %37 = vector.load %arg5[%c0_13, %c0_14, %c0_15] : memref<1x512x1024xbf16, #tpu.memory_space<vmem>>, vector<1x512x1024xbf16>
    %38 = vector.shape_cast %37 : vector<1x512x1024xbf16> to vector<512x1024xbf16>
    %cst_16 = arith.constant dense<0.000000e+00> : vector<8x1024xf32>
    %39 = tpu.matmul %36, %38, %cst_16 {dimension_numbers = #tpu.dot_dimension_numbers<[1], [0], [0], [1], [0, 0, 1, 1], [], []>} : vector<8x512xbf16>, vector<512x1024xbf16>, vector<8x1024xf32> -> vector<8x1024xf32>
    %c0_17 = arith.constant 0 : index
    %c0_18 = arith.constant 0 : index
    %c0_19 = arith.constant 0 : index
    %40 = vector.load %arg8[%c0_17, %c0_18, %c0_19] : memref<1x1x1024xf32, #tpu.memory_space<vmem>>, vector<1x1x1024xf32>
    %41 = vector.shape_cast %40 : vector<1x1x1024xf32> to vector<1x1024xf32>
    %42 = vector.broadcast %41 : vector<1x1024xf32> to vector<8x1024xf32>
    %43 = arith.addf %39, %42 : vector<8x1024xf32>
    %cst_20 = arith.constant 0.000000e+00 : f32
    %44 = vector.broadcast %cst_20 : f32 to vector<8x1024xf32>
    %45 = arith.maximumf %43, %44 : vector<8x1024xf32>
    %46 = arith.truncf %45 : vector<8x1024xf32> to vector<8x1024xbf16>
    %c0_21 = arith.constant 0 : index
    %c0_22 = arith.constant 0 : index
    %c0_23 = arith.constant 0 : index
    %47 = vector.load %arg6[%c0_21, %c0_22, %c0_23] : memref<1x1024x512xbf16, #tpu.memory_space<vmem>>, vector<1x1024x512xbf16>
    %48 = vector.shape_cast %47 : vector<1x1024x512xbf16> to vector<1024x512xbf16>
    %cst_24 = arith.constant dense<0.000000e+00> : vector<8x512xf32>
    %49 = tpu.matmul %46, %48, %cst_24 {dimension_numbers = #tpu.dot_dimension_numbers<[1], [0], [0], [1], [0, 0, 1, 1], [], []>} : vector<8x1024xbf16>, vector<1024x512xbf16>, vector<8x512xf32> -> vector<8x512xf32>
    %50 = vector.extract_strided_slice %5 {offsets = [3, 0], sizes = [1, 512], strides = [1, 1]} : vector<8x512xf32> to vector<1x512xf32>
    %51 = vector.broadcast %50 : vector<1x512xf32> to vector<8x512xf32>
    %52 = arith.addf %49, %51 : vector<8x512xf32>
    %53 = arith.addf %35, %52 : vector<8x512xf32>
    %54 = vector.extract_strided_slice %5 {offsets = [4, 0], sizes = [1, 512], strides = [1, 1]} : vector<8x512xf32> to vector<1x512xf32>
    %55 = vector.extract_strided_slice %5 {offsets = [5, 0], sizes = [1, 512], strides = [1, 1]} : vector<8x512xf32> to vector<1x512xf32>
    %cst_25 = arith.constant dense<0.000000e+00> : vector<8xf32>
    %56 = vector.multi_reduction <add>, %53, %cst_25 [1] : vector<8x512xf32> to vector<8xf32>
    %57 = vector.shape_cast %56 : vector<8xf32> to vector<8x1xf32>
    %cst_26 = arith.constant 5.120000e+02 : f32
    %58 = vector.broadcast %cst_26 : f32 to vector<8x1xf32>
    %59 = arith.divf %57, %58 : vector<8x1xf32>
    %60 = vector.broadcast %59 : vector<8x1xf32> to vector<8x512xf32>
    %61 = arith.subf %53, %60 : vector<8x512xf32>
    %62 = arith.mulf %61, %61 : vector<8x512xf32>
    %cst_27 = arith.constant dense<0.000000e+00> : vector<8xf32>
    %63 = vector.multi_reduction <add>, %62, %cst_27 [1] : vector<8x512xf32> to vector<8xf32>
    %64 = vector.shape_cast %63 : vector<8xf32> to vector<8x1xf32>
    %cst_28 = arith.constant 5.120000e+02 : f32
    %65 = vector.broadcast %cst_28 : f32 to vector<8x1xf32>
    %66 = arith.divf %64, %65 : vector<8x1xf32>
    %cst_29 = arith.constant 9.99999974E-6 : f32
    %67 = vector.broadcast %cst_29 : f32 to vector<8x1xf32>
    %68 = arith.addf %66, %67 : vector<8x1xf32>
    %69 = math.rsqrt %68 : vector<8x1xf32>
    %70 = vector.broadcast %69 : vector<8x1xf32> to vector<8x512xf32>
    %71 = arith.mulf %61, %70 : vector<8x512xf32>
    %72 = vector.broadcast %54 : vector<1x512xf32> to vector<8x512xf32>
    %73 = arith.mulf %71, %72 : vector<8x512xf32>
    %74 = vector.broadcast %55 : vector<1x512xf32> to vector<8x512xf32>
    %75 = arith.addf %73, %74 : vector<8x512xf32>
    %c0_30 = arith.constant 0 : index
    %c0_31 = arith.constant 0 : index
    %76 = vector.load %arg12[%c0_30, %c0_31] : memref<8x512xf32, #tpu.memory_space<vmem>>, vector<8x512xf32>
    tpu.vector_store %arg12[%c0_30, %c0_31], %75 {strides = array<i32>} : memref<8x512xf32, #tpu.memory_space<vmem>>, vector<8x512xf32>,
    %c3_i32 = arith.constant 3 : i32
    %77 = arith.cmpi eq, %arg0, %c3_i32 : i32
    %78 = arith.extui %77 : i1 to i32
    %c0_i32_32 = arith.constant 0 : i32
    %79 = arith.cmpi ne, %78, %c0_i32_32 : i32
    scf.if %79 {
      %c0_33 = arith.constant 0 : index
      %c0_34 = arith.constant 0 : index
      %80 = vector.load %arg9[%c0_33, %c0_34] : memref<1x512xf32, #tpu.memory_space<vmem>>, vector<1x512xf32>
      %81 = vector.broadcast %80 : vector<1x512xf32> to vector<8x512xf32>
      %82 = arith.mulf %75, %81 : vector<8x512xf32>
      %cst_35 = arith.constant dense<0.000000e+00> : vector<8xf32>
      %83 = vector.multi_reduction <add>, %82, %cst_35 [1] : vector<8x512xf32> to vector<8xf32>
      %84 = vector.shape_cast %83 : vector<8xf32> to vector<8x1xf32>
      %c0_36 = arith.constant 0 : index
      %c0_37 = arith.constant 0 : index
      %85 = vector.load %arg10[%c0_36, %c0_37] : memref<1x1xf32, #tpu.memory_space<vmem>>, vector<1x1xf32>
      %86 = vector.broadcast %85 : vector<1x1xf32> to vector<8x1xf32>
      %87 = arith.addf %84, %86 : vector<8x1xf32>
      %88 = arith.negf %87 : vector<8x1xf32>
      %89 = math.exp %88 : vector<8x1xf32>
      %cst_38 = arith.constant 1.000000e+00 : f32
      %90 = vector.broadcast %cst_38 : f32 to vector<8x1xf32>
      %91 = arith.addf %90, %89 : vector<8x1xf32>
      %92 = arith.divf %90, %91 : vector<8x1xf32>
      %c0_39 = arith.constant 0 : index
      %c0_40 = arith.constant 0 : index
      %93 = vector.load %arg11[%c0_39, %c0_40] : memref<8x1xf32, #tpu.memory_space<vmem>>, vector<8x1xf32>
      tpu.vector_store %arg11[%c0_39, %c0_40], %92 {strides = array<i32>} : memref<8x1xf32, #tpu.memory_space<vmem>>, vector<8x1xf32>,
    } else {
    }
    return
  }
  func.func @transform_0(%arg0: i32) -> (i32, i32) {
    %c0_i32 = arith.constant 0 : i32
    %c0_i32_0 = arith.constant 0 : i32
    %c0_i32_1 = arith.constant 0 : i32
    return %c0_i32, %c0_i32_0 : i32, i32
  }
  func.func @transform_1(%arg0: i32) -> (i32, i32) {
    %c0_i32 = arith.constant 0 : i32
    %c0_i32_0 = arith.constant 0 : i32
    %c0_i32_1 = arith.constant 0 : i32
    return %c0_i32, %c0_i32_0 : i32, i32
  }
  func.func @transform_2(%arg0: i32) -> (i32, i32) {
    %c0_i32 = arith.constant 0 : i32
    %c0_i32_0 = arith.constant 0 : i32
    %c0_i32_1 = arith.constant 0 : i32
    return %c0_i32, %c0_i32_0 : i32, i32
  }
  func.func @transform_3(%arg0: i32) -> (i32, i32, i32) {
    %c0_i32 = arith.constant 0 : i32
    %c0_i32_0 = arith.constant 0 : i32
    %c0_i32_1 = arith.constant 0 : i32
    return %arg0, %c0_i32, %c0_i32_0 : i32, i32, i32
  }
  func.func @transform_4(%arg0: i32) -> (i32, i32, i32) {
    %c0_i32 = arith.constant 0 : i32
    %c0_i32_0 = arith.constant 0 : i32
    %c0_i32_1 = arith.constant 0 : i32
    return %arg0, %c0_i32, %c0_i32_0 : i32, i32, i32
  }
  func.func @transform_5(%arg0: i32) -> (i32, i32, i32) {
    %c0_i32 = arith.constant 0 : i32
    %c0_i32_0 = arith.constant 0 : i32
    %c0_i32_1 = arith.constant 0 : i32
    return %arg0, %c0_i32, %c0_i32_0 : i32, i32, i32
  }
  func.func @transform_6(%arg0: i32) -> (i32, i32, i32) {
    %c0_i32 = arith.constant 0 : i32
    %c0_i32_0 = arith.constant 0 : i32
    %c0_i32_1 = arith.constant 0 : i32
    return %arg0, %c0_i32, %c0_i32_0 : i32, i32, i32
  }
  func.func @transform_7(%arg0: i32) -> (i32, i32, i32) {
    %c0_i32 = arith.constant 0 : i32
    %c0_i32_0 = arith.constant 0 : i32
    %c0_i32_1 = arith.constant 0 : i32
    return %arg0, %c0_i32, %c0_i32_0 : i32, i32, i32
  }
  func.func @transform_8(%arg0: i32) -> (i32, i32) {
    %c0_i32 = arith.constant 0 : i32
    %c0_i32_0 = arith.constant 0 : i32
    %c0_i32_1 = arith.constant 0 : i32
    return %c0_i32, %c0_i32_0 : i32, i32
  }
  func.func @transform_9(%arg0: i32) -> (i32, i32) {
    %c0_i32 = arith.constant 0 : i32
    %c0_i32_0 = arith.constant 0 : i32
    %c0_i32_1 = arith.constant 0 : i32
    return %c0_i32, %c0_i32_0 : i32, i32
  }
  func.func @transform_10(%arg0: i32) -> (i32, i32) {
    %c0_i32 = arith.constant 0 : i32
    %c0_i32_0 = arith.constant 0 : i32
    %c0_i32_1 = arith.constant 0 : i32
    return %c0_i32, %c0_i32_0 : i32, i32
  }
}

</mosaic_0001>

<llo_original>
// kernel: text_trans_forward.1
$region0: #{text_trans_forward.1}
  #allocation0 [shape = 'u32[]', space=smem, size = 0x4, offset = 0x4, fixed_abs, tag = 'smem constant byte address 0x4 - core index']
  #allocation1 [shape = 'u32[144,128]{1,0:T(1,128)}', space=vmem, size = 0x12000, scoped, tag = 'internal scratch']
  #allocation2 [shape = 'f32[8,512]{1,0:T(8,128)}', space=vmem, size = 0x4000, scoped, tag = 'scratch operand']
  #allocation3 [shape = 'f32[1,1]{1,0:T(1,128)S(1)}', space=vmem, size = 0x200, scoped, tag = 'scoped memory for text_trans_forward.1']
  %s0 = inlined_call_operand.hbm [shape: f32[8,64], index: 0, kind: input, shape index: {}]
  %s1 = inlined_call_operand.hbm [shape: bf16[64,512], index: 1, kind: input, shape index: {}]
  %s2 = inlined_call_operand.hbm [shape: f32[1,512], index: 2, kind: input, shape index: {}]
  %s3 = inlined_call_operand.hbm [shape: bf16[4,512,512], index: 3, kind: input, shape index: {}]
  %s4 = inlined_call_operand.hbm [shape: bf16[4,512,1024], index: 4, kind: input, shape index: {}]
  %s5 = inlined_call_operand.hbm [shape: bf16[4,1024,512], index: 5, kind: input, shape index: {}]
  %s6 = inlined_call_operand.hbm [shape: f32[4,8,512], index: 6, kind: input, shape index: {}]
  %s7 = inlined_call_operand.hbm [shape: f32[4,1,1024], index: 7, kind: input, shape index: {}]
  %s8 = inlined_call_operand.hbm [shape: f32[1,512], index: 8, kind: input, shape index: {}]
  %s9 = inlined_call_operand.<no memory space> [shape: f32[1,1], index: 9, kind: input, shape index: {}]
  %s10 = inlined_call_operand.vmem [shape: f32[8,1], index: 10, kind: output, shape index: {}]
  %s11 = sld [smem:[#allocation0]]
  $region117: #{text_trans_forward.1} parent=0
    _
  %s13 = ssub.s32 1, %s11
  %s14 = scalar_select 0, %s13, %s11
  %v15 = vstv %s9
  %16 = vst [vmem:[#allocation3] sm:$0x1] %v15
  $region1: #{text_trans_forward.1} parent=0
    #allocation4 [shape = 'u8[4096]{0}', space=vmem, size = 0x1000, scoped, tag = 'input window, operand 0, single buffered']
    #allocation5 [shape = 's32[2]{0}', space=sflag, size = 0x8, scoped, tag = 'scoped memory for text_trans_forward.1']
    #allocation6 [shape = 'u8[65536]{0}', space=vmem, size = 0x10000, scoped, tag = 'input window, operand 1, single buffered']
    #allocation7 [shape = 's32[1]{0}', space=sflag, size = 0x4, scoped, tag = 'scoped memory for text_trans_forward.1']
    #allocation8 [shape = 'u8[2048]{0}', space=vmem, size = 0x800, scoped, tag = 'input window, operand 2, single buffered']
    #allocation9 [shape = 'u8[1048576]{0}', space=vmem, size = 0x100000, scoped, tag = 'input window, operand 3']
    #allocation10 [shape = 's32[2]{0}', space=sflag, size = 0x8, scoped, tag = 'scoped memory for text_trans_forward.1']
    #allocation11 [shape = 'u8[2097152]{0}', space=vmem, size = 0x200000, scoped, tag = 'input window, operand 4']
    #allocation12 [shape = 'u8[2097152]{0}', space=vmem, size = 0x200000, scoped, tag = 'input window, operand 5']
    #allocation13 [shape = 's32[2]{0}', space=sflag, size = 0x8, scoped, tag = 'scoped memory for text_trans_forward.1']
    #allocation14 [shape = 'u8[32768]{0}', space=vmem, size = 0x8000, scoped, tag = 'input window, operand 6']
    #allocation15 [shape = 'u8[8192]{0}', space=vmem, size = 0x2000, scoped, tag = 'input window, operand 7']
    #allocation16 [shape = 's32[2]{0}', space=sflag, size = 0x8, scoped, tag = 'scoped memory for text_trans_forward.1']
    #allocation17 [shape = 'u8[2048]{0}', space=vmem, size = 0x800, scoped, tag = 'input window, operand 8, single buffered']
    %17 = vsyncpa [#allocation5], 0
    %18 = vsyncpa [#allocation7], 0
    %19 = vsyncpa [#allocation10], 0
    %s20 = scalar_lea.sflag [#allocation10], 1
    %21 = vsyncpa %s20, 0
    %22 = vsyncpa [#allocation13], 0
    %s23 = scalar_lea.sflag [#allocation13], 1
    %24 = vsyncpa %s23, 0
    %25 = vsyncpa [#allocation16], 0
    %s26 = scalar_lea.sflag [#allocation16], 1
    %27 = vsyncpa %s26, 0
    loop: start=0, step=1, limit=6
    $region2: #{text_trans_forward.1} parent=1 // loop_pre_header
      _
    $region3: #{text_trans_forward.1} parent=1 // loop_header
      %s29 = sphi 0, %s33
      %p30 = scmp.ge.s32.totalorder %s29, 6
      %s37 = sphi 0, %s37
      %s39 = sphi 0, %s37
      %s40 = sphi 0, %s39
      %s54 = sphi 0, %s40
      %s58 = sphi 0, %s58
      %s60 = sphi 0, %s58
      %s61 = sphi 0, %s60
      %s75 = sphi 0, %s61
      %s79 = sphi 0, %s79
      %s81 = sphi 0, %s79
      %s82 = sphi 0, %s81
      %s96 = sphi 0, %s82
      %s102 = sphi 0, %s104
      %s105 = sphi 0, %s102
      %s106 = sphi 0, %s105
      %s122 = sphi 0, %s106
      %s128 = sphi 0, %s130
      %s131 = sphi 0, %s128
      %s132 = sphi 0, %s131
      %s148 = sphi 0, %s132
      %s154 = sphi 0, %s156
      %s157 = sphi 0, %s154
      %s158 = sphi 0, %s157
      %s174 = sphi 0, %s158
      %s180 = sphi 0, %s182
      %s183 = sphi 0, %s180
      %s184 = sphi 0, %s183
      %s200 = sphi 0, %s184
      %s206 = sphi 0, %s208
      %s209 = sphi 0, %s206
      %s210 = sphi 0, %s209
      %s226 = sphi 0, %s210
      %s230 = sphi 0, %s230
      %s232 = sphi 0, %s230
      %s233 = sphi 0, %s232
      %s247 = sphi 0, %s233
      %s251 = sphi 0, %s251
      %s253 = sphi 0, %s251
      %s254 = sphi 0, %s253
      %s268 = sphi 0, %s254
      %s272 = sphi 0, %s272
      %s274 = sphi 0, %s272
      %s275 = sphi 0, %s274
      %s289 = sphi 0, %s275
    $region4: #{text_trans_forward.1} parent=1 // loop_header_branch
      %32 = sbr.rel (%p30) target = $region8
    $region5: #{text_trans_forward.1} parent=1 // loop_body
      %s34 = ssub.s32 %s29, 1
      %s35 = ssub.s32 %s29, 2
      %s36 = sadd.s32 %s29, 1
      %s38 = sadd.s32 %s37, 1
      %p41 = scmp.eq.s32.totalorder %s29, 3
      %p42 = scmp.ne.s32.totalorder %s37, %s39
      %p43 = scmp.eq.s32.totalorder %s29, 0
      %p44 = por %p42, %p43
      %p45 = scmp.ne.s32.totalorder %s37, %s39
      %p46 = scmp.eq.s32.totalorder %s34, 3
      %p47 = por %p45, %p46
      %p48 = scmp.ne.s32.totalorder %s39, %s40
      %p49 = scmp.eq.s32.totalorder %s34, 0
      %p50 = por %p48, %p49
      %p51 = scmp.ne.s32.totalorder %s39, %s40
      %p52 = scmp.eq.s32.totalorder %s35, 3
      %p53 = por %p51, %p52
      %p55 = scmp.ne.s32.totalorder %s40, %s54
      %p56 = scmp.eq.s32.totalorder %s35, 0
      %p57 = por %p55, %p56
      %s59 = sadd.s32 %s58, 1
      %p62 = scmp.eq.s32.totalorder %s29, 3
      %p63 = scmp.ne.s32.totalorder %s58, %s60
      %p64 = scmp.eq.s32.totalorder %s29, 0
      %p65 = por %p63, %p64
      %p66 = scmp.ne.s32.totalorder %s58, %s60
      %p67 = scmp.eq.s32.totalorder %s34, 3
      %p68 = por %p66, %p67
      %p69 = scmp.ne.s32.totalorder %s60, %s61
      %p70 = scmp.eq.s32.totalorder %s34, 0
      %p71 = por %p69, %p70
      %p72 = scmp.ne.s32.totalorder %s60, %s61
      %p73 = scmp.eq.s32.totalorder %s35, 3
      %p74 = por %p72, %p73
      %p76 = scmp.ne.s32.totalorder %s61, %s75
      %p77 = scmp.eq.s32.totalorder %s35, 0
      %p78 = por %p76, %p77
      %s80 = sadd.s32 %s79, 1
      %p83 = scmp.eq.s32.totalorder %s29, 3
      %p84 = scmp.ne.s32.totalorder %s79, %s81
      %p85 = scmp.eq.s32.totalorder %s29, 0
      %p86 = por %p84, %p85
      %p87 = scmp.ne.s32.totalorder %s79, %s81
      %p88 = scmp.eq.s32.totalorder %s34, 3
      %p89 = por %p87, %p88
      %p90 = scmp.ne.s32.totalorder %s81, %s82
      %p91 = scmp.eq.s32.totalorder %s34, 0
      %p92 = por %p90, %p91
      %p93 = scmp.ne.s32.totalorder %s81, %s82
      %p94 = scmp.eq.s32.totalorder %s35, 3
      %p95 = por %p93, %p94
      %p97 = scmp.ne.s32.totalorder %s82, %s96
      %p98 = scmp.eq.s32.totalorder %s35, 0
      %p99 = por %p97, %p98
      %s100 = ssub.s32 %s29, %s36
      %p101 = scmp.eq.s32.totalorder %s100, 0
      %s103 = sadd.s32 %s102, 1
      %s104 = scalar_select %p101, %s102, %s103
      %p107 = pneg %p101
      %p108 = scmp.eq.s32.totalorder %s29, 3
      %p109 = por %p107, %p108
      %p110 = scmp.ne.s32.totalorder %s102, %s105
      %p111 = scmp.eq.s32.totalorder %s29, 0
      %p112 = por %p110, %p111
      %p113 = scmp.ne.s32.totalorder %s102, %s105
      %p114 = scmp.eq.s32.totalorder %s34, 3
      %p115 = por %p113, %p114
      %p116 = scmp.ne.s32.totalorder %s105, %s106
      %p117 = scmp.eq.s32.totalorder %s34, 0
      %p118 = por %p116, %p117
      %p119 = scmp.ne.s32.totalorder %s105, %s106
      %p120 = scmp.eq.s32.totalorder %s35, 3
      %p121 = por %p119, %p120
      %p123 = scmp.ne.s32.totalorder %s106, %s122
      %p124 = scmp.eq.s32.totalorder %s35, 0
      %p125 = por %p123, %p124
      %s126 = ssub.s32 %s29, %s36
      %p127 = scmp.eq.s32.totalorder %s126, 0
      %s129 = sadd.s32 %s128, 1
      %s130 = scalar_select %p127, %s128, %s129
      %p133 = pneg %p127
      %p134 = scmp.eq.s32.totalorder %s29, 3
      %p135 = por %p133, %p134
      %p136 = scmp.ne.s32.totalorder %s128, %s131
      %p137 = scmp.eq.s32.totalorder %s29, 0
      %p138 = por %p136, %p137
      %p139 = scmp.ne.s32.totalorder %s128, %s131
      %p140 = scmp.eq.s32.totalorder %s34, 3
      %p141 = por %p139, %p140
      %p142 = scmp.ne.s32.totalorder %s131, %s132
      %p143 = scmp.eq.s32.totalorder %s34, 0
      %p144 = por %p142, %p143
      %p145 = scmp.ne.s32.totalorder %s131, %s132
      %p146 = scmp.eq.s32.totalorder %s35, 3
      %p147 = por %p145, %p146
      %p149 = scmp.ne.s32.totalorder %s132, %s148
      %p150 = scmp.eq.s32.totalorder %s35, 0
      %p151 = por %p149, %p150
      %s152 = ssub.s32 %s29, %s36
      %p153 = scmp.eq.s32.totalorder %s152, 0
      %s155 = sadd.s32 %s154, 1
      %s156 = scalar_select %p153, %s154, %s155
      %p159 = pneg %p153
      %p160 = scmp.eq.s32.totalorder %s29, 3
      %p161 = por %p159, %p160
      %p162 = scmp.ne.s32.totalorder %s154, %s157
      %p163 = scmp.eq.s32.totalorder %s29, 0
      %p164 = por %p162, %p163
      %p165 = scmp.ne.s32.totalorder %s154, %s157
      %p166 = scmp.eq.s32.totalorder %s34, 3
      %p167 = por %p165, %p166
      %p168 = scmp.ne.s32.totalorder %s157, %s158
      %p169 = scmp.eq.s32.totalorder %s34, 0
      %p170 = por %p168, %p169
      %p171 = scmp.ne.s32.totalorder %s157, %s158
      %p172 = scmp.eq.s32.totalorder %s35, 3
      %p173 = por %p171, %p172
      %p175 = scmp.ne.s32.totalorder %s158, %s174
      %p176 = scmp.eq.s32.totalorder %s35, 0
      %p177 = por %p175, %p176
      %s178 = ssub.s32 %s29, %s36
      %p179 = scmp.eq.s32.totalorder %s178, 0
      %s181 = sadd.s32 %s180, 1
      %s182 = scalar_select %p179, %s180, %s181
      %p185 = pneg %p179
      %p186 = scmp.eq.s32.totalorder %s29, 3
      %p187 = por %p185, %p186
      %p188 = scmp.ne.s32.totalorder %s180, %s183
      %p189 = scmp.eq.s32.totalorder %s29, 0
      %p190 = por %p188, %p189
      %p191 = scmp.ne.s32.totalorder %s180, %s183
      %p192 = scmp.eq.s32.totalorder %s34, 3
      %p193 = por %p191, %p192
      %p194 = scmp.ne.s32.totalorder %s183, %s184
      %p195 = scmp.eq.s32.totalorder %s34, 0
      %p196 = por %p194, %p195
      %p197 = scmp.ne.s32.totalorder %s183, %s184
      %p198 = scmp.eq.s32.totalorder %s35, 3
      %p199 = por %p197, %p198
      %p201 = scmp.ne.s32.totalorder %s184, %s200
      %p202 = scmp.eq.s32.totalorder %s35, 0
      %p203 = por %p201, %p202
      %s204 = ssub.s32 %s29, %s36
      %p205 = scmp.eq.s32.totalorder %s204, 0
      %s207 = sadd.s32 %s206, 1
      %s208 = scalar_select %p205, %s206, %s207
      %p211 = pneg %p205
      %p212 = scmp.eq.s32.totalorder %s29, 3
      %p213 = por %p211, %p212
      %p214 = scmp.ne.s32.totalorder %s206, %s209
      %p215 = scmp.eq.s32.totalorder %s29, 0
      %p216 = por %p214, %p215
      %p217 = scmp.ne.s32.totalorder %s206, %s209
      %p218 = scmp.eq.s32.totalorder %s34, 3
      %p219 = por %p217, %p218
      %p220 = scmp.ne.s32.totalorder %s209, %s210
      %p221 = scmp.eq.s32.totalorder %s34, 0
      %p222 = por %p220, %p221
      %p223 = scmp.ne.s32.totalorder %s209, %s210
      %p224 = scmp.eq.s32.totalorder %s35, 3
      %p225 = por %p223, %p224
      %p227 = scmp.ne.s32.totalorder %s210, %s226
      %p228 = scmp.eq.s32.totalorder %s35, 0
      %p229 = por %p227, %p228
      %s231 = sadd.s32 %s230, 1
      %p234 = scmp.eq.s32.totalorder %s29, 3
      %p235 = scmp.ne.s32.totalorder %s230, %s232
      %p236 = scmp.eq.s32.totalorder %s29, 0
      %p237 = por %p235, %p236
      %p238 = scmp.ne.s32.totalorder %s230, %s232
      %p239 = scmp.eq.s32.totalorder %s34, 3
      %p240 = por %p238, %p239
      %p241 = scmp.ne.s32.totalorder %s232, %s233
      %p242 = scmp.eq.s32.totalorder %s34, 0
      %p243 = por %p241, %p242
      %p244 = scmp.ne.s32.totalorder %s232, %s233
      %p245 = scmp.eq.s32.totalorder %s35, 3
      %p246 = por %p244, %p245
      %p248 = scmp.ne.s32.totalorder %s233, %s247
      %p249 = scmp.eq.s32.totalorder %s35, 0
      %p250 = por %p248, %p249
      %s252 = sadd.s32 %s251, 1
      %p255 = scmp.eq.s32.totalorder %s29, 3
      %p256 = scmp.ne.s32.totalorder %s251, %s253
      %p257 = scmp.eq.s32.totalorder %s29, 0
      %p258 = por %p256, %p257
      %p259 = scmp.ne.s32.totalorder %s251, %s253
      %p260 = scmp.eq.s32.totalorder %s34, 3
      %p261 = por %p259, %p260
      %p262 = scmp.ne.s32.totalorder %s253, %s254
      %p263 = scmp.eq.s32.totalorder %s34, 0
      %p264 = por %p262, %p263
      %p265 = scmp.ne.s32.totalorder %s253, %s254
      %p266 = scmp.eq.s32.totalorder %s35, 3
      %p267 = por %p265, %p266
      %p269 = scmp.ne.s32.totalorder %s254, %s268
      %p270 = scmp.eq.s32.totalorder %s35, 0
      %p271 = por %p269, %p270
      %s273 = sadd.s32 %s272, 1
      %p276 = scmp.eq.s32.totalorder %s29, 3
      %p277 = scmp.ne.s32.totalorder %s272, %s274
      %p278 = scmp.eq.s32.totalorder %s29, 0
      %p279 = por %p277, %p278
      %p280 = scmp.ne.s32.totalorder %s272, %s274
      %p281 = scmp.eq.s32.totalorder %s34, 3
      %p282 = por %p280, %p281
      %p283 = scmp.ne.s32.totalorder %s274, %s275
      %p284 = scmp.eq.s32.totalorder %s34, 0
      %p285 = por %p283, %p284
      %p286 = scmp.ne.s32.totalorder %s274, %s275
      %p287 = scmp.eq.s32.totalorder %s35, 3
      %p288 = por %p286, %p287
      %p290 = scmp.ne.s32.totalorder %s275, %s289
      %p291 = scmp.eq.s32.totalorder %s35, 0
      %p292 = por %p290, %p291
      %p293 = scmp.le.s32.totalorder 1, %s29
      %p294 = scmp.lt.s32.totalorder %s29, 5
      %p295 = pnand %p293, %p294
      %p296 = pneg %p295
      // Predicated region
      $region9: #{text_trans_forward.1} parent=5 // pred_check
        _
      $region10: #{text_trans_forward.1} parent=5 // pred_check_branch
        %298 = sbr.rel (%p295) target = $region12
      $region11: #{text_trans_forward.1} parent=5 // pred_region
        %s299 = ssub.s32 %s29, 1
        // Predicated region
        $region13: #{text_trans_forward.1} parent=11 // pred_check
          %p300 = pneg %p50
        $region14: #{text_trans_forward.1} parent=11 // pred_check_branch
          %302 = sbr.rel (%p300) target = $region16
        $region15: #{text_trans_forward.1} parent=11 // pred_region
          %s304 = ssub.s32 128, 128
          %305 = vsyncadd [#allocation5], %s304
          %s307 = sshll.u32 [#allocation4], 4
          %s308 = int_to_ptr.vmem [resolvable:$true] %s307
          %310 = dma.hbm_to_vmem [thread:$0]  %s0, 128, %s308, [#allocation5]
        $region16: #{text_trans_forward.1} parent=11 // pred_fallthru
          _
        // Predicated region
        $region17: #{text_trans_forward.1} parent=11 // pred_check
          %p311 = pneg %p71
        $region18: #{text_trans_forward.1} parent=11 // pred_check_branch
          %313 = sbr.rel (%p311) target = $region20
        $region19: #{text_trans_forward.1} parent=11 // pred_region
          %s315 = ssub.s32 2048, 2048
          %316 = vsyncadd [#allocation7], %s315
          %s317 = sshll.u32 [#allocation6], 4
          %s318 = int_to_ptr.vmem [resolvable:$true] %s317
          %323 = dma.hbm_to_vmem [thread:$0]  %s1, 2048, %s318, [#allocation7], 256, 256, 16
        $region20: #{text_trans_forward.1} parent=11 // pred_fallthru
          _
        // Predicated region
        $region21: #{text_trans_forward.1} parent=11 // pred_check
          %p324 = pneg %p92
        $region22: #{text_trans_forward.1} parent=11 // pred_check_branch
          %326 = sbr.rel (%p324) target = $region24
        $region23: #{text_trans_forward.1} parent=11 // pred_region
          %s328 = ssub.s32 64, 64
          %329 = vsyncadd [#allocation7], %s328
          %s331 = sshll.u32 [#allocation8], 4
          %s332 = int_to_ptr.vmem [resolvable:$true] %s331
          %334 = dma.hbm_to_vmem [thread:$0]  %s2, 64, %s332, [#allocation7]
        $region24: #{text_trans_forward.1} parent=11 // pred_fallthru
          _
        // Predicated region
        $region25: #{text_trans_forward.1} parent=11 // pred_check
          %p335 = pneg %p243
        $region26: #{text_trans_forward.1} parent=11 // pred_check_branch
          %337 = sbr.rel (%p335) target = $region28
        $region27: #{text_trans_forward.1} parent=11 // pred_region
          %s339 = ssub.s32 64, 64
          %340 = vsyncadd [#allocation16], %s339
          %s342 = sshll.u32 [#allocation17], 4
          %s343 = int_to_ptr.vmem [resolvable:$true] %s342
          %345 = dma.hbm_to_vmem [thread:$0]  %s8, 64, %s343, [#allocation16]
        $region28: #{text_trans_forward.1} parent=11 // pred_fallthru
          _
        // Predicated region
        $region29: #{text_trans_forward.1} parent=11 // pred_check
          %p346 = pneg %p264
        $region30: #{text_trans_forward.1} parent=11 // pred_check_branch
          %348 = sbr.rel (%p346) target = $region32
        $region31: #{text_trans_forward.1} parent=11 // pred_region
          _
        $region32: #{text_trans_forward.1} parent=11 // pred_fallthru
          _
      $region12: #{text_trans_forward.1} parent=5 // pred_fallthru
        _
      %p349 = scmp.lt.s32.totalorder %s29, 4
      // Predicated region
      $region33: #{text_trans_forward.1} parent=5 // pred_check
        %p350 = pneg %p349
      $region34: #{text_trans_forward.1} parent=5 // pred_check_branch
        %352 = sbr.rel (%p350) target = $region36
      $region35: #{text_trans_forward.1} parent=5 // pred_region
        // Predicated region
        $region37: #{text_trans_forward.1} parent=35 // pred_check
          %p353 = pneg %p112
        $region38: #{text_trans_forward.1} parent=35 // pred_check_branch
          %355 = sbr.rel (%p353) target = $region40
        $region39: #{text_trans_forward.1} parent=35 // pred_region
          %s356 = sand.u32 %s29, 1
          %s357 = scalar_lea.sflag [#allocation10], %s356
          %s358 = sand.u32 %s102, 1
          %s359 = smul.addr %s358, 1024
          %s360 = scalar_lea.vmem [#allocation9], %s359
          %s362 = ssub.s32 16384, 16384
          %363 = vsyncadd %s357, %s362
          %s364 = smul.addr %s29, 256
          %s365 = smul.addr %s364, 64
          %s366 = scalar_lea.hbm %s3, %s365
          %s367 = sshll.u32 %s360, 4
          %s368 = int_to_ptr.vmem [resolvable:$true] %s367
          %373 = dma.hbm_to_vmem [thread:$0]  %s366, 16384, %s368, %s357, 256, 256, 16
        $region40: #{text_trans_forward.1} parent=35 // pred_fallthru
          _
        // Predicated region
        $region41: #{text_trans_forward.1} parent=35 // pred_check
          %p374 = pneg %p138
        $region42: #{text_trans_forward.1} parent=35 // pred_check_branch
          %376 = sbr.rel (%p374) target = $region44
        $region43: #{text_trans_forward.1} parent=35 // pred_region
          %s377 = sand.u32 %s29, 1
          %s378 = scalar_lea.sflag [#allocation10], %s377
          %s379 = sand.u32 %s128, 1
          %s380 = smul.addr %s379, 2048
          %s381 = scalar_lea.vmem [#allocation11], %s380
          %s383 = ssub.s32 32768, 32768
          %384 = vsyncadd %s378, %s383
          %s385 = smul.addr %s29, 512
          %s386 = smul.addr %s385, 64
          %s387 = scalar_lea.hbm %s4, %s386
          %s388 = sshll.u32 %s381, 4
          %s389 = int_to_ptr.vmem [resolvable:$true] %s388
          %394 = dma.hbm_to_vmem [thread:$0]  %s387, 32768, %s389, %s378, 512, 512, 32
        $region44: #{text_trans_forward.1} parent=35 // pred_fallthru
          _
        // Predicated region
        $region45: #{text_trans_forward.1} parent=35 // pred_check
          %p395 = pneg %p164
        $region46: #{text_trans_forward.1} parent=35 // pred_check_branch
          %397 = sbr.rel (%p395) target = $region48
        $region47: #{text_trans_forward.1} parent=35 // pred_region
          %s398 = sand.u32 %s29, 1
          %s399 = scalar_lea.sflag [#allocation13], %s398
          %s400 = sand.u32 %s154, 1
          %s401 = smul.addr %s400, 2048
          %s402 = scalar_lea.vmem [#allocation12], %s401
          %s404 = ssub.s32 32768, 32768
          %405 = vsyncadd %s399, %s404
          %s406 = smul.addr %s29, 512
          %s407 = smul.addr %s406, 64
          %s408 = scalar_lea.hbm %s5, %s407
          %s409 = sshll.u32 %s402, 4
          %s410 = int_to_ptr.vmem [resolvable:$true] %s409
          %415 = dma.hbm_to_vmem [thread:$0]  %s408, 32768, %s410, %s399, 256, 256, 16
        $region48: #{text_trans_forward.1} parent=35 // pred_fallthru
          _
        // Predicated region
        $region49: #{text_trans_forward.1} parent=35 // pred_check
          %p416 = pneg %p190
        $region50: #{text_trans_forward.1} parent=35 // pred_check_branch
          %418 = sbr.rel (%p416) target = $region52
        $region51: #{text_trans_forward.1} parent=35 // pred_region
          %s419 = sand.u32 %s29, 1
          %s420 = scalar_lea.sflag [#allocation13], %s419
          %s421 = sand.u32 %s180, 1
          %s422 = smul.addr %s421, 32
          %s423 = scalar_lea.vmem [#allocation14], %s422
          %s425 = ssub.s32 512, 512
          %426 = vsyncadd %s420, %s425
          %s427 = smul.addr %s29, 4
          %s428 = smul.addr %s427, 128
          %s429 = scalar_lea.hbm %s6, %s428
          %s431 = sshll.u32 %s423, 4
          %s432 = int_to_ptr.vmem [resolvable:$true] %s431
          %434 = dma.hbm_to_vmem [thread:$0]  %s429, 512, %s432, %s420
        $region52: #{text_trans_forward.1} parent=35 // pred_fallthru
          _
        // Predicated region
        $region53: #{text_trans_forward.1} parent=35 // pred_check
          %p435 = pneg %p216
        $region54: #{text_trans_forward.1} parent=35 // pred_check_branch
          %437 = sbr.rel (%p435) target = $region56
        $region55: #{text_trans_forward.1} parent=35 // pred_region
          %s438 = sand.u32 %s29, 1
          %s439 = scalar_lea.sflag [#allocation16], %s438
          %s440 = sand.u32 %s206, 1
          %s441 = smul.addr %s440, 8
          %s442 = scalar_lea.vmem [#allocation15], %s441
          %s444 = ssub.s32 128, 128
          %445 = vsyncadd %s439, %s444
          %s446 = smul.addr %s29, 8
          %s447 = smul.addr %s446, 16
          %s448 = scalar_lea.hbm %s7, %s447
          %s450 = sshll.u32 %s442, 4
          %s451 = int_to_ptr.vmem [resolvable:$true] %s450
          %453 = dma.hbm_to_vmem [thread:$0]  %s448, 128, %s451, %s439
        $region56: #{text_trans_forward.1} parent=35 // pred_fallthru
          _
      $region36: #{text_trans_forward.1} parent=5 // pred_fallthru
        _
      %p454 = scmp.le.s32.totalorder 1, %s29
      %p455 = scmp.lt.s32.totalorder %s29, 5
      %p456 = pnand %p454, %p455
      %p457 = pneg %p456
      // Predicated region
      $region57: #{text_trans_forward.1} parent=5 // pred_check
        _
      $region58: #{text_trans_forward.1} parent=5 // pred_check_branch
        %459 = sbr.rel (%p456) target = $region60
      $region59: #{text_trans_forward.1} parent=5 // pred_region
        %s460 = ssub.s32 %s29, 1
        // Predicated region
        $region61: #{text_trans_forward.1} parent=59 // pred_check
          %p461 = pneg %p50
        $region62: #{text_trans_forward.1} parent=59 // pred_check_branch
          %463 = sbr.rel (%p461) target = $region64
        $region63: #{text_trans_forward.1} parent=59 // pred_region
          %464 = dma.done [#allocation5], 128
        $region64: #{text_trans_forward.1} parent=59 // pred_fallthru
          _
        // Predicated region
        $region65: #{text_trans_forward.1} parent=59 // pred_check
          %p465 = pneg %p71
        $region66: #{text_trans_forward.1} parent=59 // pred_check_branch
          %467 = sbr.rel (%p465) target = $region68
        $region67: #{text_trans_forward.1} parent=59 // pred_region
          %468 = dma.done [#allocation7], 2048
        $region68: #{text_trans_forward.1} parent=59 // pred_fallthru
          _
        // Predicated region
        $region69: #{text_trans_forward.1} parent=59 // pred_check
          %p469 = pneg %p92
        $region70: #{text_trans_forward.1} parent=59 // pred_check_branch
          %471 = sbr.rel (%p469) target = $region72
        $region71: #{text_trans_forward.1} parent=59 // pred_region
          %472 = dma.done [#allocation7], 64
        $region72: #{text_trans_forward.1} parent=59 // pred_fallthru
          _
        %s473 = sand.u32 %s34, 1
        %s474 = scalar_lea.sflag [#allocation10], %s473
        %s475 = sand.u32 %s105, 1
        %s476 = smul.addr %s475, 1024
        %s477 = scalar_lea.vmem [#allocation9], %s476
        // Predicated region
        $region73: #{text_trans_forward.1} parent=59 // pred_check
          %p478 = pneg %p118
        $region74: #{text_trans_forward.1} parent=59 // pred_check_branch
          %480 = sbr.rel (%p478) target = $region76
        $region75: #{text_trans_forward.1} parent=59 // pred_region
          %481 = dma.done %s474, 16384
        $region76: #{text_trans_forward.1} parent=59 // pred_fallthru
          _
        %s482 = sand.u32 %s34, 1
        %s483 = scalar_lea.sflag [#allocation10], %s482
        %s484 = sand.u32 %s131, 1
        %s485 = smul.addr %s484, 2048
        %s486 = scalar_lea.vmem [#allocation11], %s485
        // Predicated region
        $region77: #{text_trans_forward.1} parent=59 // pred_check
          %p487 = pneg %p144
        $region78: #{text_trans_forward.1} parent=59 // pred_check_branch
          %489 = sbr.rel (%p487) target = $region80
        $region79: #{text_trans_forward.1} parent=59 // pred_region
          %490 = dma.done %s483, 32768
        $region80: #{text_trans_forward.1} parent=59 // pred_fallthru
          _
        %s491 = sand.u32 %s34, 1
        %s492 = scalar_lea.sflag [#allocation13], %s491
        %s493 = sand.u32 %s157, 1
        %s494 = smul.addr %s493, 2048
        %s495 = scalar_lea.vmem [#allocation12], %s494
        // Predicated region
        $region81: #{text_trans_forward.1} parent=59 // pred_check
          %p496 = pneg %p170
        $region82: #{text_trans_forward.1} parent=59 // pred_check_branch
          %498 = sbr.rel (%p496) target = $region84
        $region83: #{text_trans_forward.1} parent=59 // pred_region
          %499 = dma.done %s492, 32768
        $region84: #{text_trans_forward.1} parent=59 // pred_fallthru
          _
        %s500 = sand.u32 %s34, 1
        %s501 = scalar_lea.sflag [#allocation13], %s500
        %s502 = sand.u32 %s183, 1
        %s503 = smul.addr %s502, 32
        %s504 = scalar_lea.vmem [#allocation14], %s503
        // Predicated region
        $region85: #{text_trans_forward.1} parent=59 // pred_check
          %p505 = pneg %p196
        $region86: #{text_trans_forward.1} parent=59 // pred_check_branch
          %507 = sbr.rel (%p505) target = $region88
        $region87: #{text_trans_forward.1} parent=59 // pred_region
          %508 = dma.done %s501, 512
        $region88: #{text_trans_forward.1} parent=59 // pred_fallthru
          _
        %s509 = sand.u32 %s34, 1
        %s510 = scalar_lea.sflag [#allocation16], %s509
        %s511 = sand.u32 %s209, 1
        %s512 = smul.addr %s511, 8
        %s513 = scalar_lea.vmem [#allocation15], %s512
        // Predicated region
        $region89: #{text_trans_forward.1} parent=59 // pred_check
          %p514 = pneg %p222
        $region90: #{text_trans_forward.1} parent=59 // pred_check_branch
          %516 = sbr.rel (%p514) target = $region92
        $region91: #{text_trans_forward.1} parent=59 // pred_region
          %517 = dma.done %s510, 128
        $region92: #{text_trans_forward.1} parent=59 // pred_fallthru
          _
        // Predicated region
        $region93: #{text_trans_forward.1} parent=59 // pred_check
          %p518 = pneg %p243
        $region94: #{text_trans_forward.1} parent=59 // pred_check_branch
          %520 = sbr.rel (%p518) target = $region96
        $region95: #{text_trans_forward.1} parent=59 // pred_region
          %521 = dma.done [#allocation16], 64
        $region96: #{text_trans_forward.1} parent=59 // pred_fallthru
          _
        %p522 = pneg %p50
        %p523 = pneg %p47
        %p524 = pneg %p71
        %p525 = pneg %p68
        %p526 = pneg %p92
        %p527 = pneg %p89
        %s528 = sand.u32 %s34, 1
        %s529 = scalar_lea.sflag [#allocation10], %s528
        %s530 = sand.u32 %s105, 1
        %s531 = smul.addr %s530, 1024
        %s532 = scalar_lea.vmem [#allocation9], %s531
        %p533 = pneg %p118
        %p534 = pneg %p115
        %s535 = sand.u32 %s34, 1
        %s536 = scalar_lea.sflag [#allocation10], %s535
        %s537 = sand.u32 %s131, 1
        %s538 = smul.addr %s537, 2048
        %s539 = scalar_lea.vmem [#allocation11], %s538
        %p540 = pneg %p144
        %p541 = pneg %p141
        %s542 = sand.u32 %s34, 1
        %s543 = scalar_lea.sflag [#allocation13], %s542
        %s544 = sand.u32 %s157, 1
        %s545 = smul.addr %s544, 2048
        %s546 = scalar_lea.vmem [#allocation12], %s545
        %p547 = pneg %p170
        %p548 = pneg %p167
        %s549 = sand.u32 %s34, 1
        %s550 = scalar_lea.sflag [#allocation13], %s549
        %s551 = sand.u32 %s183, 1
        %s552 = smul.addr %s551, 32
        %s553 = scalar_lea.vmem [#allocation14], %s552
        %p554 = pneg %p196
        %p555 = pneg %p193
        %s556 = sand.u32 %s34, 1
        %s557 = scalar_lea.sflag [#allocation16], %s556
        %s558 = sand.u32 %s209, 1
        %s559 = smul.addr %s558, 8
        %s560 = scalar_lea.vmem [#allocation15], %s559
        %p561 = pneg %p222
        %p562 = pneg %p219
        %p563 = pneg %p243
        %p564 = pneg %p240
        %p565 = pneg %p264
        %p566 = pneg %p261
        %p567 = pneg %p285
        %p568 = pneg %p282
        %p570 = scmp.eq.s32.totalorder %s34, 0
        // Predicated region
        $region97: #{text_trans_forward.1} parent=59 // pred_check
          %p571 = pneg %p570
        $region98: #{text_trans_forward.1} parent=59 // pred_check_branch
          %573 = sbr.rel (%p571) target = $region100
        $region99: #{text_trans_forward.1} parent=59 // pred_region
          %v574 = vld [vmem:[#allocation4] sm:$0xff]
          %v575 = vpack.c.bf16 %v574, %v574
          %v576 = vld [vmem:[#allocation6] sm:$0xff]
          %v577 = vld [vmem:[#allocation6 + $0x8] sm:$0xff]
          %v578 = vld [vmem:[#allocation6 + $0x10] sm:$0xff]
          %v579 = vld [vmem:[#allocation6 + $0x18] sm:$0xff]
          %v580 = vld [vmem:[#allocation6 + $0x20] sm:$0xff]
          %v581 = vld [vmem:[#allocation6 + $0x28] sm:$0xff]
          %v582 = vld [vmem:[#allocation6 + $0x30] sm:$0xff]
          %v583 = vld [vmem:[#allocation6 + $0x38] sm:$0xff]
          %v584 = vld [vmem:[#allocation6 + $0x40] sm:$0xff]
          %v585 = vld [vmem:[#allocation6 + $0x48] sm:$0xff]
          %v586 = vld [vmem:[#allocation6 + $0x50] sm:$0xff]
          %v587 = vld [vmem:[#allocation6 + $0x58] sm:$0xff]
          %v588 = vld [vmem:[#allocation6 + $0x60] sm:$0xff]
          %v589 = vld [vmem:[#allocation6 + $0x68] sm:$0xff]
          %v590 = vld [vmem:[#allocation6 + $0x70] sm:$0xff]
          %v591 = vld [vmem:[#allocation6 + $0x78] sm:$0xff]
          %v592 = vld [vmem:[#allocation8] sm:$0xf]
          %v594 = vlaneseq
          %v595 = vshrl.u32 %v594, 7
          %v596 = vsub.s32 0, %v595
          %v597 = vrot.slane %v592, %v596
          %v598 = vlaneseq
          %v599 = vshrl.u32 %v598, 7
          %v600 = vsub.s32 1, %v599
          %v601 = vrot.slane %v592, %v600
          %v602 = vlaneseq
          %v603 = vshrl.u32 %v602, 7
          %v604 = vsub.s32 2, %v603
          %v605 = vrot.slane %v592, %v604
          %v606 = vlaneseq
          %v607 = vshrl.u32 %v606, 7
          %v608 = vsub.s32 3, %v607
          %v609 = vrot.slane %v592, %v608
          %v630 = vunpack.c.l.b16 %v576
          %v631 = vunpack.c.h.b16 %v576
          %v632 = vunpack.c.l.b16 %v577
          %v633 = vunpack.c.h.b16 %v577
          %v634 = vunpack.c.l.b16 %v578
          %v635 = vunpack.c.h.b16 %v578
          %v636 = vunpack.c.l.b16 %v579
          %v637 = vunpack.c.h.b16 %v579
          %v638 = vunpack.c.l.b16 %v580
          %v639 = vunpack.c.h.b16 %v580
          %v640 = vunpack.c.l.b16 %v581
          %v641 = vunpack.c.h.b16 %v581
          %v642 = vunpack.c.l.b16 %v582
          %v643 = vunpack.c.h.b16 %v582
          %v644 = vunpack.c.l.b16 %v583
          %v645 = vunpack.c.h.b16 %v583
          %v646 = vunpack.c.l.b16 %v584
          %v647 = vunpack.c.h.b16 %v584
          %v648 = vunpack.c.l.b16 %v585
          %v649 = vunpack.c.h.b16 %v585
          %v650 = vunpack.c.l.b16 %v586
          %v651 = vunpack.c.h.b16 %v586
          %v652 = vunpack.c.l.b16 %v587
          %v653 = vunpack.c.h.b16 %v587
          %v654 = vunpack.c.l.b16 %v588
          %v655 = vunpack.c.h.b16 %v588
          %v656 = vunpack.c.l.b16 %v589
          %v657 = vunpack.c.h.b16 %v589
          %v658 = vunpack.c.l.b16 %v590
          %v659 = vunpack.c.h.b16 %v590
          %v660 = vunpack.c.l.b16 %v591
          %v661 = vunpack.c.h.b16 %v591
          %v662 = vpack.c.b16 %v634, %v630
          %v663 = vpack.c.b16 %v635, %v631
          %v664 = vpack.c.b16 %v636, %v632
          %v665 = vpack.c.b16 %v637, %v633
          %v666 = vpack.c.b16 %v642, %v638
          %v667 = vpack.c.b16 %v643, %v639
          %v668 = vpack.c.b16 %v644, %v640
          %v669 = vpack.c.b16 %v645, %v641
          %v670 = vpack.c.b16 %v650, %v646
          %v671 = vpack.c.b16 %v651, %v647
          %v672 = vpack.c.b16 %v652, %v648
          %v673 = vpack.c.b16 %v653, %v649
          %v674 = vpack.c.b16 %v658, %v654
          %v675 = vpack.c.b16 %v659, %v655
          %v676 = vpack.c.b16 %v660, %v656
          %v677 = vpack.c.b16 %v661, %v657
          %vm694 = vcmask 523264
          %v696 = vsel %vm694, %v575, 0
          %698 = vmatprep.subr.bf16.mxu0 %v663
          %699 = vmatpush1.bf16.msra.mxu0 %v662
          %700 = vmatprep.subr.bf16.mxu0 %v667
          %701 = vmatpush1.bf16.msra.mxu0 %v666
          %702 = vmatprep.subr.bf16.mxu0 %v671
          %703 = vmatpush1.bf16.msra.mxu0 %v670
          %704 = vmatprep.subr.bf16.mxu0 %v675
          %705 = vmatpush1.bf16.msra.mxu0 %v674
          %706 = vmatprep.subr.bf16.mxu0 0
          %707 = vmatpush1.bf16.msra.mxu0 0
          %708 = vmatprep.subr.bf16.mxu0 0
          %709 = vmatpush1.bf16.msra.mxu0 0
          %710 = vmatprep.subr.bf16.mxu0 0
          %711 = vmatpush1.bf16.msra.mxu0 0
          %712 = vmatprep.subr.bf16.mxu0 0
          %713 = vmatpush1.bf16.msra.mxu0 0
          %714 = vmatprep.subr.bf16.mxu0 0
          %715 = vmatpush1.bf16.msra.mxu0 0
          %716 = vmatprep.subr.bf16.mxu0 0
          %717 = vmatpush1.bf16.msra.mxu0 0
          %718 = vmatprep.subr.bf16.mxu0 0
          %719 = vmatpush1.bf16.msra.mxu0 0
          %720 = vmatprep.subr.bf16.mxu0 0
          %721 = vmatpush1.bf16.msra.mxu0 0
          %722 = vmatprep.subr.bf16.mxu0 0
          %723 = vmatpush1.bf16.msra.mxu0 0
          %724 = vmatprep.subr.bf16.mxu0 0
          %725 = vmatpush1.bf16.msra.mxu0 0
          %726 = vmatprep.subr.bf16.mxu0 0
          %727 = vmatpush1.bf16.msra.mxu0 0
          %728 = vmatprep.subr.bf16.mxu0 0
          %729 = vmatpush1.bf16.msra.mxu0 0
          %730 = vmatprep.mubr.bf16.mxu0 0
          %731 = vmatmul.mubr.bf16.gmra.mrb[0].mxu0 %v696
          %v732 = vpop.f32.mrb[0].mxu0
          %v733 = vadd.f32 %v597, %v732
          %v734 = vpop.f32.mrb[0].mxu0
          %v735 = vadd.f32 %v601, %v734
          %v736 = vpop.f32.mrb[0].mxu0
          %v737 = vpop.f32.mrb[0].mxu0
          %738 = vdwg.mxu0
          %739 = vmatprep.subr.bf16.mxu0 %v665
          %740 = vmatpush1.bf16.msra.mxu0 %v664
          %741 = vmatprep.subr.bf16.mxu0 %v669
          %742 = vmatpush1.bf16.msra.mxu0 %v668
          %743 = vmatprep.subr.bf16.mxu0 %v673
          %744 = vmatpush1.bf16.msra.mxu0 %v672
          %745 = vmatprep.subr.bf16.mxu0 %v677
          %746 = vmatpush1.bf16.msra.mxu0 %v676
          %747 = vmatprep.subr.bf16.mxu0 0
          %748 = vmatpush1.bf16.msra.mxu0 0
          %749 = vmatprep.subr.bf16.mxu0 0
          %750 = vmatpush1.bf16.msra.mxu0 0
          %751 = vmatprep.subr.bf16.mxu0 0
          %752 = vmatpush1.bf16.msra.mxu0 0
          %753 = vmatprep.subr.bf16.mxu0 0
          %754 = vmatpush1.bf16.msra.mxu0 0
          %755 = vmatprep.subr.bf16.mxu0 0
          %756 = vmatpush1.bf16.msra.mxu0 0
          %757 = vmatprep.subr.bf16.mxu0 0
          %758 = vmatpush1.bf16.msra.mxu0 0
          %759 = vmatprep.subr.bf16.mxu0 0
          %760 = vmatpush1.bf16.msra.mxu0 0
          %761 = vmatprep.subr.bf16.mxu0 0
          %762 = vmatpush1.bf16.msra.mxu0 0
          %763 = vmatprep.subr.bf16.mxu0 0
          %764 = vmatpush1.bf16.msra.mxu0 0
          %765 = vmatprep.subr.bf16.mxu0 0
          %766 = vmatpush1.bf16.msra.mxu0 0
          %767 = vmatprep.subr.bf16.mxu0 0
          %768 = vmatpush1.bf16.msra.mxu0 0
          %769 = vmatprep.subr.bf16.mxu0 0
          %770 = vmatpush1.bf16.msra.mxu0 0
          %771 = vmatprep.mubr.bf16.mxu0 0
          %772 = vmatmul.mubr.bf16.gmra.mrb[0].mxu0 %v696
          %v773 = vpop.f32.mrb[0].mxu0
          %v774 = vadd.f32 %v605, %v773
          %v775 = vpop.f32.mrb[0].mxu0
          %v776 = vadd.f32 %v609, %v775
          %v777 = vpop.f32.mrb[0].mxu0
          %v778 = vpop.f32.mrb[0].mxu0
          %779 = vdwg.mxu0
          %780 = vst [vmem:[#allocation2] sm:$0xff] %v733
          %781 = vst [vmem:[#allocation2 + $0x8] sm:$0xff] %v735
          %782 = vst [vmem:[#allocation2 + $0x10] sm:$0xff] %v774
          %783 = vst [vmem:[#allocation2 + $0x18] sm:$0xff] %v776
        $region100: #{text_trans_forward.1} parent=59 // pred_fallthru
          _
        %v784 = vld [vmem:[#allocation2] sm:$0xff]
        %v785 = vld [vmem:[#allocation2 + $0x8] sm:$0xff]
        %v786 = vld [vmem:[#allocation2 + $0x10] sm:$0xff]
        %v787 = vld [vmem:[#allocation2 + $0x18] sm:$0xff]
        %v788 = vld [vmem:[%s504] sm:$0xff]
        %v789 = vld [vmem:[%s504 + $0x8] sm:$0xff]
        %v790 = vld [vmem:[%s504 + $0x10] sm:$0xff]
        %v791 = vld [vmem:[%s504 + $0x18] sm:$0xff]
        %v792 = vpack.c.bf16 %v784, %v784
        %v793 = vpack.c.bf16 %v785, %v785
        %v794 = vpack.c.bf16 %v786, %v786
        %v795 = vpack.c.bf16 %v787, %v787
        %v796 = vld [vmem:[%s477] sm:$0xff]
        %v797 = vld [vmem:[%s477 + $0x8] sm:$0xff]
        %v798 = vld [vmem:[%s477 + $0x10] sm:$0xff]
        %v799 = vld [vmem:[%s477 + $0x18] sm:$0xff]
        %v800 = vld [vmem:[%s477 + $0x20] sm:$0xff]
        %v801 = vld [vmem:[%s477 + $0x28] sm:$0xff]
        %v802 = vld [vmem:[%s477 + $0x30] sm:$0xff]
        %v803 = vld [vmem:[%s477 + $0x38] sm:$0xff]
        %v804 = vld [vmem:[%s477 + $0x40] sm:$0xff]
        %v805 = vld [vmem:[%s477 + $0x48] sm:$0xff]
        %v806 = vld [vmem:[%s477 + $0x50] sm:$0xff]
        %v807 = vld [vmem:[%s477 + $0x58] sm:$0xff]
        %v808 = vld [vmem:[%s477 + $0x60] sm:$0xff]
        %v809 = vld [vmem:[%s477 + $0x68] sm:$0xff]
        %v810 = vld [vmem:[%s477 + $0x70] sm:$0xff]
        %v811 = vld [vmem:[%s477 + $0x78] sm:$0xff]
        %v812 = vld [vmem:[%s477 + $0x80] sm:$0xff]
        %v813 = vld [vmem:[%s477 + $0x88] sm:$0xff]
        %v814 = vld [vmem:[%s477 + $0x90] sm:$0xff]
        %v815 = vld [vmem:[%s477 + $0x98] sm:$0xff]
        %v816 = vld [vmem:[%s477 + $0xa0] sm:$0xff]
        %v817 = vld [vmem:[%s477 + $0xa8] sm:$0xff]
        %v818 = vld [vmem:[%s477 + $0xb0] sm:$0xff]
        %v819 = vld [vmem:[%s477 + $0xb8] sm:$0xff]
        %v820 = vld [vmem:[%s477 + $0xc0] sm:$0xff]
        %v821 = vld [vmem:[%s477 + $0xc8] sm:$0xff]
        %v822 = vld [vmem:[%s477 + $0xd0] sm:$0xff]
        %v823 = vld [vmem:[%s477 + $0xd8] sm:$0xff]
        %v824 = vld [vmem:[%s477 + $0xe0] sm:$0xff]
        %v825 = vld [vmem:[%s477 + $0xe8] sm:$0xff]
        %v826 = vld [vmem:[%s477 + $0xf0] sm:$0xff]
        %v827 = vld [vmem:[%s477 + $0xf8] sm:$0xff]
        %v828 = vld [vmem:[%s477 + $0x100] sm:$0xff]
        %v829 = vld [vmem:[%s477 + $0x108] sm:$0xff]
        %v830 = vld [vmem:[%s477 + $0x110] sm:$0xff]
        %v831 = vld [vmem:[%s477 + $0x118] sm:$0xff]
        %v832 = vld [vmem:[%s477 + $0x120] sm:$0xff]
        %v833 = vld [vmem:[%s477 + $0x128] sm:$0xff]
        %v834 = vld [vmem:[%s477 + $0x130] sm:$0xff]
        %v835 = vld [vmem:[%s477 + $0x138] sm:$0xff]
        %v836 = vld [vmem:[%s477 + $0x140] sm:$0xff]
        %v837 = vld [vmem:[%s477 + $0x148] sm:$0xff]
        %v838 = vld [vmem:[%s477 + $0x150] sm:$0xff]
        %v839 = vld [vmem:[%s477 + $0x158] sm:$0xff]
        %v840 = vld [vmem:[%s477 + $0x160] sm:$0xff]
        %v841 = vld [vmem:[%s477 + $0x168] sm:$0xff]
        %v842 = vld [vmem:[%s477 + $0x170] sm:$0xff]
        %v843 = vld [vmem:[%s477 + $0x178] sm:$0xff]
        %v844 = vld [vmem:[%s477 + $0x180] sm:$0xff]
        %v845 = vld [vmem:[%s477 + $0x188] sm:$0xff]
        %v846 = vld [vmem:[%s477 + $0x190] sm:$0xff]
        %v847 = vld [vmem:[%s477 + $0x198] sm:$0xff]
        %v848 = vld [vmem:[%s477 + $0x1a0] sm:$0xff]
        %v849 = vld [vmem:[%s477 + $0x1a8] sm:$0xff]
        %v850 = vld [vmem:[%s477 + $0x1b0] sm:$0xff]
        %v851 = vld [vmem:[%s477 + $0x1b8] sm:$0xff]
        %v852 = vld [vmem:[%s477 + $0x1c0] sm:$0xff]
        %v853 = vld [vmem:[%s477 + $0x1c8] sm:$0xff]
        %v854 = vld [vmem:[%s477 + $0x1d0] sm:$0xff]
        %v855 = vld [vmem:[%s477 + $0x1d8] sm:$0xff]
        %v856 = vld [vmem:[%s477 + $0x1e0] sm:$0xff]
        %v857 = vld [vmem:[%s477 + $0x1e8] sm:$0xff]
        %v858 = vld [vmem:[%s477 + $0x1f0] sm:$0xff]
        %v859 = vld [vmem:[%s477 + $0x1f8] sm:$0xff]
        %v860 = vld [vmem:[%s477 + $0x200] sm:$0xff]
        %v861 = vld [vmem:[%s477 + $0x208] sm:$0xff]
        %v862 = vld [vmem:[%s477 + $0x210] sm:$0xff]
        %v863 = vld [vmem:[%s477 + $0x218] sm:$0xff]
        %v864 = vld [vmem:[%s477 + $0x220] sm:$0xff]
        %v865 = vld [vmem:[%s477 + $0x228] sm:$0xff]
        %v866 = vld [vmem:[%s477 + $0x230] sm:$0xff]
        %v867 = vld [vmem:[%s477 + $0x238] sm:$0xff]
        %v868 = vld [vmem:[%s477 + $0x240] sm:$0xff]
        %v869 = vld [vmem:[%s477 + $0x248] sm:$0xff]
        %v870 = vld [vmem:[%s477 + $0x250] sm:$0xff]
        %v871 = vld [vmem:[%s477 + $0x258] sm:$0xff]
        %v872 = vld [vmem:[%s477 + $0x260] sm:$0xff]
        %v873 = vld [vmem:[%s477 + $0x268] sm:$0xff]
        %v874 = vld [vmem:[%s477 + $0x270] sm:$0xff]
        %v875 = vld [vmem:[%s477 + $0x278] sm:$0xff]
        %v876 = vld [vmem:[%s477 + $0x280] sm:$0xff]
        %v877 = vld [vmem:[%s477 + $0x288] sm:$0xff]
        %v878 = vld [vmem:[%s477 + $0x290] sm:$0xff]
        %v879 = vld [vmem:[%s477 + $0x298] sm:$0xff]
        %v880 = vld [vmem:[%s477 + $0x2a0] sm:$0xff]
        %v881 = vld [vmem:[%s477 + $0x2a8] sm:$0xff]
        %v882 = vld [vmem:[%s477 + $0x2b0] sm:$0xff]
        %v883 = vld [vmem:[%s477 + $0x2b8] sm:$0xff]
        %v884 = vld [vmem:[%s477 + $0x2c0] sm:$0xff]
        %v885 = vld [vmem:[%s477 + $0x2c8] sm:$0xff]
        %v886 = vld [vmem:[%s477 + $0x2d0] sm:$0xff]
        %v887 = vld [vmem:[%s477 + $0x2d8] sm:$0xff]
        %v888 = vld [vmem:[%s477 + $0x2e0] sm:$0xff]
        %v889 = vld [vmem:[%s477 + $0x2e8] sm:$0xff]
        %v890 = vld [vmem:[%s477 + $0x2f0] sm:$0xff]
        %v891 = vld [vmem:[%s477 + $0x2f8] sm:$0xff]
        %v892 = vld [vmem:[%s477 + $0x300] sm:$0xff]
        %v893 = vld [vmem:[%s477 + $0x308] sm:$0xff]
        %v894 = vld [vmem:[%s477 + $0x310] sm:$0xff]
        %v895 = vld [vmem:[%s477 + $0x318] sm:$0xff]
        %v896 = vld [vmem:[%s477 + $0x320] sm:$0xff]
        %v897 = vld [vmem:[%s477 + $0x328] sm:$0xff]
        %v898 = vld [vmem:[%s477 + $0x330] sm:$0xff]
        %v899 = vld [vmem:[%s477 + $0x338] sm:$0xff]
        %v900 = vld [vmem:[%s477 + $0x340] sm:$0xff]
        %v901 = vld [vmem:[%s477 + $0x348] sm:$0xff]
        %v902 = vld [vmem:[%s477 + $0x350] sm:$0xff]
        %v903 = vld [vmem:[%s477 + $0x358] sm:$0xff]
        %v904 = vld [vmem:[%s477 + $0x360] sm:$0xff]
        %v905 = vld [vmem:[%s477 + $0x368] sm:$0xff]
        %v906 = vld [vmem:[%s477 + $0x370] sm:$0xff]
        %v907 = vld [vmem:[%s477 + $0x378] sm:$0xff]
        %v908 = vld [vmem:[%s477 + $0x380] sm:$0xff]
        %v909 = vld [vmem:[%s477 + $0x388] sm:$0xff]
        %v910 = vld [vmem:[%s477 + $0x390] sm:$0xff]
        %v911 = vld [vmem:[%s477 + $0x398] sm:$0xff]
        %v912 = vld [vmem:[%s477 + $0x3a0] sm:$0xff]
        %v913 = vld [vmem:[%s477 + $0x3a8] sm:$0xff]
        %v914 = vld [vmem:[%s477 + $0x3b0] sm:$0xff]
        %v915 = vld [vmem:[%s477 + $0x3b8] sm:$0xff]
        %v916 = vld [vmem:[%s477 + $0x3c0] sm:$0xff]
        %v917 = vld [vmem:[%s477 + $0x3c8] sm:$0xff]
        %v918 = vld [vmem:[%s477 + $0x3d0] sm:$0xff]
        %v919 = vld [vmem:[%s477 + $0x3d8] sm:$0xff]
        %v920 = vld [vmem:[%s477 + $0x3e0] sm:$0xff]
        %v921 = vld [vmem:[%s477 + $0x3e8] sm:$0xff]
        %v922 = vld [vmem:[%s477 + $0x3f0] sm:$0xff]
        %v923 = vld [vmem:[%s477 + $0x3f8] sm:$0xff]
        %v924 = vlaneseq
        %v925 = vshrl.u32 %v924, 7
        %v926 = vsub.s32 0, %v925
        %v927 = vrot.slane %v788, %v926
        %v928 = vlaneseq
        %v929 = vshrl.u32 %v928, 7
        %v930 = vsub.s32 0, %v929
        %v931 = vrot.slane %v789, %v930
        %v932 = vlaneseq
        %v933 = vshrl.u32 %v932, 7
        %v934 = vsub.s32 0, %v933
        %v935 = vrot.slane %v790, %v934
        %v936 = vlaneseq
        %v937 = vshrl.u32 %v936, 7
        %v938 = vsub.s32 0, %v937
        %v939 = vrot.slane %v791, %v938
        %v1068 = vunpack.c.l.b16 %v796
        %v1069 = vunpack.c.h.b16 %v796
        %v1070 = vunpack.c.l.b16 %v797
        %v1071 = vunpack.c.h.b16 %v797
        %v1072 = vunpack.c.l.b16 %v798
        %v1073 = vunpack.c.h.b16 %v798
        %v1074 = vunpack.c.l.b16 %v799
        %v1075 = vunpack.c.h.b16 %v799
        %v1076 = vunpack.c.l.b16 %v800
        %v1077 = vunpack.c.h.b16 %v800
        %v1078 = vunpack.c.l.b16 %v801
        %v1079 = vunpack.c.h.b16 %v801
        %v1080 = vunpack.c.l.b16 %v802
        %v1081 = vunpack.c.h.b16 %v802
        %v1082 = vunpack.c.l.b16 %v803
        %v1083 = vunpack.c.h.b16 %v803
        %v1084 = vunpack.c.l.b16 %v804
        %v1085 = vunpack.c.h.b16 %v804
        %v1086 = vunpack.c.l.b16 %v805
        %v1087 = vunpack.c.h.b16 %v805
        %v1088 = vunpack.c.l.b16 %v806
        %v1089 = vunpack.c.h.b16 %v806
        %v1090 = vunpack.c.l.b16 %v807
        %v1091 = vunpack.c.h.b16 %v807
        %v1092 = vunpack.c.l.b16 %v808
        %v1093 = vunpack.c.h.b16 %v808
        %v1094 = vunpack.c.l.b16 %v809
        %v1095 = vunpack.c.h.b16 %v809
        %v1096 = vunpack.c.l.b16 %v810
        %v1097 = vunpack.c.h.b16 %v810
        %v1098 = vunpack.c.l.b16 %v811
        %v1099 = vunpack.c.h.b16 %v811
        %v1100 = vunpack.c.l.b16 %v812
        %v1101 = vunpack.c.h.b16 %v812
        %v1102 = vunpack.c.l.b16 %v813
        %v1103 = vunpack.c.h.b16 %v813
        %v1104 = vunpack.c.l.b16 %v814
        %v1105 = vunpack.c.h.b16 %v814
        %v1106 = vunpack.c.l.b16 %v815
        %v1107 = vunpack.c.h.b16 %v815
        %v1108 = vunpack.c.l.b16 %v816
        %v1109 = vunpack.c.h.b16 %v816
        %v1110 = vunpack.c.l.b16 %v817
        %v1111 = vunpack.c.h.b16 %v817
        %v1112 = vunpack.c.l.b16 %v818
        %v1113 = vunpack.c.h.b16 %v818
        %v1114 = vunpack.c.l.b16 %v819
        %v1115 = vunpack.c.h.b16 %v819
        %v1116 = vunpack.c.l.b16 %v820
        %v1117 = vunpack.c.h.b16 %v820
        %v1118 = vunpack.c.l.b16 %v821
        %v1119 = vunpack.c.h.b16 %v821
        %v1120 = vunpack.c.l.b16 %v822
        %v1121 = vunpack.c.h.b16 %v822
        %v1122 = vunpack.c.l.b16 %v823
        %v1123 = vunpack.c.h.b16 %v823
        %v1124 = vunpack.c.l.b16 %v824
        %v1125 = vunpack.c.h.b16 %v824
        %v1126 = vunpack.c.l.b16 %v825
        %v1127 = vunpack.c.h.b16 %v825
        %v1128 = vunpack.c.l.b16 %v826
        %v1129 = vunpack.c.h.b16 %v826
        %v1130 = vunpack.c.l.b16 %v827
        %v1131 = vunpack.c.h.b16 %v827
        %v1132 = vunpack.c.l.b16 %v828
        %v1133 = vunpack.c.h.b16 %v828
        %v1134 = vunpack.c.l.b16 %v829
        %v1135 = vunpack.c.h.b16 %v829
        %v1136 = vunpack.c.l.b16 %v830
        %v1137 = vunpack.c.h.b16 %v830
        %v1138 = vunpack.c.l.b16 %v831
        %v1139 = vunpack.c.h.b16 %v831
        %v1140 = vunpack.c.l.b16 %v832
        %v1141 = vunpack.c.h.b16 %v832
        %v1142 = vunpack.c.l.b16 %v833
        %v1143 = vunpack.c.h.b16 %v833
        %v1144 = vunpack.c.l.b16 %v834
        %v1145 = vunpack.c.h.b16 %v834
        %v1146 = vunpack.c.l.b16 %v835
        %v1147 = vunpack.c.h.b16 %v835
        %v1148 = vunpack.c.l.b16 %v836
        %v1149 = vunpack.c.h.b16 %v836
        %v1150 = vunpack.c.l.b16 %v837
        %v1151 = vunpack.c.h.b16 %v837
        %v1152 = vunpack.c.l.b16 %v838
        %v1153 = vunpack.c.h.b16 %v838
        %v1154 = vunpack.c.l.b16 %v839
        %v1155 = vunpack.c.h.b16 %v839
        %v1156 = vunpack.c.l.b16 %v840
        %v1157 = vunpack.c.h.b16 %v840
        %v1158 = vunpack.c.l.b16 %v841
        %v1159 = vunpack.c.h.b16 %v841
        %v1160 = vunpack.c.l.b16 %v842
        %v1161 = vunpack.c.h.b16 %v842
        %v1162 = vunpack.c.l.b16 %v843
        %v1163 = vunpack.c.h.b16 %v843
        %v1164 = vunpack.c.l.b16 %v844
        %v1165 = vunpack.c.h.b16 %v844
        %v1166 = vunpack.c.l.b16 %v845
        %v1167 = vunpack.c.h.b16 %v845
        %v1168 = vunpack.c.l.b16 %v846
        %v1169 = vunpack.c.h.b16 %v846
        %v1170 = vunpack.c.l.b16 %v847
        %v1171 = vunpack.c.h.b16 %v847
        %v1172 = vunpack.c.l.b16 %v848
        %v1173 = vunpack.c.h.b16 %v848
        %v1174 = vunpack.c.l.b16 %v849
        %v1175 = vunpack.c.h.b16 %v849
        %v1176 = vunpack.c.l.b16 %v850
        %v1177 = vunpack.c.h.b16 %v850
        %v1178 = vunpack.c.l.b16 %v851
        %v1179 = vunpack.c.h.b16 %v851
        %v1180 = vunpack.c.l.b16 %v852
        %v1181 = vunpack.c.h.b16 %v852
        %v1182 = vunpack.c.l.b16 %v853
        %v1183 = vunpack.c.h.b16 %v853
        %v1184 = vunpack.c.l.b16 %v854
        %v1185 = vunpack.c.h.b16 %v854
        %v1186 = vunpack.c.l.b16 %v855
        %v1187 = vunpack.c.h.b16 %v855
        %v1188 = vunpack.c.l.b16 %v856
        %v1189 = vunpack.c.h.b16 %v856
        %v1190 = vunpack.c.l.b16 %v857
        %v1191 = vunpack.c.h.b16 %v857
        %v1192 = vunpack.c.l.b16 %v858
        %v1193 = vunpack.c.h.b16 %v858
        %v1194 = vunpack.c.l.b16 %v859
        %v1195 = vunpack.c.h.b16 %v859
        %v1196 = vunpack.c.l.b16 %v860
        %v1197 = vunpack.c.h.b16 %v860
        %v1198 = vunpack.c.l.b16 %v861
        %v1199 = vunpack.c.h.b16 %v861
        %v1200 = vunpack.c.l.b16 %v862
        %v1201 = vunpack.c.h.b16 %v862
        %v1202 = vunpack.c.l.b16 %v863
        %v1203 = vunpack.c.h.b16 %v863
        %v1204 = vunpack.c.l.b16 %v864
        %v1205 = vunpack.c.h.b16 %v864
        %v1206 = vunpack.c.l.b16 %v865
        %v1207 = vunpack.c.h.b16 %v865
        %v1208 = vunpack.c.l.b16 %v866
        %v1209 = vunpack.c.h.b16 %v866
        %v1210 = vunpack.c.l.b16 %v867
        %v1211 = vunpack.c.h.b16 %v867
        %v1212 = vunpack.c.l.b16 %v868
        %v1213 = vunpack.c.h.b16 %v868
        %v1214 = vunpack.c.l.b16 %v869
        %v1215 = vunpack.c.h.b16 %v869
        %v1216 = vunpack.c.l.b16 %v870
        %v1217 = vunpack.c.h.b16 %v870
        %v1218 = vunpack.c.l.b16 %v871
        %v1219 = vunpack.c.h.b16 %v871
        %v1220 = vunpack.c.l.b16 %v872
        %v1221 = vunpack.c.h.b16 %v872
        %v1222 = vunpack.c.l.b16 %v873
        %v1223 = vunpack.c.h.b16 %v873
        %v1224 = vunpack.c.l.b16 %v874
        %v1225 = vunpack.c.h.b16 %v874
        %v1226 = vunpack.c.l.b16 %v875
        %v1227 = vunpack.c.h.b16 %v875
        %v1228 = vunpack.c.l.b16 %v876
        %v1229 = vunpack.c.h.b16 %v876
        %v1230 = vunpack.c.l.b16 %v877
        %v1231 = vunpack.c.h.b16 %v877
        %v1232 = vunpack.c.l.b16 %v878
        %v1233 = vunpack.c.h.b16 %v878
        %v1234 = vunpack.c.l.b16 %v879
        %v1235 = vunpack.c.h.b16 %v879
        %v1236 = vunpack.c.l.b16 %v880
        %v1237 = vunpack.c.h.b16 %v880
        %v1238 = vunpack.c.l.b16 %v881
        %v1239 = vunpack.c.h.b16 %v881
        %v1240 = vunpack.c.l.b16 %v882
        %v1241 = vunpack.c.h.b16 %v882
        %v1242 = vunpack.c.l.b16 %v883
        %v1243 = vunpack.c.h.b16 %v883
        %v1244 = vunpack.c.l.b16 %v884
        %v1245 = vunpack.c.h.b16 %v884
        %v1246 = vunpack.c.l.b16 %v885
        %v1247 = vunpack.c.h.b16 %v885
        %v1248 = vunpack.c.l.b16 %v886
        %v1249 = vunpack.c.h.b16 %v886
        %v1250 = vunpack.c.l.b16 %v887
        %v1251 = vunpack.c.h.b16 %v887
        %v1252 = vunpack.c.l.b16 %v888
        %v1253 = vunpack.c.h.b16 %v888
        %v1254 = vunpack.c.l.b16 %v889
        %v1255 = vunpack.c.h.b16 %v889
        %v1256 = vunpack.c.l.b16 %v890
        %v1257 = vunpack.c.h.b16 %v890
        %v1258 = vunpack.c.l.b16 %v891
        %v1259 = vunpack.c.h.b16 %v891
        %v1260 = vunpack.c.l.b16 %v892
        %v1261 = vunpack.c.h.b16 %v892
        %v1262 = vunpack.c.l.b16 %v893
        %v1263 = vunpack.c.h.b16 %v893
        %v1264 = vunpack.c.l.b16 %v894
        %v1265 = vunpack.c.h.b16 %v894
        %v1266 = vunpack.c.l.b16 %v895
        %v1267 = vunpack.c.h.b16 %v895
        %v1268 = vunpack.c.l.b16 %v896
        %v1269 = vunpack.c.h.b16 %v896
        %v1270 = vunpack.c.l.b16 %v897
        %v1271 = vunpack.c.h.b16 %v897
        %v1272 = vunpack.c.l.b16 %v898
        %v1273 = vunpack.c.h.b16 %v898
        %v1274 = vunpack.c.l.b16 %v899
        %v1275 = vunpack.c.h.b16 %v899
        %v1276 = vunpack.c.l.b16 %v900
        %v1277 = vunpack.c.h.b16 %v900
        %v1278 = vunpack.c.l.b16 %v901
        %v1279 = vunpack.c.h.b16 %v901
        %v1280 = vunpack.c.l.b16 %v902
        %v1281 = vunpack.c.h.b16 %v902
        %v1282 = vunpack.c.l.b16 %v903
        %v1283 = vunpack.c.h.b16 %v903
        %v1284 = vunpack.c.l.b16 %v904
        %v1285 = vunpack.c.h.b16 %v904
        %v1286 = vunpack.c.l.b16 %v905
        %v1287 = vunpack.c.h.b16 %v905
        %v1288 = vunpack.c.l.b16 %v906
        %v1289 = vunpack.c.h.b16 %v906
        %v1290 = vunpack.c.l.b16 %v907
        %v1291 = vunpack.c.h.b16 %v907
        %v1292 = vunpack.c.l.b16 %v908
        %v1293 = vunpack.c.h.b16 %v908
        %v1294 = vunpack.c.l.b16 %v909
        %v1295 = vunpack.c.h.b16 %v909
        %v1296 = vunpack.c.l.b16 %v910
        %v1297 = vunpack.c.h.b16 %v910
        %v1298 = vunpack.c.l.b16 %v911
        %v1299 = vunpack.c.h.b16 %v911
        %v1300 = vunpack.c.l.b16 %v912
        %v1301 = vunpack.c.h.b16 %v912
        %v1302 = vunpack.c.l.b16 %v913
        %v1303 = vunpack.c.h.b16 %v913
        %v1304 = vunpack.c.l.b16 %v914
        %v1305 = vunpack.c.h.b16 %v914
        %v1306 = vunpack.c.l.b16 %v915
        %v1307 = vunpack.c.h.b16 %v915
        %v1308 = vunpack.c.l.b16 %v916
        %v1309 = vunpack.c.h.b16 %v916
        %v1310 = vunpack.c.l.b16 %v917
        %v1311 = vunpack.c.h.b16 %v917
        %v1312 = vunpack.c.l.b16 %v918
        %v1313 = vunpack.c.h.b16 %v918
        %v1314 = vunpack.c.l.b16 %v919
        %v1315 = vunpack.c.h.b16 %v919
        %v1316 = vunpack.c.l.b16 %v920
        %v1317 = vunpack.c.h.b16 %v920
        %v1318 = vunpack.c.l.b16 %v921
        %v1319 = vunpack.c.h.b16 %v921
        %v1320 = vunpack.c.l.b16 %v922
        %v1321 = vunpack.c.h.b16 %v922
        %v1322 = vunpack.c.l.b16 %v923
        %v1323 = vunpack.c.h.b16 %v923
        %v1324 = vpack.c.b16 %v1072, %v1068
        %v1325 = vpack.c.b16 %v1073, %v1069
        %v1326 = vpack.c.b16 %v1074, %v1070
        %v1327 = vpack.c.b16 %v1075, %v1071
        %v1328 = vpack.c.b16 %v1080, %v1076
        %v1329 = vpack.c.b16 %v1081, %v1077
        %v1330 = vpack.c.b16 %v1082, %v1078
        %v1331 = vpack.c.b16 %v1083, %v1079
        %v1332 = vpack.c.b16 %v1088, %v1084
        %v1333 = vpack.c.b16 %v1089, %v1085
        %v1334 = vpack.c.b16 %v1090, %v1086
        %v1335 = vpack.c.b16 %v1091, %v1087
        %v1336 = vpack.c.b16 %v1096, %v1092
        %v1337 = vpack.c.b16 %v1097, %v1093
        %v1338 = vpack.c.b16 %v1098, %v1094
        %v1339 = vpack.c.b16 %v1099, %v1095
        %v1340 = vpack.c.b16 %v1104, %v1100
        %v1341 = vpack.c.b16 %v1105, %v1101
        %v1342 = vpack.c.b16 %v1106, %v1102
        %v1343 = vpack.c.b16 %v1107, %v1103
        %v1344 = vpack.c.b16 %v1112, %v1108
        %v1345 = vpack.c.b16 %v1113, %v1109
        %v1346 = vpack.c.b16 %v1114, %v1110
        %v1347 = vpack.c.b16 %v1115, %v1111
        %v1348 = vpack.c.b16 %v1120, %v1116
        %v1349 = vpack.c.b16 %v1121, %v1117
        %v1350 = vpack.c.b16 %v1122, %v1118
        %v1351 = vpack.c.b16 %v1123, %v1119
        %v1352 = vpack.c.b16 %v1128, %v1124
        %v1353 = vpack.c.b16 %v1129, %v1125
        %v1354 = vpack.c.b16 %v1130, %v1126
        %v1355 = vpack.c.b16 %v1131, %v1127
        %v1356 = vpack.c.b16 %v1136, %v1132
        %v1357 = vpack.c.b16 %v1137, %v1133
        %v1358 = vpack.c.b16 %v1138, %v1134
        %v1359 = vpack.c.b16 %v1139, %v1135
        %v1360 = vpack.c.b16 %v1144, %v1140
        %v1361 = vpack.c.b16 %v1145, %v1141
        %v1362 = vpack.c.b16 %v1146, %v1142
        %v1363 = vpack.c.b16 %v1147, %v1143
        %v1364 = vpack.c.b16 %v1152, %v1148
        %v1365 = vpack.c.b16 %v1153, %v1149
        %v1366 = vpack.c.b16 %v1154, %v1150
        %v1367 = vpack.c.b16 %v1155, %v1151
        %v1368 = vpack.c.b16 %v1160, %v1156
        %v1369 = vpack.c.b16 %v1161, %v1157
        %v1370 = vpack.c.b16 %v1162, %v1158
        %v1371 = vpack.c.b16 %v1163, %v1159
        %v1372 = vpack.c.b16 %v1168, %v1164
        %v1373 = vpack.c.b16 %v1169, %v1165
        %v1374 = vpack.c.b16 %v1170, %v1166
        %v1375 = vpack.c.b16 %v1171, %v1167
        %v1376 = vpack.c.b16 %v1176, %v1172
        %v1377 = vpack.c.b16 %v1177, %v1173
        %v1378 = vpack.c.b16 %v1178, %v1174
        %v1379 = vpack.c.b16 %v1179, %v1175
        %v1380 = vpack.c.b16 %v1184, %v1180
        %v1381 = vpack.c.b16 %v1185, %v1181
        %v1382 = vpack.c.b16 %v1186, %v1182
        %v1383 = vpack.c.b16 %v1187, %v1183
        %v1384 = vpack.c.b16 %v1192, %v1188
        %v1385 = vpack.c.b16 %v1193, %v1189
        %v1386 = vpack.c.b16 %v1194, %v1190
        %v1387 = vpack.c.b16 %v1195, %v1191
        %v1388 = vpack.c.b16 %v1200, %v1196
        %v1389 = vpack.c.b16 %v1201, %v1197
        %v1390 = vpack.c.b16 %v1202, %v1198
        %v1391 = vpack.c.b16 %v1203, %v1199
        %v1392 = vpack.c.b16 %v1208, %v1204
        %v1393 = vpack.c.b16 %v1209, %v1205
        %v1394 = vpack.c.b16 %v1210, %v1206
        %v1395 = vpack.c.b16 %v1211, %v1207
        %v1396 = vpack.c.b16 %v1216, %v1212
        %v1397 = vpack.c.b16 %v1217, %v1213
        %v1398 = vpack.c.b16 %v1218, %v1214
        %v1399 = vpack.c.b16 %v1219, %v1215
        %v1400 = vpack.c.b16 %v1224, %v1220
        %v1401 = vpack.c.b16 %v1225, %v1221
        %v1402 = vpack.c.b16 %v1226, %v1222
        %v1403 = vpack.c.b16 %v1227, %v1223
        %v1404 = vpack.c.b16 %v1232, %v1228
        %v1405 = vpack.c.b16 %v1233, %v1229
        %v1406 = vpack.c.b16 %v1234, %v1230
        %v1407 = vpack.c.b16 %v1235, %v1231
        %v1408 = vpack.c.b16 %v1240, %v1236
        %v1409 = vpack.c.b16 %v1241, %v1237
        %v1410 = vpack.c.b16 %v1242, %v1238
        %v1411 = vpack.c.b16 %v1243, %v1239
        %v1412 = vpack.c.b16 %v1248, %v1244
        %v1413 = vpack.c.b16 %v1249, %v1245
        %v1414 = vpack.c.b16 %v1250, %v1246
        %v1415 = vpack.c.b16 %v1251, %v1247
        %v1416 = vpack.c.b16 %v1256, %v1252
        %v1417 = vpack.c.b16 %v1257, %v1253
        %v1418 = vpack.c.b16 %v1258, %v1254
        %v1419 = vpack.c.b16 %v1259, %v1255
        %v1420 = vpack.c.b16 %v1264, %v1260
        %v1421 = vpack.c.b16 %v1265, %v1261
        %v1422 = vpack.c.b16 %v1266, %v1262
        %v1423 = vpack.c.b16 %v1267, %v1263
        %v1424 = vpack.c.b16 %v1272, %v1268
        %v1425 = vpack.c.b16 %v1273, %v1269
        %v1426 = vpack.c.b16 %v1274, %v1270
        %v1427 = vpack.c.b16 %v1275, %v1271
        %v1428 = vpack.c.b16 %v1280, %v1276
        %v1429 = vpack.c.b16 %v1281, %v1277
        %v1430 = vpack.c.b16 %v1282, %v1278
        %v1431 = vpack.c.b16 %v1283, %v1279
        %v1432 = vpack.c.b16 %v1288, %v1284
        %v1433 = vpack.c.b16 %v1289, %v1285
        %v1434 = vpack.c.b16 %v1290, %v1286
        %v1435 = vpack.c.b16 %v1291, %v1287
        %v1436 = vpack.c.b16 %v1296, %v1292
        %v1437 = vpack.c.b16 %v1297, %v1293
        %v1438 = vpack.c.b16 %v1298, %v1294
        %v1439 = vpack.c.b16 %v1299, %v1295
        %v1440 = vpack.c.b16 %v1304, %v1300
        %v1441 = vpack.c.b16 %v1305, %v1301
        %v1442 = vpack.c.b16 %v1306, %v1302
        %v1443 = vpack.c.b16 %v1307, %v1303
        %v1444 = vpack.c.b16 %v1312, %v1308
        %v1445 = vpack.c.b16 %v1313, %v1309
        %v1446 = vpack.c.b16 %v1314, %v1310
        %v1447 = vpack.c.b16 %v1315, %v1311
        %v1448 = vpack.c.b16 %v1320, %v1316
        %v1449 = vpack.c.b16 %v1321, %v1317
        %v1450 = vpack.c.b16 %v1322, %v1318
        %v1451 = vpack.c.b16 %v1323, %v1319
        %1580 = vmatprep.subr.bf16.mxu0 %v1325
        %1581 = vmatpush1.bf16.msra.mxu0 %v1324
        %1582 = vmatprep.subr.bf16.mxu0 %v1329
        %1583 = vmatpush1.bf16.msra.mxu0 %v1328
        %1584 = vmatprep.subr.bf16.mxu0 %v1333
        %1585 = vmatpush1.bf16.msra.mxu0 %v1332
        %1586 = vmatprep.subr.bf16.mxu0 %v1337
        %1587 = vmatpush1.bf16.msra.mxu0 %v1336
        %1588 = vmatprep.subr.bf16.mxu0 %v1341
        %1589 = vmatpush1.bf16.msra.mxu0 %v1340
        %1590 = vmatprep.subr.bf16.mxu0 %v1345
        %1591 = vmatpush1.bf16.msra.mxu0 %v1344
        %1592 = vmatprep.subr.bf16.mxu0 %v1349
        %1593 = vmatpush1.bf16.msra.mxu0 %v1348
        %1594 = vmatprep.subr.bf16.mxu0 %v1353
        %1595 = vmatpush1.bf16.msra.mxu0 %v1352
        %1596 = vmatprep.subr.bf16.mxu0 %v1357
        %1597 = vmatpush1.bf16.msra.mxu0 %v1356
        %1598 = vmatprep.subr.bf16.mxu0 %v1361
        %1599 = vmatpush1.bf16.msra.mxu0 %v1360
        %1600 = vmatprep.subr.bf16.mxu0 %v1365
        %1601 = vmatpush1.bf16.msra.mxu0 %v1364
        %1602 = vmatprep.subr.bf16.mxu0 %v1369
        %1603 = vmatpush1.bf16.msra.mxu0 %v1368
        %1604 = vmatprep.subr.bf16.mxu0 %v1373
        %1605 = vmatpush1.bf16.msra.mxu0 %v1372
        %1606 = vmatprep.subr.bf16.mxu0 %v1377
        %1607 = vmatpush1.bf16.msra.mxu0 %v1376
        %1608 = vmatprep.subr.bf16.mxu0 %v1381
        %1609 = vmatpush1.bf16.msra.mxu0 %v1380
        %1610 = vmatprep.subr.bf16.mxu0 %v1385
        %1611 = vmatpush1.bf16.msra.mxu0 %v1384
        %1612 = vmatprep.mubr.bf16.mxu0 %v793
        %1613 = vmatmul.mubr.bf16.gmra.mrb[0].mxu0 %v792
        %v1614 = vpop.f32.mrb[0].mxu0
        %v1615 = vadd.f32 %v927, %v1614
        %v1616 = vpop.f32.mrb[0].mxu0
        %v1617 = vadd.f32 %v931, %v1616
        %v1618 = vpop.f32.mrb[0].mxu0
        %v1619 = vpop.f32.mrb[0].mxu0
        %1620 = vdwg.mxu0
        %1621 = vmatprep.subr.bf16.mxu0 %v1389
        %1622 = vmatpush1.bf16.msra.mxu0 %v1388
        %1623 = vmatprep.subr.bf16.mxu0 %v1393
        %1624 = vmatpush1.bf16.msra.mxu0 %v1392
        %1625 = vmatprep.subr.bf16.mxu0 %v1397
        %1626 = vmatpush1.bf16.msra.mxu0 %v1396
        %1627 = vmatprep.subr.bf16.mxu0 %v1401
        %1628 = vmatpush1.bf16.msra.mxu0 %v1400
        %1629 = vmatprep.subr.bf16.mxu0 %v1405
        %1630 = vmatpush1.bf16.msra.mxu0 %v1404
        %1631 = vmatprep.subr.bf16.mxu0 %v1409
        %1632 = vmatpush1.bf16.msra.mxu0 %v1408
        %1633 = vmatprep.subr.bf16.mxu0 %v1413
        %1634 = vmatpush1.bf16.msra.mxu0 %v1412
        %1635 = vmatprep.subr.bf16.mxu0 %v1417
        %1636 = vmatpush1.bf16.msra.mxu0 %v1416
        %1637 = vmatprep.subr.bf16.mxu0 %v1421
        %1638 = vmatpush1.bf16.msra.mxu0 %v1420
        %1639 = vmatprep.subr.bf16.mxu0 %v1425
        %1640 = vmatpush1.bf16.msra.mxu0 %v1424
        %1641 = vmatprep.subr.bf16.mxu0 %v1429
        %1642 = vmatpush1.bf16.msra.mxu0 %v1428
        %1643 = vmatprep.subr.bf16.mxu0 %v1433
        %1644 = vmatpush1.bf16.msra.mxu0 %v1432
        %1645 = vmatprep.subr.bf16.mxu0 %v1437
        %1646 = vmatpush1.bf16.msra.mxu0 %v1436
        %1647 = vmatprep.subr.bf16.mxu0 %v1441
        %1648 = vmatpush1.bf16.msra.mxu0 %v1440
        %1649 = vmatprep.subr.bf16.mxu0 %v1445
        %1650 = vmatpush1.bf16.msra.mxu0 %v1444
        %1651 = vmatprep.subr.bf16.mxu0 %v1449
        %1652 = vmatpush1.bf16.msra.mxu0 %v1448
        %1653 = vmatprep.mubr.bf16.mxu0 %v795
        %1654 = vmatmul.mubr.bf16.gmra.mrb[0].mxu0 %v794
        %v1655 = vpop.f32.mrb[0].mxu0
        %v1656 = vadd.f32 %v1615, %v1655
        %v1657 = vpop.f32.mrb[0].mxu0
        %v1658 = vadd.f32 %v1617, %v1657
        %v1659 = vpop.f32.mrb[0].mxu0
        %v1660 = vpop.f32.mrb[0].mxu0
        %1661 = vdwg.mxu0
        %1662 = vmatprep.subr.bf16.mxu0 %v1327
        %1663 = vmatpush1.bf16.msra.mxu0 %v1326
        %1664 = vmatprep.subr.bf16.mxu0 %v1331
        %1665 = vmatpush1.bf16.msra.mxu0 %v1330
        %1666 = vmatprep.subr.bf16.mxu0 %v1335
        %1667 = vmatpush1.bf16.msra.mxu0 %v1334
        %1668 = vmatprep.subr.bf16.mxu0 %v1339
        %1669 = vmatpush1.bf16.msra.mxu0 %v1338
        %1670 = vmatprep.subr.bf16.mxu0 %v1343
        %1671 = vmatpush1.bf16.msra.mxu0 %v1342
        %1672 = vmatprep.subr.bf16.mxu0 %v1347
        %1673 = vmatpush1.bf16.msra.mxu0 %v1346
        %1674 = vmatprep.subr.bf16.mxu0 %v1351
        %1675 = vmatpush1.bf16.msra.mxu0 %v1350
        %1676 = vmatprep.subr.bf16.mxu0 %v1355
        %1677 = vmatpush1.bf16.msra.mxu0 %v1354
        %1678 = vmatprep.subr.bf16.mxu0 %v1359
        %1679 = vmatpush1.bf16.msra.mxu0 %v1358
        %1680 = vmatprep.subr.bf16.mxu0 %v1363
        %1681 = vmatpush1.bf16.msra.mxu0 %v1362
        %1682 = vmatprep.subr.bf16.mxu0 %v1367
        %1683 = vmatpush1.bf16.msra.mxu0 %v1366
        %1684 = vmatprep.subr.bf16.mxu0 %v1371
        %1685 = vmatpush1.bf16.msra.mxu0 %v1370
        %1686 = vmatprep.subr.bf16.mxu0 %v1375
        %1687 = vmatpush1.bf16.msra.mxu0 %v1374
        %1688 = vmatprep.subr.bf16.mxu0 %v1379
        %1689 = vmatpush1.bf16.msra.mxu0 %v1378
        %1690 = vmatprep.subr.bf16.mxu0 %v1383
        %1691 = vmatpush1.bf16.msra.mxu0 %v1382
        %1692 = vmatprep.subr.bf16.mxu0 %v1387
        %1693 = vmatpush1.bf16.msra.mxu0 %v1386
        %1694 = vmatprep.mubr.bf16.mxu0 %v793
        %1695 = vmatmul.mubr.bf16.gmra.mrb[0].mxu0 %v792
        %v1696 = vpop.f32.mrb[0].mxu0
        %v1697 = vadd.f32 %v935, %v1696
        %v1698 = vpop.f32.mrb[0].mxu0
        %v1699 = vadd.f32 %v939, %v1698
        %v1700 = vpop.f32.mrb[0].mxu0
        %v1701 = vpop.f32.mrb[0].mxu0
        %1702 = vdwg.mxu0
        %1703 = vmatprep.subr.bf16.mxu0 %v1391
        %1704 = vmatpush1.bf16.msra.mxu0 %v1390
        %1705 = vmatprep.subr.bf16.mxu0 %v1395
        %1706 = vmatpush1.bf16.msra.mxu0 %v1394
        %1707 = vmatprep.subr.bf16.mxu0 %v1399
        %1708 = vmatpush1.bf16.msra.mxu0 %v1398
        %1709 = vmatprep.subr.bf16.mxu0 %v1403
        %1710 = vmatpush1.bf16.msra.mxu0 %v1402
        %1711 = vmatprep.subr.bf16.mxu0 %v1407
        %1712 = vmatpush1.bf16.msra.mxu0 %v1406
        %1713 = vmatprep.subr.bf16.mxu0 %v1411
        %1714 = vmatpush1.bf16.msra.mxu0 %v1410
        %1715 = vmatprep.subr.bf16.mxu0 %v1415
        %1716 = vmatpush1.bf16.msra.mxu0 %v1414
        %1717 = vmatprep.subr.bf16.mxu0 %v1419
        %1718 = vmatpush1.bf16.msra.mxu0 %v1418
        %1719 = vmatprep.subr.bf16.mxu0 %v1423
        %1720 = vmatpush1.bf16.msra.mxu0 %v1422
        %1721 = vmatprep.subr.bf16.mxu0 %v1427
        %1722 = vmatpush1.bf16.msra.mxu0 %v1426
        %1723 = vmatprep.subr.bf16.mxu0 %v1431
        %1724 = vmatpush1.bf16.msra.mxu0 %v1430
        %1725 = vmatprep.subr.bf16.mxu0 %v1435
        %1726 = vmatpush1.bf16.msra.mxu0 %v1434
        %1727 = vmatprep.subr.bf16.mxu0 %v1439
        %1728 = vmatpush1.bf16.msra.mxu0 %v1438
        %1729 = vmatprep.subr.bf16.mxu0 %v1443
        %1730 = vmatpush1.bf16.msra.mxu0 %v1442
        %1731 = vmatprep.subr.bf16.mxu0 %v1447
        %1732 = vmatpush1.bf16.msra.mxu0 %v1446
        %1733 = vmatprep.subr.bf16.mxu0 %v1451
        %1734 = vmatpush1.bf16.msra.mxu0 %v1450
        %1735 = vmatprep.mubr.bf16.mxu0 %v795
        %1736 = vmatmul.mubr.bf16.gmra.mrb[0].mxu0 %v794
        %v1737 = vpop.f32.mrb[0].mxu0
        %v1738 = vadd.f32 %v1697, %v1737
        %v1739 = vpop.f32.mrb[0].mxu0
        %v1740 = vadd.f32 %v1699, %v1739
        %v1741 = vpop.f32.mrb[0].mxu0
        %v1742 = vpop.f32.mrb[0].mxu0
        %1743 = vdwg.mxu0
        %v1744 = vadd.f32 %v784, %v1656
        %v1745 = vadd.f32 %v785, %v1658
        %v1746 = vadd.f32 %v786, %v1738
        %v1747 = vadd.f32 %v787, %v1740
        %v1748 = vadd.f32 %v1744, %v1745
        %v1749 = vadd.f32 %v1748, %v1746
        %v1750 = vadd.f32 %v1749, %v1747
        %1751 = vadd.xlane.f32.xlu0 %v1750
        %v1752 = vpop.xlane.xlu0 %1751
        %v1753 = vrcp.pop 512.0
        %v1754 = vmul.f32 %v1752, %v1753
        %v1755 = vsub.f32 %v1744, %v1754
        %v1756 = vsub.f32 %v1745, %v1754
        %v1757 = vsub.f32 %v1746, %v1754
        %v1758 = vsub.f32 %v1747, %v1754
        %v1759 = vmul.f32 %v1755, %v1755
        %v1760 = vmul.f32 %v1756, %v1756
        %v1761 = vmul.f32 %v1757, %v1757
        %v1762 = vmul.f32 %v1758, %v1758
        %v1763 = vadd.f32 %v1759, %v1760
        %v1764 = vadd.f32 %v1763, %v1761
        %v1765 = vadd.f32 %v1764, %v1762
        %1766 = vadd.xlane.f32.xlu0 %v1765
        %v1767 = vpop.xlane.xlu0 %1766
        %v1768 = vmul.f32 %v1767, %v1753
        %v1769 = vadd.f32 %v1768, 1e-05
        %v1770 = vrsqrt.pop %v1769
        %v1771 = vmul.f32 %v1755, %v1770
        %v1772 = vmul.f32 %v1756, %v1770
        %v1773 = vmul.f32 %v1757, %v1770
        %v1774 = vmul.f32 %v1758, %v1770
        %v1775 = vlaneseq
        %v1776 = vshrl.u32 %v1775, 7
        %v1777 = vsub.s32 1, %v1776
        %v1778 = vrot.slane %v788, %v1777
        %v1779 = vlaneseq
        %v1780 = vshrl.u32 %v1779, 7
        %v1781 = vsub.s32 1, %v1780
        %v1782 = vrot.slane %v789, %v1781
        %v1783 = vlaneseq
        %v1784 = vshrl.u32 %v1783, 7
        %v1785 = vsub.s32 1, %v1784
        %v1786 = vrot.slane %v790, %v1785
        %v1787 = vlaneseq
        %v1788 = vshrl.u32 %v1787, 7
        %v1789 = vsub.s32 1, %v1788
        %v1790 = vrot.slane %v791, %v1789
        %v1791 = vmul.f32 %v1771, %v1778
        %v1792 = vmul.f32 %v1772, %v1782
        %v1793 = vmul.f32 %v1773, %v1786
        %v1794 = vmul.f32 %v1774, %v1790
        %v1795 = vlaneseq
        %v1796 = vshrl.u32 %v1795, 7
        %v1797 = vsub.s32 2, %v1796
        %v1798 = vrot.slane %v788, %v1797
        %v1799 = vlaneseq
        %v1800 = vshrl.u32 %v1799, 7
        %v1801 = vsub.s32 2, %v1800
        %v1802 = vrot.slane %v789, %v1801
        %v1803 = vlaneseq
        %v1804 = vshrl.u32 %v1803, 7
        %v1805 = vsub.s32 2, %v1804
        %v1806 = vrot.slane %v790, %v1805
        %v1807 = vlaneseq
        %v1808 = vshrl.u32 %v1807, 7
        %v1809 = vsub.s32 2, %v1808
        %v1810 = vrot.slane %v791, %v1809
        %v1811 = vadd.f32 %v1791, %v1798
        %v1812 = vadd.f32 %v1792, %v1802
        %v1813 = vadd.f32 %v1793, %v1806
        %v1814 = vadd.f32 %v1794, %v1810
        %v1815 = vpack.c.bf16 %v1811, %v1811
        %v1816 = vpack.c.bf16 %v1812, %v1812
        %v1817 = vpack.c.bf16 %v1813, %v1813
        %v1818 = vpack.c.bf16 %v1814, %v1814
        %v1819 = vld [vmem:[%s486] sm:$0xff]
        %v1820 = vld [vmem:[%s486 + $0x8] sm:$0xff]
        %v1821 = vld [vmem:[%s486 + $0x10] sm:$0xff]
        %v1822 = vld [vmem:[%s486 + $0x18] sm:$0xff]
        %v1823 = vld [vmem:[%s486 + $0x20] sm:$0xff]
        %v1824 = vld [vmem:[%s486 + $0x28] sm:$0xff]
        %v1825 = vld [vmem:[%s486 + $0x30] sm:$0xff]
        %v1826 = vld [vmem:[%s486 + $0x38] sm:$0xff]
        %v1827 = vld [vmem:[%s486 + $0x40] sm:$0xff]
        %v1828 = vld [vmem:[%s486 + $0x48] sm:$0xff]
        %v1829 = vld [vmem:[%s486 + $0x50] sm:$0xff]
        %v1830 = vld [vmem:[%s486 + $0x58] sm:$0xff]
        %v1831 = vld [vmem:[%s486 + $0x60] sm:$0xff]
        %v1832 = vld [vmem:[%s486 + $0x68] sm:$0xff]
        %v1833 = vld [vmem:[%s486 + $0x70] sm:$0xff]
        %v1834 = vld [vmem:[%s486 + $0x78] sm:$0xff]
        %v1835 = vld [vmem:[%s486 + $0x80] sm:$0xff]
        %v1836 = vld [vmem:[%s486 + $0x88] sm:$0xff]
        %v1837 = vld [vmem:[%s486 + $0x90] sm:$0xff]
        %v1838 = vld [vmem:[%s486 + $0x98] sm:$0xff]
        %v1839 = vld [vmem:[%s486 + $0xa0] sm:$0xff]
        %v1840 = vld [vmem:[%s486 + $0xa8] sm:$0xff]
        %v1841 = vld [vmem:[%s486 + $0xb0] sm:$0xff]
        %v1842 = vld [vmem:[%s486 + $0xb8] sm:$0xff]
        %v1843 = vld [vmem:[%s486 + $0xc0] sm:$0xff]
        %v1844 = vld [vmem:[%s486 + $0xc8] sm:$0xff]
        %v1845 = vld [vmem:[%s486 + $0xd0] sm:$0xff]
        %v1846 = vld [vmem:[%s486 + $0xd8] sm:$0xff]
        %v1847 = vld [vmem:[%s486 + $0xe0] sm:$0xff]
        %v1848 = vld [vmem:[%s486 + $0xe8] sm:$0xff]
        %v1849 = vld [vmem:[%s486 + $0xf0] sm:$0xff]
        %v1850 = vld [vmem:[%s486 + $0xf8] sm:$0xff]
        %v1851 = vld [vmem:[%s486 + $0x100] sm:$0xff]
        %v1852 = vld [vmem:[%s486 + $0x108] sm:$0xff]
        %v1853 = vld [vmem:[%s486 + $0x110] sm:$0xff]
        %v1854 = vld [vmem:[%s486 + $0x118] sm:$0xff]
        %v1855 = vld [vmem:[%s486 + $0x120] sm:$0xff]
        %v1856 = vld [vmem:[%s486 + $0x128] sm:$0xff]
        %v1857 = vld [vmem:[%s486 + $0x130] sm:$0xff]
        %v1858 = vld [vmem:[%s486 + $0x138] sm:$0xff]
        %v1859 = vld [vmem:[%s486 + $0x140] sm:$0xff]
        %v1860 = vld [vmem:[%s486 + $0x148] sm:$0xff]
        %v1861 = vld [vmem:[%s486 + $0x150] sm:$0xff]
        %v1862 = vld [vmem:[%s486 + $0x158] sm:$0xff]
        %v1863 = vld [vmem:[%s486 + $0x160] sm:$0xff]
        %v1864 = vld [vmem:[%s486 + $0x168] sm:$0xff]
        %v1865 = vld [vmem:[%s486 + $0x170] sm:$0xff]
        %v1866 = vld [vmem:[%s486 + $0x178] sm:$0xff]
        %v1867 = vld [vmem:[%s486 + $0x180] sm:$0xff]
        %v1868 = vld [vmem:[%s486 + $0x188] sm:$0xff]
        %v1869 = vld [vmem:[%s486 + $0x190] sm:$0xff]
        %v1870 = vld [vmem:[%s486 + $0x198] sm:$0xff]
        %v1871 = vld [vmem:[%s486 + $0x1a0] sm:$0xff]
        %v1872 = vld [vmem:[%s486 + $0x1a8] sm:$0xff]
        %v1873 = vld [vmem:[%s486 + $0x1b0] sm:$0xff]
        %v1874 = vld [vmem:[%s486 + $0x1b8] sm:$0xff]
        %v1875 = vld [vmem:[%s486 + $0x1c0] sm:$0xff]
        %v1876 = vld [vmem:[%s486 + $0x1c8] sm:$0xff]
        %v1877 = vld [vmem:[%s486 + $0x1d0] sm:$0xff]
        %v1878 = vld [vmem:[%s486 + $0x1d8] sm:$0xff]
        %v1879 = vld [vmem:[%s486 + $0x1e0] sm:$0xff]
        %v1880 = vld [vmem:[%s486 + $0x1e8] sm:$0xff]
        %v1881 = vld [vmem:[%s486 + $0x1f0] sm:$0xff]
        %v1882 = vld [vmem:[%s486 + $0x1f8] sm:$0xff]
        %v1883 = vld [vmem:[%s486 + $0x200] sm:$0xff]
        %v1884 = vld [vmem:[%s486 + $0x208] sm:$0xff]
        %v1885 = vld [vmem:[%s486 + $0x210] sm:$0xff]
        %v1886 = vld [vmem:[%s486 + $0x218] sm:$0xff]
        %v1887 = vld [vmem:[%s486 + $0x220] sm:$0xff]
        %v1888 = vld [vmem:[%s486 + $0x228] sm:$0xff]
        %v1889 = vld [vmem:[%s486 + $0x230] sm:$0xff]
        %v1890 = vld [vmem:[%s486 + $0x238] sm:$0xff]
        %v1891 = vld [vmem:[%s486 + $0x240] sm:$0xff]
        %v1892 = vld [vmem:[%s486 + $0x248] sm:$0xff]
        %v1893 = vld [vmem:[%s486 + $0x250] sm:$0xff]
        %v1894 = vld [vmem:[%s486 + $0x258] sm:$0xff]
        %v1895 = vld [vmem:[%s486 + $0x260] sm:$0xff]
        %v1896 = vld [vmem:[%s486 + $0x268] sm:$0xff]
        %v1897 = vld [vmem:[%s486 + $0x270] sm:$0xff]
        %v1898 = vld [vmem:[%s486 + $0x278] sm:$0xff]
        %v1899 = vld [vmem:[%s486 + $0x280] sm:$0xff]
        %v1900 = vld [vmem:[%s486 + $0x288] sm:$0xff]
        %v1901 = vld [vmem:[%s486 + $0x290] sm:$0xff]
        %v1902 = vld [vmem:[%s486 + $0x298] sm:$0xff]
        %v1903 = vld [vmem:[%s486 + $0x2a0] sm:$0xff]
        %v1904 = vld [vmem:[%s486 + $0x2a8] sm:$0xff]
        %v1905 = vld [vmem:[%s486 + $0x2b0] sm:$0xff]
        %v1906 = vld [vmem:[%s486 + $0x2b8] sm:$0xff]
        %v1907 = vld [vmem:[%s486 + $0x2c0] sm:$0xff]
        %v1908 = vld [vmem:[%s486 + $0x2c8] sm:$0xff]
        %v1909 = vld [vmem:[%s486 + $0x2d0] sm:$0xff]
        %v1910 = vld [vmem:[%s486 + $0x2d8] sm:$0xff]
        %v1911 = vld [vmem:[%s486 + $0x2e0] sm:$0xff]
        %v1912 = vld [vmem:[%s486 + $0x2e8] sm:$0xff]
        %v1913 = vld [vmem:[%s486 + $0x2f0] sm:$0xff]
        %v1914 = vld [vmem:[%s486 + $0x2f8] sm:$0xff]
        %v1915 = vld [vmem:[%s486 + $0x300] sm:$0xff]
        %v1916 = vld [vmem:[%s486 + $0x308] sm:$0xff]
        %v1917 = vld [vmem:[%s486 + $0x310] sm:$0xff]
        %v1918 = vld [vmem:[%s486 + $0x318] sm:$0xff]
        %v1919 = vld [vmem:[%s486 + $0x320] sm:$0xff]
        %v1920 = vld [vmem:[%s486 + $0x328] sm:$0xff]
        %v1921 = vld [vmem:[%s486 + $0x330] sm:$0xff]
        %v1922 = vld [vmem:[%s486 + $0x338] sm:$0xff]
        %v1923 = vld [vmem:[%s486 + $0x340] sm:$0xff]
        %v1924 = vld [vmem:[%s486 + $0x348] sm:$0xff]
        %v1925 = vld [vmem:[%s486 + $0x350] sm:$0xff]
        %v1926 = vld [vmem:[%s486 + $0x358] sm:$0xff]
        %v1927 = vld [vmem:[%s486 + $0x360] sm:$0xff]
        %v1928 = vld [vmem:[%s486 + $0x368] sm:$0xff]
        %v1929 = vld [vmem:[%s486 + $0x370] sm:$0xff]
        %v1930 = vld [vmem:[%s486 + $0x378] sm:$0xff]
        %v1931 = vld [vmem:[%s486 + $0x380] sm:$0xff]
        %v1932 = vld [vmem:[%s486 + $0x388] sm:$0xff]
        %v1933 = vld [vmem:[%s486 + $0x390] sm:$0xff]
        %v1934 = vld [vmem:[%s486 + $0x398] sm:$0xff]
        %v1935 = vld [vmem:[%s486 + $0x3a0] sm:$0xff]
        %v1936 = vld [vmem:[%s486 + $0x3a8] sm:$0xff]
        %v1937 = vld [vmem:[%s486 + $0x3b0] sm:$0xff]
        %v1938 = vld [vmem:[%s486 + $0x3b8] sm:$0xff]
        %v1939 = vld [vmem:[%s486 + $0x3c0] sm:$0xff]
        %v1940 = vld [vmem:[%s486 + $0x3c8] sm:$0xff]
        %v1941 = vld [vmem:[%s486 + $0x3d0] sm:$0xff]
        %v1942 = vld [vmem:[%s486 + $0x3d8] sm:$0xff]
        %v1943 = vld [vmem:[%s486 + $0x3e0] sm:$0xff]
        %v1944 = vld [vmem:[%s486 + $0x3e8] sm:$0xff]
        %v1945 = vld [vmem:[%s486 + $0x3f0] sm:$0xff]
        %v1946 = vld [vmem:[%s486 + $0x3f8] sm:$0xff]
        %v1947 = vld [vmem:[%s486 + $0x400] sm:$0xff]
        %v1948 = vld [vmem:[%s486 + $0x408] sm:$0xff]
        %v1949 = vld [vmem:[%s486 + $0x410] sm:$0xff]
        %v1950 = vld [vmem:[%s486 + $0x418] sm:$0xff]
        %v1951 = vld [vmem:[%s486 + $0x420] sm:$0xff]
        %v1952 = vld [vmem:[%s486 + $0x428] sm:$0xff]
        %v1953 = vld [vmem:[%s486 + $0x430] sm:$0xff]
        %v1954 = vld [vmem:[%s486 + $0x438] sm:$0xff]
        %v1955 = vld [vmem:[%s486 + $0x440] sm:$0xff]
        %v1956 = vld [vmem:[%s486 + $0x448] sm:$0xff]
        %v1957 = vld [vmem:[%s486 + $0x450] sm:$0xff]
        %v1958 = vld [vmem:[%s486 + $0x458] sm:$0xff]
        %v1959 = vld [vmem:[%s486 + $0x460] sm:$0xff]
        %v1960 = vld [vmem:[%s486 + $0x468] sm:$0xff]
        %v1961 = vld [vmem:[%s486 + $0x470] sm:$0xff]
        %v1962 = vld [vmem:[%s486 + $0x478] sm:$0xff]
        %v1963 = vld [vmem:[%s486 + $0x480] sm:$0xff]
        %v1964 = vld [vmem:[%s486 + $0x488] sm:$0xff]
        %v1965 = vld [vmem:[%s486 + $0x490] sm:$0xff]
        %v1966 = vld [vmem:[%s486 + $0x498] sm:$0xff]
        %v1967 = vld [vmem:[%s486 + $0x4a0] sm:$0xff]
        %v1968 = vld [vmem:[%s486 + $0x4a8] sm:$0xff]
        %v1969 = vld [vmem:[%s486 + $0x4b0] sm:$0xff]
        %v1970 = vld [vmem:[%s486 + $0x4b8] sm:$0xff]
        %v1971 = vld [vmem:[%s486 + $0x4c0] sm:$0xff]
        %v1972 = vld [vmem:[%s486 + $0x4c8] sm:$0xff]
        %v1973 = vld [vmem:[%s486 + $0x4d0] sm:$0xff]
        %v1974 = vld [vmem:[%s486 + $0x4d8] sm:$0xff]
        %v1975 = vld [vmem:[%s486 + $0x4e0] sm:$0xff]
        %v1976 = vld [vmem:[%s486 + $0x4e8] sm:$0xff]
        %v1977 = vld [vmem:[%s486 + $0x4f0] sm:$0xff]
        %v1978 = vld [vmem:[%s486 + $0x4f8] sm:$0xff]
        %v1979 = vld [vmem:[%s486 + $0x500] sm:$0xff]
        %v1980 = vld [vmem:[%s486 + $0x508] sm:$0xff]
        %v1981 = vld [vmem:[%s486 + $0x510] sm:$0xff]
        %v1982 = vld [vmem:[%s486 + $0x518] sm:$0xff]
        %v1983 = vld [vmem:[%s486 + $0x520] sm:$0xff]
        %v1984 = vld [vmem:[%s486 + $0x528] sm:$0xff]
        %v1985 = vld [vmem:[%s486 + $0x530] sm:$0xff]
        %v1986 = vld [vmem:[%s486 + $0x538] sm:$0xff]
        %v1987 = vld [vmem:[%s486 + $0x540] sm:$0xff]
        %v1988 = vld [vmem:[%s486 + $0x548] sm:$0xff]
        %v1989 = vld [vmem:[%s486 + $0x550] sm:$0xff]
        %v1990 = vld [vmem:[%s486 + $0x558] sm:$0xff]
        %v1991 = vld [vmem:[%s486 + $0x560] sm:$0xff]
        %v1992 = vld [vmem:[%s486 + $0x568] sm:$0xff]
        %v1993 = vld [vmem:[%s486 + $0x570] sm:$0xff]
        %v1994 = vld [vmem:[%s486 + $0x578] sm:$0xff]
        %v1995 = vld [vmem:[%s486 + $0x580] sm:$0xff]
        %v1996 = vld [vmem:[%s486 + $0x588] sm:$0xff]
        %v1997 = vld [vmem:[%s486 + $0x590] sm:$0xff]
        %v1998 = vld [vmem:[%s486 + $0x598] sm:$0xff]
        %v1999 = vld [vmem:[%s486 + $0x5a0] sm:$0xff]
        %v2000 = vld [vmem:[%s486 + $0x5a8] sm:$0xff]
        %v2001 = vld [vmem:[%s486 + $0x5b0] sm:$0xff]
        %v2002 = vld [vmem:[%s486 + $0x5b8] sm:$0xff]
        %v2003 = vld [vmem:[%s486 + $0x5c0] sm:$0xff]
        %v2004 = vld [vmem:[%s486 + $0x5c8] sm:$0xff]
        %v2005 = vld [vmem:[%s486 + $0x5d0] sm:$0xff]
        %v2006 = vld [vmem:[%s486 + $0x5d8] sm:$0xff]
        %v2007 = vld [vmem:[%s486 + $0x5e0] sm:$0xff]
        %v2008 = vld [vmem:[%s486 + $0x5e8] sm:$0xff]
        %v2009 = vld [vmem:[%s486 + $0x5f0] sm:$0xff]
        %v2010 = vld [vmem:[%s486 + $0x5f8] sm:$0xff]
        %v2011 = vld [vmem:[%s486 + $0x600] sm:$0xff]
        %v2012 = vld [vmem:[%s486 + $0x608] sm:$0xff]
        %v2013 = vld [vmem:[%s486 + $0x610] sm:$0xff]
        %v2014 = vld [vmem:[%s486 + $0x618] sm:$0xff]
        %v2015 = vld [vmem:[%s486 + $0x620] sm:$0xff]
        %v2016 = vld [vmem:[%s486 + $0x628] sm:$0xff]
        %v2017 = vld [vmem:[%s486 + $0x630] sm:$0xff]
        %v2018 = vld [vmem:[%s486 + $0x638] sm:$0xff]
        %v2019 = vld [vmem:[%s486 + $0x640] sm:$0xff]
        %v2020 = vld [vmem:[%s486 + $0x648] sm:$0xff]
        %v2021 = vld [vmem:[%s486 + $0x650] sm:$0xff]
        %v2022 = vld [vmem:[%s486 + $0x658] sm:$0xff]
        %v2023 = vld [vmem:[%s486 + $0x660] sm:$0xff]
        %v2024 = vld [vmem:[%s486 + $0x668] sm:$0xff]
        %v2025 = vld [vmem:[%s486 + $0x670] sm:$0xff]
        %v2026 = vld [vmem:[%s486 + $0x678] sm:$0xff]
        %v2027 = vld [vmem:[%s486 + $0x680] sm:$0xff]
        %v2028 = vld [vmem:[%s486 + $0x688] sm:$0xff]
        %v2029 = vld [vmem:[%s486 + $0x690] sm:$0xff]
        %v2030 = vld [vmem:[%s486 + $0x698] sm:$0xff]
        %v2031 = vld [vmem:[%s486 + $0x6a0] sm:$0xff]
        %v2032 = vld [vmem:[%s486 + $0x6a8] sm:$0xff]
        %v2033 = vld [vmem:[%s486 + $0x6b0] sm:$0xff]
        %v2034 = vld [vmem:[%s486 + $0x6b8] sm:$0xff]
        %v2035 = vld [vmem:[%s486 + $0x6c0] sm:$0xff]
        %v2036 = vld [vmem:[%s486 + $0x6c8] sm:$0xff]
        %v2037 = vld [vmem:[%s486 + $0x6d0] sm:$0xff]
        %v2038 = vld [vmem:[%s486 + $0x6d8] sm:$0xff]
        %v2039 = vld [vmem:[%s486 + $0x6e0] sm:$0xff]
        %v2040 = vld [vmem:[%s486 + $0x6e8] sm:$0xff]
        %v2041 = vld [vmem:[%s486 + $0x6f0] sm:$0xff]
        %v2042 = vld [vmem:[%s486 + $0x6f8] sm:$0xff]
        %v2043 = vld [vmem:[%s486 + $0x700] sm:$0xff]
        %v2044 = vld [vmem:[%s486 + $0x708] sm:$0xff]
        %v2045 = vld [vmem:[%s486 + $0x710] sm:$0xff]
        %v2046 = vld [vmem:[%s486 + $0x718] sm:$0xff]
        %v2047 = vld [vmem:[%s486 + $0x720] sm:$0xff]
        %v2048 = vld [vmem:[%s486 + $0x728] sm:$0xff]
        %v2049 = vld [vmem:[%s486 + $0x730] sm:$0xff]
        %v2050 = vld [vmem:[%s486 + $0x738] sm:$0xff]
        %v2051 = vld [vmem:[%s486 + $0x740] sm:$0xff]
        %v2052 = vld [vmem:[%s486 + $0x748] sm:$0xff]
        %v2053 = vld [vmem:[%s486 + $0x750] sm:$0xff]
        %v2054 = vld [vmem:[%s486 + $0x758] sm:$0xff]
        %v2055 = vld [vmem:[%s486 + $0x760] sm:$0xff]
        %v2056 = vld [vmem:[%s486 + $0x768] sm:$0xff]
        %v2057 = vld [vmem:[%s486 + $0x770] sm:$0xff]
        %v2058 = vld [vmem:[%s486 + $0x778] sm:$0xff]
        %v2059 = vld [vmem:[%s486 + $0x780] sm:$0xff]
        %v2060 = vld [vmem:[%s486 + $0x788] sm:$0xff]
        %v2061 = vld [vmem:[%s486 + $0x790] sm:$0xff]
        %v2062 = vld [vmem:[%s486 + $0x798] sm:$0xff]
        %v2063 = vld [vmem:[%s486 + $0x7a0] sm:$0xff]
        %v2064 = vld [vmem:[%s486 + $0x7a8] sm:$0xff]
        %v2065 = vld [vmem:[%s486 + $0x7b0] sm:$0xff]
        %v2066 = vld [vmem:[%s486 + $0x7b8] sm:$0xff]
        %v2067 = vld [vmem:[%s486 + $0x7c0] sm:$0xff]
        %v2068 = vld [vmem:[%s486 + $0x7c8] sm:$0xff]
        %v2069 = vld [vmem:[%s486 + $0x7d0] sm:$0xff]
        %v2070 = vld [vmem:[%s486 + $0x7d8] sm:$0xff]
        %v2071 = vld [vmem:[%s486 + $0x7e0] sm:$0xff]
        %v2072 = vld [vmem:[%s486 + $0x7e8] sm:$0xff]
        %v2073 = vld [vmem:[%s486 + $0x7f0] sm:$0xff]
        %v2074 = vld [vmem:[%s486 + $0x7f8] sm:$0xff]
        %v2075 = vld [vmem:[%s513] sm:$0xff]
        %v2077 = vlaneseq
        %v2078 = vshrl.u32 %v2077, 7
        %v2079 = vsub.s32 0, %v2078
        %v2080 = vrot.slane %v2075, %v2079
        %v2081 = vlaneseq
        %v2082 = vshrl.u32 %v2081, 7
        %v2083 = vsub.s32 1, %v2082
        %v2084 = vrot.slane %v2075, %v2083
        %v2085 = vlaneseq
        %v2086 = vshrl.u32 %v2085, 7
        %v2087 = vsub.s32 2, %v2086
        %v2088 = vrot.slane %v2075, %v2087
        %v2089 = vlaneseq
        %v2090 = vshrl.u32 %v2089, 7
        %v2091 = vsub.s32 3, %v2090
        %v2092 = vrot.slane %v2075, %v2091
        %v2093 = vlaneseq
        %v2094 = vshrl.u32 %v2093, 7
        %v2095 = vsub.s32 4, %v2094
        %v2096 = vrot.slane %v2075, %v2095
        %v2097 = vlaneseq
        %v2098 = vshrl.u32 %v2097, 7
        %v2099 = vsub.s32 5, %v2098
        %v2100 = vrot.slane %v2075, %v2099
        %v2101 = vlaneseq
        %v2102 = vshrl.u32 %v2101, 7
        %v2103 = vsub.s32 6, %v2102
        %v2104 = vrot.slane %v2075, %v2103
        %v2105 = vlaneseq
        %v2106 = vshrl.u32 %v2105, 7
        %v2107 = vsub.s32 7, %v2106
        %v2108 = vrot.slane %v2075, %v2107
        %v2373 = vunpack.c.l.b16 %v1819
        %v2374 = vunpack.c.h.b16 %v1819
        %v2375 = vunpack.c.l.b16 %v1820
        %v2376 = vunpack.c.h.b16 %v1820
        %v2377 = vunpack.c.l.b16 %v1821
        %v2378 = vunpack.c.h.b16 %v1821
        %v2379 = vunpack.c.l.b16 %v1822
        %v2380 = vunpack.c.h.b16 %v1822
        %v2381 = vunpack.c.l.b16 %v1823
        %v2382 = vunpack.c.h.b16 %v1823
        %v2383 = vunpack.c.l.b16 %v1824
        %v2384 = vunpack.c.h.b16 %v1824
        %v2385 = vunpack.c.l.b16 %v1825
        %v2386 = vunpack.c.h.b16 %v1825
        %v2387 = vunpack.c.l.b16 %v1826
        %v2388 = vunpack.c.h.b16 %v1826
        %v2389 = vunpack.c.l.b16 %v1827
        %v2390 = vunpack.c.h.b16 %v1827
        %v2391 = vunpack.c.l.b16 %v1828
        %v2392 = vunpack.c.h.b16 %v1828
        %v2393 = vunpack.c.l.b16 %v1829
        %v2394 = vunpack.c.h.b16 %v1829
        %v2395 = vunpack.c.l.b16 %v1830
        %v2396 = vunpack.c.h.b16 %v1830
        %v2397 = vunpack.c.l.b16 %v1831
        %v2398 = vunpack.c.h.b16 %v1831
        %v2399 = vunpack.c.l.b16 %v1832
        %v2400 = vunpack.c.h.b16 %v1832
        %v2401 = vunpack.c.l.b16 %v1833
        %v2402 = vunpack.c.h.b16 %v1833
        %v2403 = vunpack.c.l.b16 %v1834
        %v2404 = vunpack.c.h.b16 %v1834
        %v2405 = vunpack.c.l.b16 %v1835
        %v2406 = vunpack.c.h.b16 %v1835
        %v2407 = vunpack.c.l.b16 %v1836
        %v2408 = vunpack.c.h.b16 %v1836
        %v2409 = vunpack.c.l.b16 %v1837
        %v2410 = vunpack.c.h.b16 %v1837
        %v2411 = vunpack.c.l.b16 %v1838
        %v2412 = vunpack.c.h.b16 %v1838
        %v2413 = vunpack.c.l.b16 %v1839
        %v2414 = vunpack.c.h.b16 %v1839
        %v2415 = vunpack.c.l.b16 %v1840
        %v2416 = vunpack.c.h.b16 %v1840
        %v2417 = vunpack.c.l.b16 %v1841
        %v2418 = vunpack.c.h.b16 %v1841
        %v2419 = vunpack.c.l.b16 %v1842
        %v2420 = vunpack.c.h.b16 %v1842
        %v2421 = vunpack.c.l.b16 %v1843
        %v2422 = vunpack.c.h.b16 %v1843
        %v2423 = vunpack.c.l.b16 %v1844
        %v2424 = vunpack.c.h.b16 %v1844
        %v2425 = vunpack.c.l.b16 %v1845
        %v2426 = vunpack.c.h.b16 %v1845
        %v2427 = vunpack.c.l.b16 %v1846
        %v2428 = vunpack.c.h.b16 %v1846
        %v2429 = vunpack.c.l.b16 %v1847
        %v2430 = vunpack.c.h.b16 %v1847
        %v2431 = vunpack.c.l.b16 %v1848
        %v2432 = vunpack.c.h.b16 %v1848
        %v2433 = vunpack.c.l.b16 %v1849
        %v2434 = vunpack.c.h.b16 %v1849
        %v2435 = vunpack.c.l.b16 %v1850
        %v2436 = vunpack.c.h.b16 %v1850
        %v2437 = vunpack.c.l.b16 %v1851
        %v2438 = vunpack.c.h.b16 %v1851
        %v2439 = vunpack.c.l.b16 %v1852
        %v2440 = vunpack.c.h.b16 %v1852
        %v2441 = vunpack.c.l.b16 %v1853
        %v2442 = vunpack.c.h.b16 %v1853
        %v2443 = vunpack.c.l.b16 %v1854
        %v2444 = vunpack.c.h.b16 %v1854
        %v2445 = vunpack.c.l.b16 %v1855
        %v2446 = vunpack.c.h.b16 %v1855
        %v2447 = vunpack.c.l.b16 %v1856
        %v2448 = vunpack.c.h.b16 %v1856
        %v2449 = vunpack.c.l.b16 %v1857
        %v2450 = vunpack.c.h.b16 %v1857
        %v2451 = vunpack.c.l.b16 %v1858
        %v2452 = vunpack.c.h.b16 %v1858
        %v2453 = vunpack.c.l.b16 %v1859
        %v2454 = vunpack.c.h.b16 %v1859
        %v2455 = vunpack.c.l.b16 %v1860
        %v2456 = vunpack.c.h.b16 %v1860
        %v2457 = vunpack.c.l.b16 %v1861
        %v2458 = vunpack.c.h.b16 %v1861
        %v2459 = vunpack.c.l.b16 %v1862
        %v2460 = vunpack.c.h.b16 %v1862
        %v2461 = vunpack.c.l.b16 %v1863
        %v2462 = vunpack.c.h.b16 %v1863
        %v2463 = vunpack.c.l.b16 %v1864
        %v2464 = vunpack.c.h.b16 %v1864
        %v2465 = vunpack.c.l.b16 %v1865
        %v2466 = vunpack.c.h.b16 %v1865
        %v2467 = vunpack.c.l.b16 %v1866
        %v2468 = vunpack.c.h.b16 %v1866
        %v2469 = vunpack.c.l.b16 %v1867
        %v2470 = vunpack.c.h.b16 %v1867
        %v2471 = vunpack.c.l.b16 %v1868
        %v2472 = vunpack.c.h.b16 %v1868
        %v2473 = vunpack.c.l.b16 %v1869
        %v2474 = vunpack.c.h.b16 %v1869
        %v2475 = vunpack.c.l.b16 %v1870
        %v2476 = vunpack.c.h.b16 %v1870
        %v2477 = vunpack.c.l.b16 %v1871
        %v2478 = vunpack.c.h.b16 %v1871
        %v2479 = vunpack.c.l.b16 %v1872
        %v2480 = vunpack.c.h.b16 %v1872
        %v2481 = vunpack.c.l.b16 %v1873
        %v2482 = vunpack.c.h.b16 %v1873
        %v2483 = vunpack.c.l.b16 %v1874
        %v2484 = vunpack.c.h.b16 %v1874
        %v2485 = vunpack.c.l.b16 %v1875
        %v2486 = vunpack.c.h.b16 %v1875
        %v2487 = vunpack.c.l.b16 %v1876
        %v2488 = vunpack.c.h.b16 %v1876
        %v2489 = vunpack.c.l.b16 %v1877
        %v2490 = vunpack.c.h.b16 %v1877
        %v2491 = vunpack.c.l.b16 %v1878
        %v2492 = vunpack.c.h.b16 %v1878
        %v2493 = vunpack.c.l.b16 %v1879
        %v2494 = vunpack.c.h.b16 %v1879
        %v2495 = vunpack.c.l.b16 %v1880
        %v2496 = vunpack.c.h.b16 %v1880
        %v2497 = vunpack.c.l.b16 %v1881
        %v2498 = vunpack.c.h.b16 %v1881
        %v2499 = vunpack.c.l.b16 %v1882
        %v2500 = vunpack.c.h.b16 %v1882
        %v2501 = vunpack.c.l.b16 %v1883
        %v2502 = vunpack.c.h.b16 %v1883
        %v2503 = vunpack.c.l.b16 %v1884
        %v2504 = vunpack.c.h.b16 %v1884
        %v2505 = vunpack.c.l.b16 %v1885
        %v2506 = vunpack.c.h.b16 %v1885
        %v2507 = vunpack.c.l.b16 %v1886
        %v2508 = vunpack.c.h.b16 %v1886
        %v2509 = vunpack.c.l.b16 %v1887
        %v2510 = vunpack.c.h.b16 %v1887
        %v2511 = vunpack.c.l.b16 %v1888
        %v2512 = vunpack.c.h.b16 %v1888
        %v2513 = vunpack.c.l.b16 %v1889
        %v2514 = vunpack.c.h.b16 %v1889
        %v2515 = vunpack.c.l.b16 %v1890
        %v2516 = vunpack.c.h.b16 %v1890
        %v2517 = vunpack.c.l.b16 %v1891
        %v2518 = vunpack.c.h.b16 %v1891
        %v2519 = vunpack.c.l.b16 %v1892
        %v2520 = vunpack.c.h.b16 %v1892
        %v2521 = vunpack.c.l.b16 %v1893
        %v2522 = vunpack.c.h.b16 %v1893
        %v2523 = vunpack.c.l.b16 %v1894
        %v2524 = vunpack.c.h.b16 %v1894
        %v2525 = vunpack.c.l.b16 %v1895
        %v2526 = vunpack.c.h.b16 %v1895
        %v2527 = vunpack.c.l.b16 %v1896
        %v2528 = vunpack.c.h.b16 %v1896
        %v2529 = vunpack.c.l.b16 %v1897
        %v2530 = vunpack.c.h.b16 %v1897
        %v2531 = vunpack.c.l.b16 %v1898
        %v2532 = vunpack.c.h.b16 %v1898
        %v2533 = vunpack.c.l.b16 %v1899
        %v2534 = vunpack.c.h.b16 %v1899
        %v2535 = vunpack.c.l.b16 %v1900
        %v2536 = vunpack.c.h.b16 %v1900
        %v2537 = vunpack.c.l.b16 %v1901
        %v2538 = vunpack.c.h.b16 %v1901
        %v2539 = vunpack.c.l.b16 %v1902
        %v2540 = vunpack.c.h.b16 %v1902
        %v2541 = vunpack.c.l.b16 %v1903
        %v2542 = vunpack.c.h.b16 %v1903
        %v2543 = vunpack.c.l.b16 %v1904
        %v2544 = vunpack.c.h.b16 %v1904
        %v2545 = vunpack.c.l.b16 %v1905
        %v2546 = vunpack.c.h.b16 %v1905
        %v2547 = vunpack.c.l.b16 %v1906
        %v2548 = vunpack.c.h.b16 %v1906
        %v2549 = vunpack.c.l.b16 %v1907
        %v2550 = vunpack.c.h.b16 %v1907
        %v2551 = vunpack.c.l.b16 %v1908
        %v2552 = vunpack.c.h.b16 %v1908
        %v2553 = vunpack.c.l.b16 %v1909
        %v2554 = vunpack.c.h.b16 %v1909
        %v2555 = vunpack.c.l.b16 %v1910
        %v2556 = vunpack.c.h.b16 %v1910
        %v2557 = vunpack.c.l.b16 %v1911
        %v2558 = vunpack.c.h.b16 %v1911
        %v2559 = vunpack.c.l.b16 %v1912
        %v2560 = vunpack.c.h.b16 %v1912
        %v2561 = vunpack.c.l.b16 %v1913
        %v2562 = vunpack.c.h.b16 %v1913
        %v2563 = vunpack.c.l.b16 %v1914
        %v2564 = vunpack.c.h.b16 %v1914
        %v2565 = vunpack.c.l.b16 %v1915
        %v2566 = vunpack.c.h.b16 %v1915
        %v2567 = vunpack.c.l.b16 %v1916
        %v2568 = vunpack.c.h.b16 %v1916
        %v2569 = vunpack.c.l.b16 %v1917
        %v2570 = vunpack.c.h.b16 %v1917
        %v2571 = vunpack.c.l.b16 %v1918
        %v2572 = vunpack.c.h.b16 %v1918
        %v2573 = vunpack.c.l.b16 %v1919
        %v2574 = vunpack.c.h.b16 %v1919
        %v2575 = vunpack.c.l.b16 %v1920
        %v2576 = vunpack.c.h.b16 %v1920
        %v2577 = vunpack.c.l.b16 %v1921
        %v2578 = vunpack.c.h.b16 %v1921
        %v2579 = vunpack.c.l.b16 %v1922
        %v2580 = vunpack.c.h.b16 %v1922
        %v2581 = vunpack.c.l.b16 %v1923
        %v2582 = vunpack.c.h.b16 %v1923
        %v2583 = vunpack.c.l.b16 %v1924
        %v2584 = vunpack.c.h.b16 %v1924
        %v2585 = vunpack.c.l.b16 %v1925
        %v2586 = vunpack.c.h.b16 %v1925
        %v2587 = vunpack.c.l.b16 %v1926
        %v2588 = vunpack.c.h.b16 %v1926
        %v2589 = vunpack.c.l.b16 %v1927
        %v2590 = vunpack.c.h.b16 %v1927
        %v2591 = vunpack.c.l.b16 %v1928
        %v2592 = vunpack.c.h.b16 %v1928
        %v2593 = vunpack.c.l.b16 %v1929
        %v2594 = vunpack.c.h.b16 %v1929
        %v2595 = vunpack.c.l.b16 %v1930
        %v2596 = vunpack.c.h.b16 %v1930
        %v2597 = vunpack.c.l.b16 %v1931
        %v2598 = vunpack.c.h.b16 %v1931
        %v2599 = vunpack.c.l.b16 %v1932
        %v2600 = vunpack.c.h.b16 %v1932
        %v2601 = vunpack.c.l.b16 %v1933
        %v2602 = vunpack.c.h.b16 %v1933
        %v2603 = vunpack.c.l.b16 %v1934
        %v2604 = vunpack.c.h.b16 %v1934
        %v2605 = vunpack.c.l.b16 %v1935
        %v2606 = vunpack.c.h.b16 %v1935
        %v2607 = vunpack.c.l.b16 %v1936
        %v2608 = vunpack.c.h.b16 %v1936
        %v2609 = vunpack.c.l.b16 %v1937
        %v2610 = vunpack.c.h.b16 %v1937
        %v2611 = vunpack.c.l.b16 %v1938
        %v2612 = vunpack.c.h.b16 %v1938
        %v2613 = vunpack.c.l.b16 %v1939
        %v2614 = vunpack.c.h.b16 %v1939
        %v2615 = vunpack.c.l.b16 %v1940
        %v2616 = vunpack.c.h.b16 %v1940
        %v2617 = vunpack.c.l.b16 %v1941
        %v2618 = vunpack.c.h.b16 %v1941
        %v2619 = vunpack.c.l.b16 %v1942
        %v2620 = vunpack.c.h.b16 %v1942
        %v2621 = vunpack.c.l.b16 %v1943
        %v2622 = vunpack.c.h.b16 %v1943
        %v2623 = vunpack.c.l.b16 %v1944
        %v2624 = vunpack.c.h.b16 %v1944
        %v2625 = vunpack.c.l.b16 %v1945
        %v2626 = vunpack.c.h.b16 %v1945
        %v2627 = vunpack.c.l.b16 %v1946
        %v2628 = vunpack.c.h.b16 %v1946
        %v2629 = vunpack.c.l.b16 %v1947
        %v2630 = vunpack.c.h.b16 %v1947
        %v2631 = vunpack.c.l.b16 %v1948
        %v2632 = vunpack.c.h.b16 %v1948
        %v2633 = vunpack.c.l.b16 %v1949
        %v2634 = vunpack.c.h.b16 %v1949
        %v2635 = vunpack.c.l.b16 %v1950
        %v2636 = vunpack.c.h.b16 %v1950
        %v2637 = vunpack.c.l.b16 %v1951
        %v2638 = vunpack.c.h.b16 %v1951
        %v2639 = vunpack.c.l.b16 %v1952
        %v2640 = vunpack.c.h.b16 %v1952
        %v2641 = vunpack.c.l.b16 %v1953
        %v2642 = vunpack.c.h.b16 %v1953
        %v2643 = vunpack.c.l.b16 %v1954
        %v2644 = vunpack.c.h.b16 %v1954
        %v2645 = vunpack.c.l.b16 %v1955
        %v2646 = vunpack.c.h.b16 %v1955
        %v2647 = vunpack.c.l.b16 %v1956
        %v2648 = vunpack.c.h.b16 %v1956
        %v2649 = vunpack.c.l.b16 %v1957
        %v2650 = vunpack.c.h.b16 %v1957
        %v2651 = vunpack.c.l.b16 %v1958
        %v2652 = vunpack.c.h.b16 %v1958
        %v2653 = vunpack.c.l.b16 %v1959
        %v2654 = vunpack.c.h.b16 %v1959
        %v2655 = vunpack.c.l.b16 %v1960
        %v2656 = vunpack.c.h.b16 %v1960
        %v2657 = vunpack.c.l.b16 %v1961
        %v2658 = vunpack.c.h.b16 %v1961
        %v2659 = vunpack.c.l.b16 %v1962
        %v2660 = vunpack.c.h.b16 %v1962
        %v2661 = vunpack.c.l.b16 %v1963
        %v2662 = vunpack.c.h.b16 %v1963
        %v2663 = vunpack.c.l.b16 %v1964
        %v2664 = vunpack.c.h.b16 %v1964
        %v2665 = vunpack.c.l.b16 %v1965
        %v2666 = vunpack.c.h.b16 %v1965
        %v2667 = vunpack.c.l.b16 %v1966
        %v2668 = vunpack.c.h.b16 %v1966
        %v2669 = vunpack.c.l.b16 %v1967
        %v2670 = vunpack.c.h.b16 %v1967
        %v2671 = vunpack.c.l.b16 %v1968
        %v2672 = vunpack.c.h.b16 %v1968
        %v2673 = vunpack.c.l.b16 %v1969
        %v2674 = vunpack.c.h.b16 %v1969
        %v2675 = vunpack.c.l.b16 %v1970
        %v2676 = vunpack.c.h.b16 %v1970
        %v2677 = vunpack.c.l.b16 %v1971
        %v2678 = vunpack.c.h.b16 %v1971
        %v2679 = vunpack.c.l.b16 %v1972
        %v2680 = vunpack.c.h.b16 %v1972
        %v2681 = vunpack.c.l.b16 %v1973
        %v2682 = vunpack.c.h.b16 %v1973
        %v2683 = vunpack.c.l.b16 %v1974
        %v2684 = vunpack.c.h.b16 %v1974
        %v2685 = vunpack.c.l.b16 %v1975
        %v2686 = vunpack.c.h.b16 %v1975
        %v2687 = vunpack.c.l.b16 %v1976
        %v2688 = vunpack.c.h.b16 %v1976
        %v2689 = vunpack.c.l.b16 %v1977
        %v2690 = vunpack.c.h.b16 %v1977
        %v2691 = vunpack.c.l.b16 %v1978
        %v2692 = vunpack.c.h.b16 %v1978
        %v2693 = vunpack.c.l.b16 %v1979
        %v2694 = vunpack.c.h.b16 %v1979
        %v2695 = vunpack.c.l.b16 %v1980
        %v2696 = vunpack.c.h.b16 %v1980
        %v2697 = vunpack.c.l.b16 %v1981
        %v2698 = vunpack.c.h.b16 %v1981
        %v2699 = vunpack.c.l.b16 %v1982
        %v2700 = vunpack.c.h.b16 %v1982
        %v2701 = vunpack.c.l.b16 %v1983
        %v2702 = vunpack.c.h.b16 %v1983
        %v2703 = vunpack.c.l.b16 %v1984
        %v2704 = vunpack.c.h.b16 %v1984
        %v2705 = vunpack.c.l.b16 %v1985
        %v2706 = vunpack.c.h.b16 %v1985
        %v2707 = vunpack.c.l.b16 %v1986
        %v2708 = vunpack.c.h.b16 %v1986
        %v2709 = vunpack.c.l.b16 %v1987
        %v2710 = vunpack.c.h.b16 %v1987
        %v2711 = vunpack.c.l.b16 %v1988
        %v2712 = vunpack.c.h.b16 %v1988
        %v2713 = vunpack.c.l.b16 %v1989
        %v2714 = vunpack.c.h.b16 %v1989
        %v2715 = vunpack.c.l.b16 %v1990
        %v2716 = vunpack.c.h.b16 %v1990
        %v2717 = vunpack.c.l.b16 %v1991
        %v2718 = vunpack.c.h.b16 %v1991
        %v2719 = vunpack.c.l.b16 %v1992
        %v2720 = vunpack.c.h.b16 %v1992
        %v2721 = vunpack.c.l.b16 %v1993
        %v2722 = vunpack.c.h.b16 %v1993
        %v2723 = vunpack.c.l.b16 %v1994
        %v2724 = vunpack.c.h.b16 %v1994
        %v2725 = vunpack.c.l.b16 %v1995
        %v2726 = vunpack.c.h.b16 %v1995
        %v2727 = vunpack.c.l.b16 %v1996
        %v2728 = vunpack.c.h.b16 %v1996
        %v2729 = vunpack.c.l.b16 %v1997
        %v2730 = vunpack.c.h.b16 %v1997
        %v2731 = vunpack.c.l.b16 %v1998
        %v2732 = vunpack.c.h.b16 %v1998
        %v2733 = vunpack.c.l.b16 %v1999
        %v2734 = vunpack.c.h.b16 %v1999
        %v2735 = vunpack.c.l.b16 %v2000
        %v2736 = vunpack.c.h.b16 %v2000
        %v2737 = vunpack.c.l.b16 %v2001
        %v2738 = vunpack.c.h.b16 %v2001
        %v2739 = vunpack.c.l.b16 %v2002
        %v2740 = vunpack.c.h.b16 %v2002
        %v2741 = vunpack.c.l.b16 %v2003
        %v2742 = vunpack.c.h.b16 %v2003
        %v2743 = vunpack.c.l.b16 %v2004
        %v2744 = vunpack.c.h.b16 %v2004
        %v2745 = vunpack.c.l.b16 %v2005
        %v2746 = vunpack.c.h.b16 %v2005
        %v2747 = vunpack.c.l.b16 %v2006
        %v2748 = vunpack.c.h.b16 %v2006
        %v2749 = vunpack.c.l.b16 %v2007
        %v2750 = vunpack.c.h.b16 %v2007
        %v2751 = vunpack.c.l.b16 %v2008
        %v2752 = vunpack.c.h.b16 %v2008
        %v2753 = vunpack.c.l.b16 %v2009
        %v2754 = vunpack.c.h.b16 %v2009
        %v2755 = vunpack.c.l.b16 %v2010
        %v2756 = vunpack.c.h.b16 %v2010
        %v2757 = vunpack.c.l.b16 %v2011
        %v2758 = vunpack.c.h.b16 %v2011
        %v2759 = vunpack.c.l.b16 %v2012
        %v2760 = vunpack.c.h.b16 %v2012
        %v2761 = vunpack.c.l.b16 %v2013
        %v2762 = vunpack.c.h.b16 %v2013
        %v2763 = vunpack.c.l.b16 %v2014
        %v2764 = vunpack.c.h.b16 %v2014
        %v2765 = vunpack.c.l.b16 %v2015
        %v2766 = vunpack.c.h.b16 %v2015
        %v2767 = vunpack.c.l.b16 %v2016
        %v2768 = vunpack.c.h.b16 %v2016
        %v2769 = vunpack.c.l.b16 %v2017
        %v2770 = vunpack.c.h.b16 %v2017
        %v2771 = vunpack.c.l.b16 %v2018
        %v2772 = vunpack.c.h.b16 %v2018
        %v2773 = vunpack.c.l.b16 %v2019
        %v2774 = vunpack.c.h.b16 %v2019
        %v2775 = vunpack.c.l.b16 %v2020
        %v2776 = vunpack.c.h.b16 %v2020
        %v2777 = vunpack.c.l.b16 %v2021
        %v2778 = vunpack.c.h.b16 %v2021
        %v2779 = vunpack.c.l.b16 %v2022
        %v2780 = vunpack.c.h.b16 %v2022
        %v2781 = vunpack.c.l.b16 %v2023
        %v2782 = vunpack.c.h.b16 %v2023
        %v2783 = vunpack.c.l.b16 %v2024
        %v2784 = vunpack.c.h.b16 %v2024
        %v2785 = vunpack.c.l.b16 %v2025
        %v2786 = vunpack.c.h.b16 %v2025
        %v2787 = vunpack.c.l.b16 %v2026
        %v2788 = vunpack.c.h.b16 %v2026
        %v2789 = vunpack.c.l.b16 %v2027
        %v2790 = vunpack.c.h.b16 %v2027
        %v2791 = vunpack.c.l.b16 %v2028
        %v2792 = vunpack.c.h.b16 %v2028
        %v2793 = vunpack.c.l.b16 %v2029
        %v2794 = vunpack.c.h.b16 %v2029
        %v2795 = vunpack.c.l.b16 %v2030
        %v2796 = vunpack.c.h.b16 %v2030
        %v2797 = vunpack.c.l.b16 %v2031
        %v2798 = vunpack.c.h.b16 %v2031
        %v2799 = vunpack.c.l.b16 %v2032
        %v2800 = vunpack.c.h.b16 %v2032
        %v2801 = vunpack.c.l.b16 %v2033
        %v2802 = vunpack.c.h.b16 %v2033
        %v2803 = vunpack.c.l.b16 %v2034
        %v2804 = vunpack.c.h.b16 %v2034
        %v2805 = vunpack.c.l.b16 %v2035
        %v2806 = vunpack.c.h.b16 %v2035
        %v2807 = vunpack.c.l.b16 %v2036
        %v2808 = vunpack.c.h.b16 %v2036
        %v2809 = vunpack.c.l.b16 %v2037
        %v2810 = vunpack.c.h.b16 %v2037
        %v2811 = vunpack.c.l.b16 %v2038
        %v2812 = vunpack.c.h.b16 %v2038
        %v2813 = vunpack.c.l.b16 %v2039
        %v2814 = vunpack.c.h.b16 %v2039
        %v2815 = vunpack.c.l.b16 %v2040
        %v2816 = vunpack.c.h.b16 %v2040
        %v2817 = vunpack.c.l.b16 %v2041
        %v2818 = vunpack.c.h.b16 %v2041
        %v2819 = vunpack.c.l.b16 %v2042
        %v2820 = vunpack.c.h.b16 %v2042
        %v2821 = vunpack.c.l.b16 %v2043
        %v2822 = vunpack.c.h.b16 %v2043
        %v2823 = vunpack.c.l.b16 %v2044
        %v2824 = vunpack.c.h.b16 %v2044
        %v2825 = vunpack.c.l.b16 %v2045
        %v2826 = vunpack.c.h.b16 %v2045
        %v2827 = vunpack.c.l.b16 %v2046
        %v2828 = vunpack.c.h.b16 %v2046
        %v2829 = vunpack.c.l.b16 %v2047
        %v2830 = vunpack.c.h.b16 %v2047
        %v2831 = vunpack.c.l.b16 %v2048
        %v2832 = vunpack.c.h.b16 %v2048
        %v2833 = vunpack.c.l.b16 %v2049
        %v2834 = vunpack.c.h.b16 %v2049
        %v2835 = vunpack.c.l.b16 %v2050
        %v2836 = vunpack.c.h.b16 %v2050
        %v2837 = vunpack.c.l.b16 %v2051
        %v2838 = vunpack.c.h.b16 %v2051
        %v2839 = vunpack.c.l.b16 %v2052
        %v2840 = vunpack.c.h.b16 %v2052
        %v2841 = vunpack.c.l.b16 %v2053
        %v2842 = vunpack.c.h.b16 %v2053
        %v2843 = vunpack.c.l.b16 %v2054
        %v2844 = vunpack.c.h.b16 %v2054
        %v2845 = vunpack.c.l.b16 %v2055
        %v2846 = vunpack.c.h.b16 %v2055
        %v2847 = vunpack.c.l.b16 %v2056
        %v2848 = vunpack.c.h.b16 %v2056
        %v2849 = vunpack.c.l.b16 %v2057
        %v2850 = vunpack.c.h.b16 %v2057
        %v2851 = vunpack.c.l.b16 %v2058
        %v2852 = vunpack.c.h.b16 %v2058
        %v2853 = vunpack.c.l.b16 %v2059
        %v2854 = vunpack.c.h.b16 %v2059
        %v2855 = vunpack.c.l.b16 %v2060
        %v2856 = vunpack.c.h.b16 %v2060
        %v2857 = vunpack.c.l.b16 %v2061
        %v2858 = vunpack.c.h.b16 %v2061
        %v2859 = vunpack.c.l.b16 %v2062
        %v2860 = vunpack.c.h.b16 %v2062
        %v2861 = vunpack.c.l.b16 %v2063
        %v2862 = vunpack.c.h.b16 %v2063
        %v2863 = vunpack.c.l.b16 %v2064
        %v2864 = vunpack.c.h.b16 %v2064
        %v2865 = vunpack.c.l.b16 %v2065
        %v2866 = vunpack.c.h.b16 %v2065
        %v2867 = vunpack.c.l.b16 %v2066
        %v2868 = vunpack.c.h.b16 %v2066
        %v2869 = vunpack.c.l.b16 %v2067
        %v2870 = vunpack.c.h.b16 %v2067
        %v2871 = vunpack.c.l.b16 %v2068
        %v2872 = vunpack.c.h.b16 %v2068
        %v2873 = vunpack.c.l.b16 %v2069
        %v2874 = vunpack.c.h.b16 %v2069
        %v2875 = vunpack.c.l.b16 %v2070
        %v2876 = vunpack.c.h.b16 %v2070
        %v2877 = vunpack.c.l.b16 %v2071
        %v2878 = vunpack.c.h.b16 %v2071
        %v2879 = vunpack.c.l.b16 %v2072
        %v2880 = vunpack.c.h.b16 %v2072
        %v2881 = vunpack.c.l.b16 %v2073
        %v2882 = vunpack.c.h.b16 %v2073
        %v2883 = vunpack.c.l.b16 %v2074
        %v2884 = vunpack.c.h.b16 %v2074
        %v2885 = vpack.c.b16 %v2381, %v2373
        %v2886 = vpack.c.b16 %v2382, %v2374
        %v2887 = vpack.c.b16 %v2383, %v2375
        %v2888 = vpack.c.b16 %v2384, %v2376
        %v2889 = vpack.c.b16 %v2385, %v2377
        %v2890 = vpack.c.b16 %v2386, %v2378
        %v2891 = vpack.c.b16 %v2387, %v2379
        %v2892 = vpack.c.b16 %v2388, %v2380
        %v2893 = vpack.c.b16 %v2397, %v2389
        %v2894 = vpack.c.b16 %v2398, %v2390
        %v2895 = vpack.c.b16 %v2399, %v2391
        %v2896 = vpack.c.b16 %v2400, %v2392
        %v2897 = vpack.c.b16 %v2401, %v2393
        %v2898 = vpack.c.b16 %v2402, %v2394
        %v2899 = vpack.c.b16 %v2403, %v2395
        %v2900 = vpack.c.b16 %v2404, %v2396
        %v2901 = vpack.c.b16 %v2413, %v2405
        %v2902 = vpack.c.b16 %v2414, %v2406
        %v2903 = vpack.c.b16 %v2415, %v2407
        %v2904 = vpack.c.b16 %v2416, %v2408
        %v2905 = vpack.c.b16 %v2417, %v2409
        %v2906 = vpack.c.b16 %v2418, %v2410
        %v2907 = vpack.c.b16 %v2419, %v2411
        %v2908 = vpack.c.b16 %v2420, %v2412
        %v2909 = vpack.c.b16 %v2429, %v2421
        %v2910 = vpack.c.b16 %v2430, %v2422
        %v2911 = vpack.c.b16 %v2431, %v2423
        %v2912 = vpack.c.b16 %v2432, %v2424
        %v2913 = vpack.c.b16 %v2433, %v2425
        %v2914 = vpack.c.b16 %v2434, %v2426
        %v2915 = vpack.c.b16 %v2435, %v2427
        %v2916 = vpack.c.b16 %v2436, %v2428
        %v2917 = vpack.c.b16 %v2445, %v2437
        %v2918 = vpack.c.b16 %v2446, %v2438
        %v2919 = vpack.c.b16 %v2447, %v2439
        %v2920 = vpack.c.b16 %v2448, %v2440
        %v2921 = vpack.c.b16 %v2449, %v2441
        %v2922 = vpack.c.b16 %v2450, %v2442
        %v2923 = vpack.c.b16 %v2451, %v2443
        %v2924 = vpack.c.b16 %v2452, %v2444
        %v2925 = vpack.c.b16 %v2461, %v2453
        %v2926 = vpack.c.b16 %v2462, %v2454
        %v2927 = vpack.c.b16 %v2463, %v2455
        %v2928 = vpack.c.b16 %v2464, %v2456
        %v2929 = vpack.c.b16 %v2465, %v2457
        %v2930 = vpack.c.b16 %v2466, %v2458
        %v2931 = vpack.c.b16 %v2467, %v2459
        %v2932 = vpack.c.b16 %v2468, %v2460
        %v2933 = vpack.c.b16 %v2477, %v2469
        %v2934 = vpack.c.b16 %v2478, %v2470
        %v2935 = vpack.c.b16 %v2479, %v2471
        %v2936 = vpack.c.b16 %v2480, %v2472
        %v2937 = vpack.c.b16 %v2481, %v2473
        %v2938 = vpack.c.b16 %v2482, %v2474
        %v2939 = vpack.c.b16 %v2483, %v2475
        %v2940 = vpack.c.b16 %v2484, %v2476
        %v2941 = vpack.c.b16 %v2493, %v2485
        %v2942 = vpack.c.b16 %v2494, %v2486
        %v2943 = vpack.c.b16 %v2495, %v2487
        %v2944 = vpack.c.b16 %v2496, %v2488
        %v2945 = vpack.c.b16 %v2497, %v2489
        %v2946 = vpack.c.b16 %v2498, %v2490
        %v2947 = vpack.c.b16 %v2499, %v2491
        %v2948 = vpack.c.b16 %v2500, %v2492
        %v2949 = vpack.c.b16 %v2509, %v2501
        %v2950 = vpack.c.b16 %v2510, %v2502
        %v2951 = vpack.c.b16 %v2511, %v2503
        %v2952 = vpack.c.b16 %v2512, %v2504
        %v2953 = vpack.c.b16 %v2513, %v2505
        %v2954 = vpack.c.b16 %v2514, %v2506
        %v2955 = vpack.c.b16 %v2515, %v2507
        %v2956 = vpack.c.b16 %v2516, %v2508
        %v2957 = vpack.c.b16 %v2525, %v2517
        %v2958 = vpack.c.b16 %v2526, %v2518
        %v2959 = vpack.c.b16 %v2527, %v2519
        %v2960 = vpack.c.b16 %v2528, %v2520
        %v2961 = vpack.c.b16 %v2529, %v2521
        %v2962 = vpack.c.b16 %v2530, %v2522
        %v2963 = vpack.c.b16 %v2531, %v2523
        %v2964 = vpack.c.b16 %v2532, %v2524
        %v2965 = vpack.c.b16 %v2541, %v2533
        %v2966 = vpack.c.b16 %v2542, %v2534
        %v2967 = vpack.c.b16 %v2543, %v2535
        %v2968 = vpack.c.b16 %v2544, %v2536
        %v2969 = vpack.c.b16 %v2545, %v2537
        %v2970 = vpack.c.b16 %v2546, %v2538
        %v2971 = vpack.c.b16 %v2547, %v2539
        %v2972 = vpack.c.b16 %v2548, %v2540
        %v2973 = vpack.c.b16 %v2557, %v2549
        %v2974 = vpack.c.b16 %v2558, %v2550
        %v2975 = vpack.c.b16 %v2559, %v2551
        %v2976 = vpack.c.b16 %v2560, %v2552
        %v2977 = vpack.c.b16 %v2561, %v2553
        %v2978 = vpack.c.b16 %v2562, %v2554
        %v2979 = vpack.c.b16 %v2563, %v2555
        %v2980 = vpack.c.b16 %v2564, %v2556
        %v2981 = vpack.c.b16 %v2573, %v2565
        %v2982 = vpack.c.b16 %v2574, %v2566
        %v2983 = vpack.c.b16 %v2575, %v2567
        %v2984 = vpack.c.b16 %v2576, %v2568
        %v2985 = vpack.c.b16 %v2577, %v2569
        %v2986 = vpack.c.b16 %v2578, %v2570
        %v2987 = vpack.c.b16 %v2579, %v2571
        %v2988 = vpack.c.b16 %v2580, %v2572
        %v2989 = vpack.c.b16 %v2589, %v2581
        %v2990 = vpack.c.b16 %v2590, %v2582
        %v2991 = vpack.c.b16 %v2591, %v2583
        %v2992 = vpack.c.b16 %v2592, %v2584
        %v2993 = vpack.c.b16 %v2593, %v2585
        %v2994 = vpack.c.b16 %v2594, %v2586
        %v2995 = vpack.c.b16 %v2595, %v2587
        %v2996 = vpack.c.b16 %v2596, %v2588
        %v2997 = vpack.c.b16 %v2605, %v2597
        %v2998 = vpack.c.b16 %v2606, %v2598
        %v2999 = vpack.c.b16 %v2607, %v2599
        %v3000 = vpack.c.b16 %v2608, %v2600
        %v3001 = vpack.c.b16 %v2609, %v2601
        %v3002 = vpack.c.b16 %v2610, %v2602
        %v3003 = vpack.c.b16 %v2611, %v2603
        %v3004 = vpack.c.b16 %v2612, %v2604
        %v3005 = vpack.c.b16 %v2621, %v2613
        %v3006 = vpack.c.b16 %v2622, %v2614
        %v3007 = vpack.c.b16 %v2623, %v2615
        %v3008 = vpack.c.b16 %v2624, %v2616
        %v3009 = vpack.c.b16 %v2625, %v2617
        %v3010 = vpack.c.b16 %v2626, %v2618
        %v3011 = vpack.c.b16 %v2627, %v2619
        %v3012 = vpack.c.b16 %v2628, %v2620
        %v3013 = vpack.c.b16 %v2637, %v2629
        %v3014 = vpack.c.b16 %v2638, %v2630
        %v3015 = vpack.c.b16 %v2639, %v2631
        %v3016 = vpack.c.b16 %v2640, %v2632
        %v3017 = vpack.c.b16 %v2641, %v2633
        %v3018 = vpack.c.b16 %v2642, %v2634
        %v3019 = vpack.c.b16 %v2643, %v2635
        %v3020 = vpack.c.b16 %v2644, %v2636
        %v3021 = vpack.c.b16 %v2653, %v2645
        %v3022 = vpack.c.b16 %v2654, %v2646
        %v3023 = vpack.c.b16 %v2655, %v2647
        %v3024 = vpack.c.b16 %v2656, %v2648
        %v3025 = vpack.c.b16 %v2657, %v2649
        %v3026 = vpack.c.b16 %v2658, %v2650
        %v3027 = vpack.c.b16 %v2659, %v2651
        %v3028 = vpack.c.b16 %v2660, %v2652
        %v3029 = vpack.c.b16 %v2669, %v2661
        %v3030 = vpack.c.b16 %v2670, %v2662
        %v3031 = vpack.c.b16 %v2671, %v2663
        %v3032 = vpack.c.b16 %v2672, %v2664
        %v3033 = vpack.c.b16 %v2673, %v2665
        %v3034 = vpack.c.b16 %v2674, %v2666
        %v3035 = vpack.c.b16 %v2675, %v2667
        %v3036 = vpack.c.b16 %v2676, %v2668
        %v3037 = vpack.c.b16 %v2685, %v2677
        %v3038 = vpack.c.b16 %v2686, %v2678
        %v3039 = vpack.c.b16 %v2687, %v2679
        %v3040 = vpack.c.b16 %v2688, %v2680
        %v3041 = vpack.c.b16 %v2689, %v2681
        %v3042 = vpack.c.b16 %v2690, %v2682
        %v3043 = vpack.c.b16 %v2691, %v2683
        %v3044 = vpack.c.b16 %v2692, %v2684
        %v3045 = vpack.c.b16 %v2701, %v2693
        %v3046 = vpack.c.b16 %v2702, %v2694
        %v3047 = vpack.c.b16 %v2703, %v2695
        %v3048 = vpack.c.b16 %v2704, %v2696
        %v3049 = vpack.c.b16 %v2705, %v2697
        %v3050 = vpack.c.b16 %v2706, %v2698
        %v3051 = vpack.c.b16 %v2707, %v2699
        %v3052 = vpack.c.b16 %v2708, %v2700
        %v3053 = vpack.c.b16 %v2717, %v2709
        %v3054 = vpack.c.b16 %v2718, %v2710
        %v3055 = vpack.c.b16 %v2719, %v2711
        %v3056 = vpack.c.b16 %v2720, %v2712
        %v3057 = vpack.c.b16 %v2721, %v2713
        %v3058 = vpack.c.b16 %v2722, %v2714
        %v3059 = vpack.c.b16 %v2723, %v2715
        %v3060 = vpack.c.b16 %v2724, %v2716
        %v3061 = vpack.c.b16 %v2733, %v2725
        %v3062 = vpack.c.b16 %v2734, %v2726
        %v3063 = vpack.c.b16 %v2735, %v2727
        %v3064 = vpack.c.b16 %v2736, %v2728
        %v3065 = vpack.c.b16 %v2737, %v2729
        %v3066 = vpack.c.b16 %v2738, %v2730
        %v3067 = vpack.c.b16 %v2739, %v2731
        %v3068 = vpack.c.b16 %v2740, %v2732
        %v3069 = vpack.c.b16 %v2749, %v2741
        %v3070 = vpack.c.b16 %v2750, %v2742
        %v3071 = vpack.c.b16 %v2751, %v2743
        %v3072 = vpack.c.b16 %v2752, %v2744
        %v3073 = vpack.c.b16 %v2753, %v2745
        %v3074 = vpack.c.b16 %v2754, %v2746
        %v3075 = vpack.c.b16 %v2755, %v2747
        %v3076 = vpack.c.b16 %v2756, %v2748
        %v3077 = vpack.c.b16 %v2765, %v2757
        %v3078 = vpack.c.b16 %v2766, %v2758
        %v3079 = vpack.c.b16 %v2767, %v2759
        %v3080 = vpack.c.b16 %v2768, %v2760
        %v3081 = vpack.c.b16 %v2769, %v2761
        %v3082 = vpack.c.b16 %v2770, %v2762
        %v3083 = vpack.c.b16 %v2771, %v2763
        %v3084 = vpack.c.b16 %v2772, %v2764
        %v3085 = vpack.c.b16 %v2781, %v2773
        %v3086 = vpack.c.b16 %v2782, %v2774
        %v3087 = vpack.c.b16 %v2783, %v2775
        %v3088 = vpack.c.b16 %v2784, %v2776
        %v3089 = vpack.c.b16 %v2785, %v2777
        %v3090 = vpack.c.b16 %v2786, %v2778
        %v3091 = vpack.c.b16 %v2787, %v2779
        %v3092 = vpack.c.b16 %v2788, %v2780
        %v3093 = vpack.c.b16 %v2797, %v2789
        %v3094 = vpack.c.b16 %v2798, %v2790
        %v3095 = vpack.c.b16 %v2799, %v2791
        %v3096 = vpack.c.b16 %v2800, %v2792
        %v3097 = vpack.c.b16 %v2801, %v2793
        %v3098 = vpack.c.b16 %v2802, %v2794
        %v3099 = vpack.c.b16 %v2803, %v2795
        %v3100 = vpack.c.b16 %v2804, %v2796
        %v3101 = vpack.c.b16 %v2813, %v2805
        %v3102 = vpack.c.b16 %v2814, %v2806
        %v3103 = vpack.c.b16 %v2815, %v2807
        %v3104 = vpack.c.b16 %v2816, %v2808
        %v3105 = vpack.c.b16 %v2817, %v2809
        %v3106 = vpack.c.b16 %v2818, %v2810
        %v3107 = vpack.c.b16 %v2819, %v2811
        %v3108 = vpack.c.b16 %v2820, %v2812
        %v3109 = vpack.c.b16 %v2829, %v2821
        %v3110 = vpack.c.b16 %v2830, %v2822
        %v3111 = vpack.c.b16 %v2831, %v2823
        %v3112 = vpack.c.b16 %v2832, %v2824
        %v3113 = vpack.c.b16 %v2833, %v2825
        %v3114 = vpack.c.b16 %v2834, %v2826
        %v3115 = vpack.c.b16 %v2835, %v2827
        %v3116 = vpack.c.b16 %v2836, %v2828
        %v3117 = vpack.c.b16 %v2845, %v2837
        %v3118 = vpack.c.b16 %v2846, %v2838
        %v3119 = vpack.c.b16 %v2847, %v2839
        %v3120 = vpack.c.b16 %v2848, %v2840
        %v3121 = vpack.c.b16 %v2849, %v2841
        %v3122 = vpack.c.b16 %v2850, %v2842
        %v3123 = vpack.c.b16 %v2851, %v2843
        %v3124 = vpack.c.b16 %v2852, %v2844
        %v3125 = vpack.c.b16 %v2861, %v2853
        %v3126 = vpack.c.b16 %v2862, %v2854
        %v3127 = vpack.c.b16 %v2863, %v2855
        %v3128 = vpack.c.b16 %v2864, %v2856
        %v3129 = vpack.c.b16 %v2865, %v2857
        %v3130 = vpack.c.b16 %v2866, %v2858
        %v3131 = vpack.c.b16 %v2867, %v2859
        %v3132 = vpack.c.b16 %v2868, %v2860
        %v3133 = vpack.c.b16 %v2877, %v2869
        %v3134 = vpack.c.b16 %v2878, %v2870
        %v3135 = vpack.c.b16 %v2879, %v2871
        %v3136 = vpack.c.b16 %v2880, %v2872
        %v3137 = vpack.c.b16 %v2881, %v2873
        %v3138 = vpack.c.b16 %v2882, %v2874
        %v3139 = vpack.c.b16 %v2883, %v2875
        %v3140 = vpack.c.b16 %v2884, %v2876
        %3397 = vmatprep.subr.bf16.mxu0 %v2886
        %3398 = vmatpush1.bf16.msra.mxu0 %v2885
        %3399 = vmatprep.subr.bf16.mxu0 %v2894
        %3400 = vmatpush1.bf16.msra.mxu0 %v2893
        %3401 = vmatprep.subr.bf16.mxu0 %v2902
        %3402 = vmatpush1.bf16.msra.mxu0 %v2901
        %3403 = vmatprep.subr.bf16.mxu0 %v2910
        %3404 = vmatpush1.bf16.msra.mxu0 %v2909
        %3405 = vmatprep.subr.bf16.mxu0 %v2918
        %3406 = vmatpush1.bf16.msra.mxu0 %v2917
        %3407 = vmatprep.subr.bf16.mxu0 %v2926
        %3408 = vmatpush1.bf16.msra.mxu0 %v2925
        %3409 = vmatprep.subr.bf16.mxu0 %v2934
        %3410 = vmatpush1.bf16.msra.mxu0 %v2933
        %3411 = vmatprep.subr.bf16.mxu0 %v2942
        %3412 = vmatpush1.bf16.msra.mxu0 %v2941
        %3413 = vmatprep.subr.bf16.mxu0 %v2950
        %3414 = vmatpush1.bf16.msra.mxu0 %v2949
        %3415 = vmatprep.subr.bf16.mxu0 %v2958
        %3416 = vmatpush1.bf16.msra.mxu0 %v2957
        %3417 = vmatprep.subr.bf16.mxu0 %v2966
        %3418 = vmatpush1.bf16.msra.mxu0 %v2965
        %3419 = vmatprep.subr.bf16.mxu0 %v2974
        %3420 = vmatpush1.bf16.msra.mxu0 %v2973
        %3421 = vmatprep.subr.bf16.mxu0 %v2982
        %3422 = vmatpush1.bf16.msra.mxu0 %v2981
        %3423 = vmatprep.subr.bf16.mxu0 %v2990
        %3424 = vmatpush1.bf16.msra.mxu0 %v2989
        %3425 = vmatprep.subr.bf16.mxu0 %v2998
        %3426 = vmatpush1.bf16.msra.mxu0 %v2997
        %3427 = vmatprep.subr.bf16.mxu0 %v3006
        %3428 = vmatpush1.bf16.msra.mxu0 %v3005
        %3429 = vmatprep.mubr.bf16.mxu0 %v1816
        %3430 = vmatmul.mubr.bf16.gmra.mrb[0].mxu0 %v1815
        %v3431 = vpop.f32.mrb[0].mxu0
        %v3432 = vadd.f32 %v2080, %v3431
        %v3433 = vpop.f32.mrb[0].mxu0
        %v3434 = vadd.f32 %v2084, %v3433
        %v3435 = vpop.f32.mrb[0].mxu0
        %v3436 = vpop.f32.mrb[0].mxu0
        %3437 = vdwg.mxu0
        %3438 = vmatprep.subr.bf16.mxu0 %v3014
        %3439 = vmatpush1.bf16.msra.mxu0 %v3013
        %3440 = vmatprep.subr.bf16.mxu0 %v3022
        %3441 = vmatpush1.bf16.msra.mxu0 %v3021
        %3442 = vmatprep.subr.bf16.mxu0 %v3030
        %3443 = vmatpush1.bf16.msra.mxu0 %v3029
        %3444 = vmatprep.subr.bf16.mxu0 %v3038
        %3445 = vmatpush1.bf16.msra.mxu0 %v3037
        %3446 = vmatprep.subr.bf16.mxu0 %v3046
        %3447 = vmatpush1.bf16.msra.mxu0 %v3045
        %3448 = vmatprep.subr.bf16.mxu0 %v3054
        %3449 = vmatpush1.bf16.msra.mxu0 %v3053
        %3450 = vmatprep.subr.bf16.mxu0 %v3062
        %3451 = vmatpush1.bf16.msra.mxu0 %v3061
        %3452 = vmatprep.subr.bf16.mxu0 %v3070
        %3453 = vmatpush1.bf16.msra.mxu0 %v3069
        %3454 = vmatprep.subr.bf16.mxu0 %v3078
        %3455 = vmatpush1.bf16.msra.mxu0 %v3077
        %3456 = vmatprep.subr.bf16.mxu0 %v3086
        %3457 = vmatpush1.bf16.msra.mxu0 %v3085
        %3458 = vmatprep.subr.bf16.mxu0 %v3094
        %3459 = vmatpush1.bf16.msra.mxu0 %v3093
        %3460 = vmatprep.subr.bf16.mxu0 %v3102
        %3461 = vmatpush1.bf16.msra.mxu0 %v3101
        %3462 = vmatprep.subr.bf16.mxu0 %v3110
        %3463 = vmatpush1.bf16.msra.mxu0 %v3109
        %3464 = vmatprep.subr.bf16.mxu0 %v3118
        %3465 = vmatpush1.bf16.msra.mxu0 %v3117
        %3466 = vmatprep.subr.bf16.mxu0 %v3126
        %3467 = vmatpush1.bf16.msra.mxu0 %v3125
        %3468 = vmatprep.subr.bf16.mxu0 %v3134
        %3469 = vmatpush1.bf16.msra.mxu0 %v3133
        %3470 = vmatprep.mubr.bf16.mxu0 %v1818
        %3471 = vmatmul.mubr.bf16.gmra.mrb[0].mxu0 %v1817
        %v3472 = vpop.f32.mrb[0].mxu0
        %v3473 = vadd.f32 %v3432, %v3472
        %v3474 = vpop.f32.mrb[0].mxu0
        %v3475 = vadd.f32 %v3434, %v3474
        %v3476 = vpop.f32.mrb[0].mxu0
        %v3477 = vpop.f32.mrb[0].mxu0
        %3478 = vdwg.mxu0
        %3479 = vmatprep.subr.bf16.mxu0 %v2888
        %3480 = vmatpush1.bf16.msra.mxu0 %v2887
        %3481 = vmatprep.subr.bf16.mxu0 %v2896
        %3482 = vmatpush1.bf16.msra.mxu0 %v2895
        %3483 = vmatprep.subr.bf16.mxu0 %v2904
        %3484 = vmatpush1.bf16.msra.mxu0 %v2903
        %3485 = vmatprep.subr.bf16.mxu0 %v2912
        %3486 = vmatpush1.bf16.msra.mxu0 %v2911
        %3487 = vmatprep.subr.bf16.mxu0 %v2920
        %3488 = vmatpush1.bf16.msra.mxu0 %v2919
        %3489 = vmatprep.subr.bf16.mxu0 %v2928
        %3490 = vmatpush1.bf16.msra.mxu0 %v2927
        %3491 = vmatprep.subr.bf16.mxu0 %v2936
        %3492 = vmatpush1.bf16.msra.mxu0 %v2935
        %3493 = vmatprep.subr.bf16.mxu0 %v2944
        %3494 = vmatpush1.bf16.msra.mxu0 %v2943
        %3495 = vmatprep.subr.bf16.mxu0 %v2952
        %3496 = vmatpush1.bf16.msra.mxu0 %v2951
        %3497 = vmatprep.subr.bf16.mxu0 %v2960
        %3498 = vmatpush1.bf16.msra.mxu0 %v2959
        %3499 = vmatprep.subr.bf16.mxu0 %v2968
        %3500 = vmatpush1.bf16.msra.mxu0 %v2967
        %3501 = vmatprep.subr.bf16.mxu0 %v2976
        %3502 = vmatpush1.bf16.msra.mxu0 %v2975
        %3503 = vmatprep.subr.bf16.mxu0 %v2984
        %3504 = vmatpush1.bf16.msra.mxu0 %v2983
        %3505 = vmatprep.subr.bf16.mxu0 %v2992
        %3506 = vmatpush1.bf16.msra.mxu0 %v2991
        %3507 = vmatprep.subr.bf16.mxu0 %v3000
        %3508 = vmatpush1.bf16.msra.mxu0 %v2999
        %3509 = vmatprep.subr.bf16.mxu0 %v3008
        %3510 = vmatpush1.bf16.msra.mxu0 %v3007
        %3511 = vmatprep.mubr.bf16.mxu0 %v1816
        %3512 = vmatmul.mubr.bf16.gmra.mrb[0].mxu0 %v1815
        %v3513 = vpop.f32.mrb[0].mxu0
        %v3514 = vadd.f32 %v2088, %v3513
        %v3515 = vpop.f32.mrb[0].mxu0
        %v3516 = vadd.f32 %v2092, %v3515
        %v3517 = vpop.f32.mrb[0].mxu0
        %v3518 = vpop.f32.mrb[0].mxu0
        %3519 = vdwg.mxu0
        %3520 = vmatprep.subr.bf16.mxu0 %v3016
        %3521 = vmatpush1.bf16.msra.mxu0 %v3015
        %3522 = vmatprep.subr.bf16.mxu0 %v3024
        %3523 = vmatpush1.bf16.msra.mxu0 %v3023
        %3524 = vmatprep.subr.bf16.mxu0 %v3032
        %3525 = vmatpush1.bf16.msra.mxu0 %v3031
        %3526 = vmatprep.subr.bf16.mxu0 %v3040
        %3527 = vmatpush1.bf16.msra.mxu0 %v3039
        %3528 = vmatprep.subr.bf16.mxu0 %v3048
        %3529 = vmatpush1.bf16.msra.mxu0 %v3047
        %3530 = vmatprep.subr.bf16.mxu0 %v3056
        %3531 = vmatpush1.bf16.msra.mxu0 %v3055
        %3532 = vmatprep.subr.bf16.mxu0 %v3064
        %3533 = vmatpush1.bf16.msra.mxu0 %v3063
        %3534 = vmatprep.subr.bf16.mxu0 %v3072
        %3535 = vmatpush1.bf16.msra.mxu0 %v3071
        %3536 = vmatprep.subr.bf16.mxu0 %v3080
        %3537 = vmatpush1.bf16.msra.mxu0 %v3079
        %3538 = vmatprep.subr.bf16.mxu0 %v3088
        %3539 = vmatpush1.bf16.msra.mxu0 %v3087
        %3540 = vmatprep.subr.bf16.mxu0 %v3096
        %3541 = vmatpush1.bf16.msra.mxu0 %v3095
        %3542 = vmatprep.subr.bf16.mxu0 %v3104
        %3543 = vmatpush1.bf16.msra.mxu0 %v3103
        %3544 = vmatprep.subr.bf16.mxu0 %v3112
        %3545 = vmatpush1.bf16.msra.mxu0 %v3111
        %3546 = vmatprep.subr.bf16.mxu0 %v3120
        %3547 = vmatpush1.bf16.msra.mxu0 %v3119
        %3548 = vmatprep.subr.bf16.mxu0 %v3128
        %3549 = vmatpush1.bf16.msra.mxu0 %v3127
        %3550 = vmatprep.subr.bf16.mxu0 %v3136
        %3551 = vmatpush1.bf16.msra.mxu0 %v3135
        %3552 = vmatprep.mubr.bf16.mxu0 %v1818
        %3553 = vmatmul.mubr.bf16.gmra.mrb[0].mxu0 %v1817
        %v3554 = vpop.f32.mrb[0].mxu0
        %v3555 = vadd.f32 %v3514, %v3554
        %v3556 = vpop.f32.mrb[0].mxu0
        %v3557 = vadd.f32 %v3516, %v3556
        %v3558 = vpop.f32.mrb[0].mxu0
        %v3559 = vpop.f32.mrb[0].mxu0
        %3560 = vdwg.mxu0
        %3561 = vmatprep.subr.bf16.mxu0 %v2890
        %3562 = vmatpush1.bf16.msra.mxu0 %v2889
        %3563 = vmatprep.subr.bf16.mxu0 %v2898
        %3564 = vmatpush1.bf16.msra.mxu0 %v2897
        %3565 = vmatprep.subr.bf16.mxu0 %v2906
        %3566 = vmatpush1.bf16.msra.mxu0 %v2905
        %3567 = vmatprep.subr.bf16.mxu0 %v2914
        %3568 = vmatpush1.bf16.msra.mxu0 %v2913
        %3569 = vmatprep.subr.bf16.mxu0 %v2922
        %3570 = vmatpush1.bf16.msra.mxu0 %v2921
        %3571 = vmatprep.subr.bf16.mxu0 %v2930
        %3572 = vmatpush1.bf16.msra.mxu0 %v2929
        %3573 = vmatprep.subr.bf16.mxu0 %v2938
        %3574 = vmatpush1.bf16.msra.mxu0 %v2937
        %3575 = vmatprep.subr.bf16.mxu0 %v2946
        %3576 = vmatpush1.bf16.msra.mxu0 %v2945
        %3577 = vmatprep.subr.bf16.mxu0 %v2954
        %3578 = vmatpush1.bf16.msra.mxu0 %v2953
        %3579 = vmatprep.subr.bf16.mxu0 %v2962
        %3580 = vmatpush1.bf16.msra.mxu0 %v2961
        %3581 = vmatprep.subr.bf16.mxu0 %v2970
        %3582 = vmatpush1.bf16.msra.mxu0 %v2969
        %3583 = vmatprep.subr.bf16.mxu0 %v2978
        %3584 = vmatpush1.bf16.msra.mxu0 %v2977
        %3585 = vmatprep.subr.bf16.mxu0 %v2986
        %3586 = vmatpush1.bf16.msra.mxu0 %v2985
        %3587 = vmatprep.subr.bf16.mxu0 %v2994
        %3588 = vmatpush1.bf16.msra.mxu0 %v2993
        %3589 = vmatprep.subr.bf16.mxu0 %v3002
        %3590 = vmatpush1.bf16.msra.mxu0 %v3001
        %3591 = vmatprep.subr.bf16.mxu0 %v3010
        %3592 = vmatpush1.bf16.msra.mxu0 %v3009
        %3593 = vmatprep.mubr.bf16.mxu0 %v1816
        %3594 = vmatmul.mubr.bf16.gmra.mrb[0].mxu0 %v1815
        %v3595 = vpop.f32.mrb[0].mxu0
        %v3596 = vadd.f32 %v2096, %v3595
        %v3597 = vpop.f32.mrb[0].mxu0
        %v3598 = vadd.f32 %v2100, %v3597
        %v3599 = vpop.f32.mrb[0].mxu0
        %v3600 = vpop.f32.mrb[0].mxu0
        %3601 = vdwg.mxu0
        %3602 = vmatprep.subr.bf16.mxu0 %v3018
        %3603 = vmatpush1.bf16.msra.mxu0 %v3017
        %3604 = vmatprep.subr.bf16.mxu0 %v3026
        %3605 = vmatpush1.bf16.msra.mxu0 %v3025
        %3606 = vmatprep.subr.bf16.mxu0 %v3034
        %3607 = vmatpush1.bf16.msra.mxu0 %v3033
        %3608 = vmatprep.subr.bf16.mxu0 %v3042
        %3609 = vmatpush1.bf16.msra.mxu0 %v3041
        %3610 = vmatprep.subr.bf16.mxu0 %v3050
        %3611 = vmatpush1.bf16.msra.mxu0 %v3049
        %3612 = vmatprep.subr.bf16.mxu0 %v3058
        %3613 = vmatpush1.bf16.msra.mxu0 %v3057
        %3614 = vmatprep.subr.bf16.mxu0 %v3066
        %3615 = vmatpush1.bf16.msra.mxu0 %v3065
        %3616 = vmatprep.subr.bf16.mxu0 %v3074
        %3617 = vmatpush1.bf16.msra.mxu0 %v3073
        %3618 = vmatprep.subr.bf16.mxu0 %v3082
        %3619 = vmatpush1.bf16.msra.mxu0 %v3081
        %3620 = vmatprep.subr.bf16.mxu0 %v3090
        %3621 = vmatpush1.bf16.msra.mxu0 %v3089
        %3622 = vmatprep.subr.bf16.mxu0 %v3098
        %3623 = vmatpush1.bf16.msra.mxu0 %v3097
        %3624 = vmatprep.subr.bf16.mxu0 %v3106
        %3625 = vmatpush1.bf16.msra.mxu0 %v3105
        %3626 = vmatprep.subr.bf16.mxu0 %v3114
        %3627 = vmatpush1.bf16.msra.mxu0 %v3113
        %3628 = vmatprep.subr.bf16.mxu0 %v3122
        %3629 = vmatpush1.bf16.msra.mxu0 %v3121
        %3630 = vmatprep.subr.bf16.mxu0 %v3130
        %3631 = vmatpush1.bf16.msra.mxu0 %v3129
        %3632 = vmatprep.subr.bf16.mxu0 %v3138
        %3633 = vmatpush1.bf16.msra.mxu0 %v3137
        %3634 = vmatprep.mubr.bf16.mxu0 %v1818
        %3635 = vmatmul.mubr.bf16.gmra.mrb[0].mxu0 %v1817
        %v3636 = vpop.f32.mrb[0].mxu0
        %v3637 = vadd.f32 %v3596, %v3636
        %v3638 = vpop.f32.mrb[0].mxu0
        %v3639 = vadd.f32 %v3598, %v3638
        %v3640 = vpop.f32.mrb[0].mxu0
        %v3641 = vpop.f32.mrb[0].mxu0
        %3642 = vdwg.mxu0
        %3643 = vmatprep.subr.bf16.mxu0 %v2892
        %3644 = vmatpush1.bf16.msra.mxu0 %v2891
        %3645 = vmatprep.subr.bf16.mxu0 %v2900
        %3646 = vmatpush1.bf16.msra.mxu0 %v2899
        %3647 = vmatprep.subr.bf16.mxu0 %v2908
        %3648 = vmatpush1.bf16.msra.mxu0 %v2907
        %3649 = vmatprep.subr.bf16.mxu0 %v2916
        %3650 = vmatpush1.bf16.msra.mxu0 %v2915
        %3651 = vmatprep.subr.bf16.mxu0 %v2924
        %3652 = vmatpush1.bf16.msra.mxu0 %v2923
        %3653 = vmatprep.subr.bf16.mxu0 %v2932
        %3654 = vmatpush1.bf16.msra.mxu0 %v2931
        %3655 = vmatprep.subr.bf16.mxu0 %v2940
        %3656 = vmatpush1.bf16.msra.mxu0 %v2939
        %3657 = vmatprep.subr.bf16.mxu0 %v2948
        %3658 = vmatpush1.bf16.msra.mxu0 %v2947
        %3659 = vmatprep.subr.bf16.mxu0 %v2956
        %3660 = vmatpush1.bf16.msra.mxu0 %v2955
        %3661 = vmatprep.subr.bf16.mxu0 %v2964
        %3662 = vmatpush1.bf16.msra.mxu0 %v2963
        %3663 = vmatprep.subr.bf16.mxu0 %v2972
        %3664 = vmatpush1.bf16.msra.mxu0 %v2971
        %3665 = vmatprep.subr.bf16.mxu0 %v2980
        %3666 = vmatpush1.bf16.msra.mxu0 %v2979
        %3667 = vmatprep.subr.bf16.mxu0 %v2988
        %3668 = vmatpush1.bf16.msra.mxu0 %v2987
        %3669 = vmatprep.subr.bf16.mxu0 %v2996
        %3670 = vmatpush1.bf16.msra.mxu0 %v2995
        %3671 = vmatprep.subr.bf16.mxu0 %v3004
        %3672 = vmatpush1.bf16.msra.mxu0 %v3003
        %3673 = vmatprep.subr.bf16.mxu0 %v3012
        %3674 = vmatpush1.bf16.msra.mxu0 %v3011
        %3675 = vmatprep.mubr.bf16.mxu0 %v1816
        %3676 = vmatmul.mubr.bf16.gmra.mrb[0].mxu0 %v1815
        %v3677 = vpop.f32.mrb[0].mxu0
        %v3678 = vadd.f32 %v2104, %v3677
        %v3679 = vpop.f32.mrb[0].mxu0
        %v3680 = vadd.f32 %v2108, %v3679
        %v3681 = vpop.f32.mrb[0].mxu0
        %v3682 = vpop.f32.mrb[0].mxu0
        %3683 = vdwg.mxu0
        %3684 = vmatprep.subr.bf16.mxu0 %v3020
        %3685 = vmatpush1.bf16.msra.mxu0 %v3019
        %3686 = vmatprep.subr.bf16.mxu0 %v3028
        %3687 = vmatpush1.bf16.msra.mxu0 %v3027
        %3688 = vmatprep.subr.bf16.mxu0 %v3036
        %3689 = vmatpush1.bf16.msra.mxu0 %v3035
        %3690 = vmatprep.subr.bf16.mxu0 %v3044
        %3691 = vmatpush1.bf16.msra.mxu0 %v3043
        %3692 = vmatprep.subr.bf16.mxu0 %v3052
        %3693 = vmatpush1.bf16.msra.mxu0 %v3051
        %3694 = vmatprep.subr.bf16.mxu0 %v3060
        %3695 = vmatpush1.bf16.msra.mxu0 %v3059
        %3696 = vmatprep.subr.bf16.mxu0 %v3068
        %3697 = vmatpush1.bf16.msra.mxu0 %v3067
        %3698 = vmatprep.subr.bf16.mxu0 %v3076
        %3699 = vmatpush1.bf16.msra.mxu0 %v3075
        %3700 = vmatprep.subr.bf16.mxu0 %v3084
        %3701 = vmatpush1.bf16.msra.mxu0 %v3083
        %3702 = vmatprep.subr.bf16.mxu0 %v3092
        %3703 = vmatpush1.bf16.msra.mxu0 %v3091
        %3704 = vmatprep.subr.bf16.mxu0 %v3100
        %3705 = vmatpush1.bf16.msra.mxu0 %v3099
        %3706 = vmatprep.subr.bf16.mxu0 %v3108
        %3707 = vmatpush1.bf16.msra.mxu0 %v3107
        %3708 = vmatprep.subr.bf16.mxu0 %v3116
        %3709 = vmatpush1.bf16.msra.mxu0 %v3115
        %3710 = vmatprep.subr.bf16.mxu0 %v3124
        %3711 = vmatpush1.bf16.msra.mxu0 %v3123
        %3712 = vmatprep.subr.bf16.mxu0 %v3132
        %3713 = vmatpush1.bf16.msra.mxu0 %v3131
        %3714 = vmatprep.subr.bf16.mxu0 %v3140
        %3715 = vmatpush1.bf16.msra.mxu0 %v3139
        %3716 = vmatprep.mubr.bf16.mxu0 %v1818
        %3717 = vmatmul.mubr.bf16.gmra.mrb[0].mxu0 %v1817
        %v3718 = vpop.f32.mrb[0].mxu0
        %v3719 = vadd.f32 %v3678, %v3718
        %v3720 = vpop.f32.mrb[0].mxu0
        %v3721 = vadd.f32 %v3680, %v3720
        %v3722 = vpop.f32.mrb[0].mxu0
        %v3723 = vpop.f32.mrb[0].mxu0
        %3724 = vdwg.mxu0
        %v3725 = vmax.f32 %v3473, 0.0
        %v3726 = vmax.f32 %v3475, 0.0
        %v3727 = vmax.f32 %v3555, 0.0
        %v3728 = vmax.f32 %v3557, 0.0
        %v3729 = vmax.f32 %v3637, 0.0
        %v3730 = vmax.f32 %v3639, 0.0
        %v3731 = vmax.f32 %v3719, 0.0
        %v3732 = vmax.f32 %v3721, 0.0
        %v3733 = vpack.c.bf16 %v3725, %v3725
        %v3734 = vpack.c.bf16 %v3726, %v3726
        %v3735 = vpack.c.bf16 %v3727, %v3727
        %v3736 = vpack.c.bf16 %v3728, %v3728
        %v3737 = vpack.c.bf16 %v3729, %v3729
        %v3738 = vpack.c.bf16 %v3730, %v3730
        %v3739 = vpack.c.bf16 %v3731, %v3731
        %v3740 = vpack.c.bf16 %v3732, %v3732
        %v3741 = vld [vmem:[%s495] sm:$0xff]
        %v3742 = vld [vmem:[%s495 + $0x8] sm:$0xff]
        %v3743 = vld [vmem:[%s495 + $0x10] sm:$0xff]
        %v3744 = vld [vmem:[%s495 + $0x18] sm:$0xff]
        %v3745 = vld [vmem:[%s495 + $0x20] sm:$0xff]
        %v3746 = vld [vmem:[%s495 + $0x28] sm:$0xff]
        %v3747 = vld [vmem:[%s495 + $0x30] sm:$0xff]
        %v3748 = vld [vmem:[%s495 + $0x38] sm:$0xff]
        %v3749 = vld [vmem:[%s495 + $0x40] sm:$0xff]
        %v3750 = vld [vmem:[%s495 + $0x48] sm:$0xff]
        %v3751 = vld [vmem:[%s495 + $0x50] sm:$0xff]
        %v3752 = vld [vmem:[%s495 + $0x58] sm:$0xff]
        %v3753 = vld [vmem:[%s495 + $0x60] sm:$0xff]
        %v3754 = vld [vmem:[%s495 + $0x68] sm:$0xff]
        %v3755 = vld [vmem:[%s495 + $0x70] sm:$0xff]
        %v3756 = vld [vmem:[%s495 + $0x78] sm:$0xff]
        %v3757 = vld [vmem:[%s495 + $0x80] sm:$0xff]
        %v3758 = vld [vmem:[%s495 + $0x88] sm:$0xff]
        %v3759 = vld [vmem:[%s495 + $0x90] sm:$0xff]
        %v3760 = vld [vmem:[%s495 + $0x98] sm:$0xff]
        %v3761 = vld [vmem:[%s495 + $0xa0] sm:$0xff]
        %v3762 = vld [vmem:[%s495 + $0xa8] sm:$0xff]
        %v3763 = vld [vmem:[%s495 + $0xb0] sm:$0xff]
        %v3764 = vld [vmem:[%s495 + $0xb8] sm:$0xff]
        %v3765 = vld [vmem:[%s495 + $0xc0] sm:$0xff]
        %v3766 = vld [vmem:[%s495 + $0xc8] sm:$0xff]
        %v3767 = vld [vmem:[%s495 + $0xd0] sm:$0xff]
        %v3768 = vld [vmem:[%s495 + $0xd8] sm:$0xff]
        %v3769 = vld [vmem:[%s495 + $0xe0] sm:$0xff]
        %v3770 = vld [vmem:[%s495 + $0xe8] sm:$0xff]
        %v3771 = vld [vmem:[%s495 + $0xf0] sm:$0xff]
        %v3772 = vld [vmem:[%s495 + $0xf8] sm:$0xff]
        %v3773 = vld [vmem:[%s495 + $0x100] sm:$0xff]
        %v3774 = vld [vmem:[%s495 + $0x108] sm:$0xff]
        %v3775 = vld [vmem:[%s495 + $0x110] sm:$0xff]
        %v3776 = vld [vmem:[%s495 + $0x118] sm:$0xff]
        %v3777 = vld [vmem:[%s495 + $0x120] sm:$0xff]
        %v3778 = vld [vmem:[%s495 + $0x128] sm:$0xff]
        %v3779 = vld [vmem:[%s495 + $0x130] sm:$0xff]
        %v3780 = vld [vmem:[%s495 + $0x138] sm:$0xff]
        %v3781 = vld [vmem:[%s495 + $0x140] sm:$0xff]
        %v3782 = vld [vmem:[%s495 + $0x148] sm:$0xff]
        %v3783 = vld [vmem:[%s495 + $0x150] sm:$0xff]
        %v3784 = vld [vmem:[%s495 + $0x158] sm:$0xff]
        %v3785 = vld [vmem:[%s495 + $0x160] sm:$0xff]
        %v3786 = vld [vmem:[%s495 + $0x168] sm:$0xff]
        %v3787 = vld [vmem:[%s495 + $0x170] sm:$0xff]
        %v3788 = vld [vmem:[%s495 + $0x178] sm:$0xff]
        %v3789 = vld [vmem:[%s495 + $0x180] sm:$0xff]
        %v3790 = vld [vmem:[%s495 + $0x188] sm:$0xff]
        %v3791 = vld [vmem:[%s495 + $0x190] sm:$0xff]
        %v3792 = vld [vmem:[%s495 + $0x198] sm:$0xff]
        %v3793 = vld [vmem:[%s495 + $0x1a0] sm:$0xff]
        %v3794 = vld [vmem:[%s495 + $0x1a8] sm:$0xff]
        %v3795 = vld [vmem:[%s495 + $0x1b0] sm:$0xff]
        %v3796 = vld [vmem:[%s495 + $0x1b8] sm:$0xff]
        %v3797 = vld [vmem:[%s495 + $0x1c0] sm:$0xff]
        %v3798 = vld [vmem:[%s495 + $0x1c8] sm:$0xff]
        %v3799 = vld [vmem:[%s495 + $0x1d0] sm:$0xff]
        %v3800 = vld [vmem:[%s495 + $0x1d8] sm:$0xff]
        %v3801 = vld [vmem:[%s495 + $0x1e0] sm:$0xff]
        %v3802 = vld [vmem:[%s495 + $0x1e8] sm:$0xff]
        %v3803 = vld [vmem:[%s495 + $0x1f0] sm:$0xff]
        %v3804 = vld [vmem:[%s495 + $0x1f8] sm:$0xff]
        %v3805 = vld [vmem:[%s495 + $0x200] sm:$0xff]
        %v3806 = vld [vmem:[%s495 + $0x208] sm:$0xff]
        %v3807 = vld [vmem:[%s495 + $0x210] sm:$0xff]
        %v3808 = vld [vmem:[%s495 + $0x218] sm:$0xff]
        %v3809 = vld [vmem:[%s495 + $0x220] sm:$0xff]
        %v3810 = vld [vmem:[%s495 + $0x228] sm:$0xff]
        %v3811 = vld [vmem:[%s495 + $0x230] sm:$0xff]
        %v3812 = vld [vmem:[%s495 + $0x238] sm:$0xff]
        %v3813 = vld [vmem:[%s495 + $0x240] sm:$0xff]
        %v3814 = vld [vmem:[%s495 + $0x248] sm:$0xff]
        %v3815 = vld [vmem:[%s495 + $0x250] sm:$0xff]
        %v3816 = vld [vmem:[%s495 + $0x258] sm:$0xff]
        %v3817 = vld [vmem:[%s495 + $0x260] sm:$0xff]
        %v3818 = vld [vmem:[%s495 + $0x268] sm:$0xff]
        %v3819 = vld [vmem:[%s495 + $0x270] sm:$0xff]
        %v3820 = vld [vmem:[%s495 + $0x278] sm:$0xff]
        %v3821 = vld [vmem:[%s495 + $0x280] sm:$0xff]
        %v3822 = vld [vmem:[%s495 + $0x288] sm:$0xff]
        %v3823 = vld [vmem:[%s495 + $0x290] sm:$0xff]
        %v3824 = vld [vmem:[%s495 + $0x298] sm:$0xff]
        %v3825 = vld [vmem:[%s495 + $0x2a0] sm:$0xff]
        %v3826 = vld [vmem:[%s495 + $0x2a8] sm:$0xff]
        %v3827 = vld [vmem:[%s495 + $0x2b0] sm:$0xff]
        %v3828 = vld [vmem:[%s495 + $0x2b8] sm:$0xff]
        %v3829 = vld [vmem:[%s495 + $0x2c0] sm:$0xff]
        %v3830 = vld [vmem:[%s495 + $0x2c8] sm:$0xff]
        %v3831 = vld [vmem:[%s495 + $0x2d0] sm:$0xff]
        %v3832 = vld [vmem:[%s495 + $0x2d8] sm:$0xff]
        %v3833 = vld [vmem:[%s495 + $0x2e0] sm:$0xff]
        %v3834 = vld [vmem:[%s495 + $0x2e8] sm:$0xff]
        %v3835 = vld [vmem:[%s495 + $0x2f0] sm:$0xff]
        %v3836 = vld [vmem:[%s495 + $0x2f8] sm:$0xff]
        %v3837 = vld [vmem:[%s495 + $0x300] sm:$0xff]
        %v3838 = vld [vmem:[%s495 + $0x308] sm:$0xff]
        %v3839 = vld [vmem:[%s495 + $0x310] sm:$0xff]
        %v3840 = vld [vmem:[%s495 + $0x318] sm:$0xff]
        %v3841 = vld [vmem:[%s495 + $0x320] sm:$0xff]
        %v3842 = vld [vmem:[%s495 + $0x328] sm:$0xff]
        %v3843 = vld [vmem:[%s495 + $0x330] sm:$0xff]
        %v3844 = vld [vmem:[%s495 + $0x338] sm:$0xff]
        %v3845 = vld [vmem:[%s495 + $0x340] sm:$0xff]
        %v3846 = vld [vmem:[%s495 + $0x348] sm:$0xff]
        %v3847 = vld [vmem:[%s495 + $0x350] sm:$0xff]
        %v3848 = vld [vmem:[%s495 + $0x358] sm:$0xff]
        %v3849 = vld [vmem:[%s495 + $0x360] sm:$0xff]
        %v3850 = vld [vmem:[%s495 + $0x368] sm:$0xff]
        %v3851 = vld [vmem:[%s495 + $0x370] sm:$0xff]
        %v3852 = vld [vmem:[%s495 + $0x378] sm:$0xff]
        %v3853 = vld [vmem:[%s495 + $0x380] sm:$0xff]
        %v3854 = vld [vmem:[%s495 + $0x388] sm:$0xff]
        %v3855 = vld [vmem:[%s495 + $0x390] sm:$0xff]
        %v3856 = vld [vmem:[%s495 + $0x398] sm:$0xff]
        %v3857 = vld [vmem:[%s495 + $0x3a0] sm:$0xff]
        %v3858 = vld [vmem:[%s495 + $0x3a8] sm:$0xff]
        %v3859 = vld [vmem:[%s495 + $0x3b0] sm:$0xff]
        %v3860 = vld [vmem:[%s495 + $0x3b8] sm:$0xff]
        %v3861 = vld [vmem:[%s495 + $0x3c0] sm:$0xff]
        %v3862 = vld [vmem:[%s495 + $0x3c8] sm:$0xff]
        %v3863 = vld [vmem:[%s495 + $0x3d0] sm:$0xff]
        %v3864 = vld [vmem:[%s495 + $0x3d8] sm:$0xff]
        %v3865 = vld [vmem:[%s495 + $0x3e0] sm:$0xff]
        %v3866 = vld [vmem:[%s495 + $0x3e8] sm:$0xff]
        %v3867 = vld [vmem:[%s495 + $0x3f0] sm:$0xff]
        %v3868 = vld [vmem:[%s495 + $0x3f8] sm:$0xff]
        %v3869 = vld [vmem:[%s495 + $0x400] sm:$0xff]
        %v3870 = vld [vmem:[%s495 + $0x408] sm:$0xff]
        %v3871 = vld [vmem:[%s495 + $0x410] sm:$0xff]
        %v3872 = vld [vmem:[%s495 + $0x418] sm:$0xff]
        %v3873 = vld [vmem:[%s495 + $0x420] sm:$0xff]
        %v3874 = vld [vmem:[%s495 + $0x428] sm:$0xff]
        %v3875 = vld [vmem:[%s495 + $0x430] sm:$0xff]
        %v3876 = vld [vmem:[%s495 + $0x438] sm:$0xff]
        %v3877 = vld [vmem:[%s495 + $0x440] sm:$0xff]
        %v3878 = vld [vmem:[%s495 + $0x448] sm:$0xff]
        %v3879 = vld [vmem:[%s495 + $0x450] sm:$0xff]
        %v3880 = vld [vmem:[%s495 + $0x458] sm:$0xff]
        %v3881 = vld [vmem:[%s495 + $0x460] sm:$0xff]
        %v3882 = vld [vmem:[%s495 + $0x468] sm:$0xff]
        %v3883 = vld [vmem:[%s495 + $0x470] sm:$0xff]
        %v3884 = vld [vmem:[%s495 + $0x478] sm:$0xff]
        %v3885 = vld [vmem:[%s495 + $0x480] sm:$0xff]
        %v3886 = vld [vmem:[%s495 + $0x488] sm:$0xff]
        %v3887 = vld [vmem:[%s495 + $0x490] sm:$0xff]
        %v3888 = vld [vmem:[%s495 + $0x498] sm:$0xff]
        %v3889 = vld [vmem:[%s495 + $0x4a0] sm:$0xff]
        %v3890 = vld [vmem:[%s495 + $0x4a8] sm:$0xff]
        %v3891 = vld [vmem:[%s495 + $0x4b0] sm:$0xff]
        %v3892 = vld [vmem:[%s495 + $0x4b8] sm:$0xff]
        %v3893 = vld [vmem:[%s495 + $0x4c0] sm:$0xff]
        %v3894 = vld [vmem:[%s495 + $0x4c8] sm:$0xff]
        %v3895 = vld [vmem:[%s495 + $0x4d0] sm:$0xff]
        %v3896 = vld [vmem:[%s495 + $0x4d8] sm:$0xff]
        %v3897 = vld [vmem:[%s495 + $0x4e0] sm:$0xff]
        %v3898 = vld [vmem:[%s495 + $0x4e8] sm:$0xff]
        %v3899 = vld [vmem:[%s495 + $0x4f0] sm:$0xff]
        %v3900 = vld [vmem:[%s495 + $0x4f8] sm:$0xff]
        %v3901 = vld [vmem:[%s495 + $0x500] sm:$0xff]
        %v3902 = vld [vmem:[%s495 + $0x508] sm:$0xff]
        %v3903 = vld [vmem:[%s495 + $0x510] sm:$0xff]
        %v3904 = vld [vmem:[%s495 + $0x518] sm:$0xff]
        %v3905 = vld [vmem:[%s495 + $0x520] sm:$0xff]
        %v3906 = vld [vmem:[%s495 + $0x528] sm:$0xff]
        %v3907 = vld [vmem:[%s495 + $0x530] sm:$0xff]
        %v3908 = vld [vmem:[%s495 + $0x538] sm:$0xff]
        %v3909 = vld [vmem:[%s495 + $0x540] sm:$0xff]
        %v3910 = vld [vmem:[%s495 + $0x548] sm:$0xff]
        %v3911 = vld [vmem:[%s495 + $0x550] sm:$0xff]
        %v3912 = vld [vmem:[%s495 + $0x558] sm:$0xff]
        %v3913 = vld [vmem:[%s495 + $0x560] sm:$0xff]
        %v3914 = vld [vmem:[%s495 + $0x568] sm:$0xff]
        %v3915 = vld [vmem:[%s495 + $0x570] sm:$0xff]
        %v3916 = vld [vmem:[%s495 + $0x578] sm:$0xff]
        %v3917 = vld [vmem:[%s495 + $0x580] sm:$0xff]
        %v3918 = vld [vmem:[%s495 + $0x588] sm:$0xff]
        %v3919 = vld [vmem:[%s495 + $0x590] sm:$0xff]
        %v3920 = vld [vmem:[%s495 + $0x598] sm:$0xff]
        %v3921 = vld [vmem:[%s495 + $0x5a0] sm:$0xff]
        %v3922 = vld [vmem:[%s495 + $0x5a8] sm:$0xff]
        %v3923 = vld [vmem:[%s495 + $0x5b0] sm:$0xff]
        %v3924 = vld [vmem:[%s495 + $0x5b8] sm:$0xff]
        %v3925 = vld [vmem:[%s495 + $0x5c0] sm:$0xff]
        %v3926 = vld [vmem:[%s495 + $0x5c8] sm:$0xff]
        %v3927 = vld [vmem:[%s495 + $0x5d0] sm:$0xff]
        %v3928 = vld [vmem:[%s495 + $0x5d8] sm:$0xff]
        %v3929 = vld [vmem:[%s495 + $0x5e0] sm:$0xff]
        %v3930 = vld [vmem:[%s495 + $0x5e8] sm:$0xff]
        %v3931 = vld [vmem:[%s495 + $0x5f0] sm:$0xff]
        %v3932 = vld [vmem:[%s495 + $0x5f8] sm:$0xff]
        %v3933 = vld [vmem:[%s495 + $0x600] sm:$0xff]
        %v3934 = vld [vmem:[%s495 + $0x608] sm:$0xff]
        %v3935 = vld [vmem:[%s495 + $0x610] sm:$0xff]
        %v3936 = vld [vmem:[%s495 + $0x618] sm:$0xff]
        %v3937 = vld [vmem:[%s495 + $0x620] sm:$0xff]
        %v3938 = vld [vmem:[%s495 + $0x628] sm:$0xff]
        %v3939 = vld [vmem:[%s495 + $0x630] sm:$0xff]
        %v3940 = vld [vmem:[%s495 + $0x638] sm:$0xff]
        %v3941 = vld [vmem:[%s495 + $0x640] sm:$0xff]
        %v3942 = vld [vmem:[%s495 + $0x648] sm:$0xff]
        %v3943 = vld [vmem:[%s495 + $0x650] sm:$0xff]
        %v3944 = vld [vmem:[%s495 + $0x658] sm:$0xff]
        %v3945 = vld [vmem:[%s495 + $0x660] sm:$0xff]
        %v3946 = vld [vmem:[%s495 + $0x668] sm:$0xff]
        %v3947 = vld [vmem:[%s495 + $0x670] sm:$0xff]
        %v3948 = vld [vmem:[%s495 + $0x678] sm:$0xff]
        %v3949 = vld [vmem:[%s495 + $0x680] sm:$0xff]
        %v3950 = vld [vmem:[%s495 + $0x688] sm:$0xff]
        %v3951 = vld [vmem:[%s495 + $0x690] sm:$0xff]
        %v3952 = vld [vmem:[%s495 + $0x698] sm:$0xff]
        %v3953 = vld [vmem:[%s495 + $0x6a0] sm:$0xff]
        %v3954 = vld [vmem:[%s495 + $0x6a8] sm:$0xff]
        %v3955 = vld [vmem:[%s495 + $0x6b0] sm:$0xff]
        %v3956 = vld [vmem:[%s495 + $0x6b8] sm:$0xff]
        %v3957 = vld [vmem:[%s495 + $0x6c0] sm:$0xff]
        %v3958 = vld [vmem:[%s495 + $0x6c8] sm:$0xff]
        %v3959 = vld [vmem:[%s495 + $0x6d0] sm:$0xff]
        %v3960 = vld [vmem:[%s495 + $0x6d8] sm:$0xff]
        %v3961 = vld [vmem:[%s495 + $0x6e0] sm:$0xff]
        %v3962 = vld [vmem:[%s495 + $0x6e8] sm:$0xff]
        %v3963 = vld [vmem:[%s495 + $0x6f0] sm:$0xff]
        %v3964 = vld [vmem:[%s495 + $0x6f8] sm:$0xff]
        %v3965 = vld [vmem:[%s495 + $0x700] sm:$0xff]
        %v3966 = vld [vmem:[%s495 + $0x708] sm:$0xff]
        %v3967 = vld [vmem:[%s495 + $0x710] sm:$0xff]
        %v3968 = vld [vmem:[%s495 + $0x718] sm:$0xff]
        %v3969 = vld [vmem:[%s495 + $0x720] sm:$0xff]
        %v3970 = vld [vmem:[%s495 + $0x728] sm:$0xff]
        %v3971 = vld [vmem:[%s495 + $0x730] sm:$0xff]
        %v3972 = vld [vmem:[%s495 + $0x738] sm:$0xff]
        %v3973 = vld [vmem:[%s495 + $0x740] sm:$0xff]
        %v3974 = vld [vmem:[%s495 + $0x748] sm:$0xff]
        %v3975 = vld [vmem:[%s495 + $0x750] sm:$0xff]
        %v3976 = vld [vmem:[%s495 + $0x758] sm:$0xff]
        %v3977 = vld [vmem:[%s495 + $0x760] sm:$0xff]
        %v3978 = vld [vmem:[%s495 + $0x768] sm:$0xff]
        %v3979 = vld [vmem:[%s495 + $0x770] sm:$0xff]
        %v3980 = vld [vmem:[%s495 + $0x778] sm:$0xff]
        %v3981 = vld [vmem:[%s495 + $0x780] sm:$0xff]
        %v3982 = vld [vmem:[%s495 + $0x788] sm:$0xff]
        %v3983 = vld [vmem:[%s495 + $0x790] sm:$0xff]
        %v3984 = vld [vmem:[%s495 + $0x798] sm:$0xff]
        %v3985 = vld [vmem:[%s495 + $0x7a0] sm:$0xff]
        %v3986 = vld [vmem:[%s495 + $0x7a8] sm:$0xff]
        %v3987 = vld [vmem:[%s495 + $0x7b0] sm:$0xff]
        %v3988 = vld [vmem:[%s495 + $0x7b8] sm:$0xff]
        %v3989 = vld [vmem:[%s495 + $0x7c0] sm:$0xff]
        %v3990 = vld [vmem:[%s495 + $0x7c8] sm:$0xff]
        %v3991 = vld [vmem:[%s495 + $0x7d0] sm:$0xff]
        %v3992 = vld [vmem:[%s495 + $0x7d8] sm:$0xff]
        %v3993 = vld [vmem:[%s495 + $0x7e0] sm:$0xff]
        %v3994 = vld [vmem:[%s495 + $0x7e8] sm:$0xff]
        %v3995 = vld [vmem:[%s495 + $0x7f0] sm:$0xff]
        %v3996 = vld [vmem:[%s495 + $0x7f8] sm:$0xff]
        %v3997 = vlaneseq
        %v3998 = vshrl.u32 %v3997, 7
        %v3999 = vsub.s32 3, %v3998
        %v4000 = vrot.slane %v788, %v3999
        %v4001 = vlaneseq
        %v4002 = vshrl.u32 %v4001, 7
        %v4003 = vsub.s32 3, %v4002
        %v4004 = vrot.slane %v789, %v4003
        %v4005 = vlaneseq
        %v4006 = vshrl.u32 %v4005, 7
        %v4007 = vsub.s32 3, %v4006
        %v4008 = vrot.slane %v790, %v4007
        %v4009 = vlaneseq
        %v4010 = vshrl.u32 %v4009, 7
        %v4011 = vsub.s32 3, %v4010
        %v4012 = vrot.slane %v791, %v4011
        %v4269 = vunpack.c.l.b16 %v3741
        %v4270 = vunpack.c.h.b16 %v3741
        %v4271 = vunpack.c.l.b16 %v3742
        %v4272 = vunpack.c.h.b16 %v3742
        %v4273 = vunpack.c.l.b16 %v3743
        %v4274 = vunpack.c.h.b16 %v3743
        %v4275 = vunpack.c.l.b16 %v3744
        %v4276 = vunpack.c.h.b16 %v3744
        %v4277 = vunpack.c.l.b16 %v3745
        %v4278 = vunpack.c.h.b16 %v3745
        %v4279 = vunpack.c.l.b16 %v3746
        %v4280 = vunpack.c.h.b16 %v3746
        %v4281 = vunpack.c.l.b16 %v3747
        %v4282 = vunpack.c.h.b16 %v3747
        %v4283 = vunpack.c.l.b16 %v3748
        %v4284 = vunpack.c.h.b16 %v3748
        %v4285 = vunpack.c.l.b16 %v3749
        %v4286 = vunpack.c.h.b16 %v3749
        %v4287 = vunpack.c.l.b16 %v3750
        %v4288 = vunpack.c.h.b16 %v3750
        %v4289 = vunpack.c.l.b16 %v3751
        %v4290 = vunpack.c.h.b16 %v3751
        %v4291 = vunpack.c.l.b16 %v3752
        %v4292 = vunpack.c.h.b16 %v3752
        %v4293 = vunpack.c.l.b16 %v3753
        %v4294 = vunpack.c.h.b16 %v3753
        %v4295 = vunpack.c.l.b16 %v3754
        %v4296 = vunpack.c.h.b16 %v3754
        %v4297 = vunpack.c.l.b16 %v3755
        %v4298 = vunpack.c.h.b16 %v3755
        %v4299 = vunpack.c.l.b16 %v3756
        %v4300 = vunpack.c.h.b16 %v3756
        %v4301 = vunpack.c.l.b16 %v3757
        %v4302 = vunpack.c.h.b16 %v3757
        %v4303 = vunpack.c.l.b16 %v3758
        %v4304 = vunpack.c.h.b16 %v3758
        %v4305 = vunpack.c.l.b16 %v3759
        %v4306 = vunpack.c.h.b16 %v3759
        %v4307 = vunpack.c.l.b16 %v3760
        %v4308 = vunpack.c.h.b16 %v3760
        %v4309 = vunpack.c.l.b16 %v3761
        %v4310 = vunpack.c.h.b16 %v3761
        %v4311 = vunpack.c.l.b16 %v3762
        %v4312 = vunpack.c.h.b16 %v3762
        %v4313 = vunpack.c.l.b16 %v3763
        %v4314 = vunpack.c.h.b16 %v3763
        %v4315 = vunpack.c.l.b16 %v3764
        %v4316 = vunpack.c.h.b16 %v3764
        %v4317 = vunpack.c.l.b16 %v3765
        %v4318 = vunpack.c.h.b16 %v3765
        %v4319 = vunpack.c.l.b16 %v3766
        %v4320 = vunpack.c.h.b16 %v3766
        %v4321 = vunpack.c.l.b16 %v3767
        %v4322 = vunpack.c.h.b16 %v3767
        %v4323 = vunpack.c.l.b16 %v3768
        %v4324 = vunpack.c.h.b16 %v3768
        %v4325 = vunpack.c.l.b16 %v3769
        %v4326 = vunpack.c.h.b16 %v3769
        %v4327 = vunpack.c.l.b16 %v3770
        %v4328 = vunpack.c.h.b16 %v3770
        %v4329 = vunpack.c.l.b16 %v3771
        %v4330 = vunpack.c.h.b16 %v3771
        %v4331 = vunpack.c.l.b16 %v3772
        %v4332 = vunpack.c.h.b16 %v3772
        %v4333 = vunpack.c.l.b16 %v3773
        %v4334 = vunpack.c.h.b16 %v3773
        %v4335 = vunpack.c.l.b16 %v3774
        %v4336 = vunpack.c.h.b16 %v3774
        %v4337 = vunpack.c.l.b16 %v3775
        %v4338 = vunpack.c.h.b16 %v3775
        %v4339 = vunpack.c.l.b16 %v3776
        %v4340 = vunpack.c.h.b16 %v3776
        %v4341 = vunpack.c.l.b16 %v3777
        %v4342 = vunpack.c.h.b16 %v3777
        %v4343 = vunpack.c.l.b16 %v3778
        %v4344 = vunpack.c.h.b16 %v3778
        %v4345 = vunpack.c.l.b16 %v3779
        %v4346 = vunpack.c.h.b16 %v3779
        %v4347 = vunpack.c.l.b16 %v3780
        %v4348 = vunpack.c.h.b16 %v3780
        %v4349 = vunpack.c.l.b16 %v3781
        %v4350 = vunpack.c.h.b16 %v3781
        %v4351 = vunpack.c.l.b16 %v3782
        %v4352 = vunpack.c.h.b16 %v3782
        %v4353 = vunpack.c.l.b16 %v3783
        %v4354 = vunpack.c.h.b16 %v3783
        %v4355 = vunpack.c.l.b16 %v3784
        %v4356 = vunpack.c.h.b16 %v3784
        %v4357 = vunpack.c.l.b16 %v3785
        %v4358 = vunpack.c.h.b16 %v3785
        %v4359 = vunpack.c.l.b16 %v3786
        %v4360 = vunpack.c.h.b16 %v3786
        %v4361 = vunpack.c.l.b16 %v3787
        %v4362 = vunpack.c.h.b16 %v3787
        %v4363 = vunpack.c.l.b16 %v3788
        %v4364 = vunpack.c.h.b16 %v3788
        %v4365 = vunpack.c.l.b16 %v3789
        %v4366 = vunpack.c.h.b16 %v3789
        %v4367 = vunpack.c.l.b16 %v3790
        %v4368 = vunpack.c.h.b16 %v3790
        %v4369 = vunpack.c.l.b16 %v3791
        %v4370 = vunpack.c.h.b16 %v3791
        %v4371 = vunpack.c.l.b16 %v3792
        %v4372 = vunpack.c.h.b16 %v3792
        %v4373 = vunpack.c.l.b16 %v3793
        %v4374 = vunpack.c.h.b16 %v3793
        %v4375 = vunpack.c.l.b16 %v3794
        %v4376 = vunpack.c.h.b16 %v3794
        %v4377 = vunpack.c.l.b16 %v3795
        %v4378 = vunpack.c.h.b16 %v3795
        %v4379 = vunpack.c.l.b16 %v3796
        %v4380 = vunpack.c.h.b16 %v3796
        %v4381 = vunpack.c.l.b16 %v3797
        %v4382 = vunpack.c.h.b16 %v3797
        %v4383 = vunpack.c.l.b16 %v3798
        %v4384 = vunpack.c.h.b16 %v3798
        %v4385 = vunpack.c.l.b16 %v3799
        %v4386 = vunpack.c.h.b16 %v3799
        %v4387 = vunpack.c.l.b16 %v3800
        %v4388 = vunpack.c.h.b16 %v3800
        %v4389 = vunpack.c.l.b16 %v3801
        %v4390 = vunpack.c.h.b16 %v3801
        %v4391 = vunpack.c.l.b16 %v3802
        %v4392 = vunpack.c.h.b16 %v3802
        %v4393 = vunpack.c.l.b16 %v3803
        %v4394 = vunpack.c.h.b16 %v3803
        %v4395 = vunpack.c.l.b16 %v3804
        %v4396 = vunpack.c.h.b16 %v3804
        %v4397 = vunpack.c.l.b16 %v3805
        %v4398 = vunpack.c.h.b16 %v3805
        %v4399 = vunpack.c.l.b16 %v3806
        %v4400 = vunpack.c.h.b16 %v3806
        %v4401 = vunpack.c.l.b16 %v3807
        %v4402 = vunpack.c.h.b16 %v3807
        %v4403 = vunpack.c.l.b16 %v3808
        %v4404 = vunpack.c.h.b16 %v3808
        %v4405 = vunpack.c.l.b16 %v3809
        %v4406 = vunpack.c.h.b16 %v3809
        %v4407 = vunpack.c.l.b16 %v3810
        %v4408 = vunpack.c.h.b16 %v3810
        %v4409 = vunpack.c.l.b16 %v3811
        %v4410 = vunpack.c.h.b16 %v3811
        %v4411 = vunpack.c.l.b16 %v3812
        %v4412 = vunpack.c.h.b16 %v3812
        %v4413 = vunpack.c.l.b16 %v3813
        %v4414 = vunpack.c.h.b16 %v3813
        %v4415 = vunpack.c.l.b16 %v3814
        %v4416 = vunpack.c.h.b16 %v3814
        %v4417 = vunpack.c.l.b16 %v3815
        %v4418 = vunpack.c.h.b16 %v3815
        %v4419 = vunpack.c.l.b16 %v3816
        %v4420 = vunpack.c.h.b16 %v3816
        %v4421 = vunpack.c.l.b16 %v3817
        %v4422 = vunpack.c.h.b16 %v3817
        %v4423 = vunpack.c.l.b16 %v3818
        %v4424 = vunpack.c.h.b16 %v3818
        %v4425 = vunpack.c.l.b16 %v3819
        %v4426 = vunpack.c.h.b16 %v3819
        %v4427 = vunpack.c.l.b16 %v3820
        %v4428 = vunpack.c.h.b16 %v3820
        %v4429 = vunpack.c.l.b16 %v3821
        %v4430 = vunpack.c.h.b16 %v3821
        %v4431 = vunpack.c.l.b16 %v3822
        %v4432 = vunpack.c.h.b16 %v3822
        %v4433 = vunpack.c.l.b16 %v3823
        %v4434 = vunpack.c.h.b16 %v3823
        %v4435 = vunpack.c.l.b16 %v3824
        %v4436 = vunpack.c.h.b16 %v3824
        %v4437 = vunpack.c.l.b16 %v3825
        %v4438 = vunpack.c.h.b16 %v3825
        %v4439 = vunpack.c.l.b16 %v3826
        %v4440 = vunpack.c.h.b16 %v3826
        %v4441 = vunpack.c.l.b16 %v3827
        %v4442 = vunpack.c.h.b16 %v3827
        %v4443 = vunpack.c.l.b16 %v3828
        %v4444 = vunpack.c.h.b16 %v3828
        %v4445 = vunpack.c.l.b16 %v3829
        %v4446 = vunpack.c.h.b16 %v3829
        %v4447 = vunpack.c.l.b16 %v3830
        %v4448 = vunpack.c.h.b16 %v3830
        %v4449 = vunpack.c.l.b16 %v3831
        %v4450 = vunpack.c.h.b16 %v3831
        %v4451 = vunpack.c.l.b16 %v3832
        %v4452 = vunpack.c.h.b16 %v3832
        %v4453 = vunpack.c.l.b16 %v3833
        %v4454 = vunpack.c.h.b16 %v3833
        %v4455 = vunpack.c.l.b16 %v3834
        %v4456 = vunpack.c.h.b16 %v3834
        %v4457 = vunpack.c.l.b16 %v3835
        %v4458 = vunpack.c.h.b16 %v3835
        %v4459 = vunpack.c.l.b16 %v3836
        %v4460 = vunpack.c.h.b16 %v3836
        %v4461 = vunpack.c.l.b16 %v3837
        %v4462 = vunpack.c.h.b16 %v3837
        %v4463 = vunpack.c.l.b16 %v3838
        %v4464 = vunpack.c.h.b16 %v3838
        %v4465 = vunpack.c.l.b16 %v3839
        %v4466 = vunpack.c.h.b16 %v3839
        %v4467 = vunpack.c.l.b16 %v3840
        %v4468 = vunpack.c.h.b16 %v3840
        %v4469 = vunpack.c.l.b16 %v3841
        %v4470 = vunpack.c.h.b16 %v3841
        %v4471 = vunpack.c.l.b16 %v3842
        %v4472 = vunpack.c.h.b16 %v3842
        %v4473 = vunpack.c.l.b16 %v3843
        %v4474 = vunpack.c.h.b16 %v3843
        %v4475 = vunpack.c.l.b16 %v3844
        %v4476 = vunpack.c.h.b16 %v3844
        %v4477 = vunpack.c.l.b16 %v3845
        %v4478 = vunpack.c.h.b16 %v3845
        %v4479 = vunpack.c.l.b16 %v3846
        %v4480 = vunpack.c.h.b16 %v3846
        %v4481 = vunpack.c.l.b16 %v3847
        %v4482 = vunpack.c.h.b16 %v3847
        %v4483 = vunpack.c.l.b16 %v3848
        %v4484 = vunpack.c.h.b16 %v3848
        %v4485 = vunpack.c.l.b16 %v3849
        %v4486 = vunpack.c.h.b16 %v3849
        %v4487 = vunpack.c.l.b16 %v3850
        %v4488 = vunpack.c.h.b16 %v3850
        %v4489 = vunpack.c.l.b16 %v3851
        %v4490 = vunpack.c.h.b16 %v3851
        %v4491 = vunpack.c.l.b16 %v3852
        %v4492 = vunpack.c.h.b16 %v3852
        %v4493 = vunpack.c.l.b16 %v3853
        %v4494 = vunpack.c.h.b16 %v3853
        %v4495 = vunpack.c.l.b16 %v3854
        %v4496 = vunpack.c.h.b16 %v3854
        %v4497 = vunpack.c.l.b16 %v3855
        %v4498 = vunpack.c.h.b16 %v3855
        %v4499 = vunpack.c.l.b16 %v3856
        %v4500 = vunpack.c.h.b16 %v3856
        %v4501 = vunpack.c.l.b16 %v3857
        %v4502 = vunpack.c.h.b16 %v3857
        %v4503 = vunpack.c.l.b16 %v3858
        %v4504 = vunpack.c.h.b16 %v3858
        %v4505 = vunpack.c.l.b16 %v3859
        %v4506 = vunpack.c.h.b16 %v3859
        %v4507 = vunpack.c.l.b16 %v3860
        %v4508 = vunpack.c.h.b16 %v3860
        %v4509 = vunpack.c.l.b16 %v3861
        %v4510 = vunpack.c.h.b16 %v3861
        %v4511 = vunpack.c.l.b16 %v3862
        %v4512 = vunpack.c.h.b16 %v3862
        %v4513 = vunpack.c.l.b16 %v3863
        %v4514 = vunpack.c.h.b16 %v3863
        %v4515 = vunpack.c.l.b16 %v3864
        %v4516 = vunpack.c.h.b16 %v3864
        %v4517 = vunpack.c.l.b16 %v3865
        %v4518 = vunpack.c.h.b16 %v3865
        %v4519 = vunpack.c.l.b16 %v3866
        %v4520 = vunpack.c.h.b16 %v3866
        %v4521 = vunpack.c.l.b16 %v3867
        %v4522 = vunpack.c.h.b16 %v3867
        %v4523 = vunpack.c.l.b16 %v3868
        %v4524 = vunpack.c.h.b16 %v3868
        %v4525 = vunpack.c.l.b16 %v3869
        %v4526 = vunpack.c.h.b16 %v3869
        %v4527 = vunpack.c.l.b16 %v3870
        %v4528 = vunpack.c.h.b16 %v3870
        %v4529 = vunpack.c.l.b16 %v3871
        %v4530 = vunpack.c.h.b16 %v3871
        %v4531 = vunpack.c.l.b16 %v3872
        %v4532 = vunpack.c.h.b16 %v3872
        %v4533 = vunpack.c.l.b16 %v3873
        %v4534 = vunpack.c.h.b16 %v3873
        %v4535 = vunpack.c.l.b16 %v3874
        %v4536 = vunpack.c.h.b16 %v3874
        %v4537 = vunpack.c.l.b16 %v3875
        %v4538 = vunpack.c.h.b16 %v3875
        %v4539 = vunpack.c.l.b16 %v3876
        %v4540 = vunpack.c.h.b16 %v3876
        %v4541 = vunpack.c.l.b16 %v3877
        %v4542 = vunpack.c.h.b16 %v3877
        %v4543 = vunpack.c.l.b16 %v3878
        %v4544 = vunpack.c.h.b16 %v3878
        %v4545 = vunpack.c.l.b16 %v3879
        %v4546 = vunpack.c.h.b16 %v3879
        %v4547 = vunpack.c.l.b16 %v3880
        %v4548 = vunpack.c.h.b16 %v3880
        %v4549 = vunpack.c.l.b16 %v3881
        %v4550 = vunpack.c.h.b16 %v3881
        %v4551 = vunpack.c.l.b16 %v3882
        %v4552 = vunpack.c.h.b16 %v3882
        %v4553 = vunpack.c.l.b16 %v3883
        %v4554 = vunpack.c.h.b16 %v3883
        %v4555 = vunpack.c.l.b16 %v3884
        %v4556 = vunpack.c.h.b16 %v3884
        %v4557 = vunpack.c.l.b16 %v3885
        %v4558 = vunpack.c.h.b16 %v3885
        %v4559 = vunpack.c.l.b16 %v3886
        %v4560 = vunpack.c.h.b16 %v3886
        %v4561 = vunpack.c.l.b16 %v3887
        %v4562 = vunpack.c.h.b16 %v3887
        %v4563 = vunpack.c.l.b16 %v3888
        %v4564 = vunpack.c.h.b16 %v3888
        %v4565 = vunpack.c.l.b16 %v3889
        %v4566 = vunpack.c.h.b16 %v3889
        %v4567 = vunpack.c.l.b16 %v3890
        %v4568 = vunpack.c.h.b16 %v3890
        %v4569 = vunpack.c.l.b16 %v3891
        %v4570 = vunpack.c.h.b16 %v3891
        %v4571 = vunpack.c.l.b16 %v3892
        %v4572 = vunpack.c.h.b16 %v3892
        %v4573 = vunpack.c.l.b16 %v3893
        %v4574 = vunpack.c.h.b16 %v3893
        %v4575 = vunpack.c.l.b16 %v3894
        %v4576 = vunpack.c.h.b16 %v3894
        %v4577 = vunpack.c.l.b16 %v3895
        %v4578 = vunpack.c.h.b16 %v3895
        %v4579 = vunpack.c.l.b16 %v3896
        %v4580 = vunpack.c.h.b16 %v3896
        %v4581 = vunpack.c.l.b16 %v3897
        %v4582 = vunpack.c.h.b16 %v3897
        %v4583 = vunpack.c.l.b16 %v3898
        %v4584 = vunpack.c.h.b16 %v3898
        %v4585 = vunpack.c.l.b16 %v3899
        %v4586 = vunpack.c.h.b16 %v3899
        %v4587 = vunpack.c.l.b16 %v3900
        %v4588 = vunpack.c.h.b16 %v3900
        %v4589 = vunpack.c.l.b16 %v3901
        %v4590 = vunpack.c.h.b16 %v3901
        %v4591 = vunpack.c.l.b16 %v3902
        %v4592 = vunpack.c.h.b16 %v3902
        %v4593 = vunpack.c.l.b16 %v3903
        %v4594 = vunpack.c.h.b16 %v3903
        %v4595 = vunpack.c.l.b16 %v3904
        %v4596 = vunpack.c.h.b16 %v3904
        %v4597 = vunpack.c.l.b16 %v3905
        %v4598 = vunpack.c.h.b16 %v3905
        %v4599 = vunpack.c.l.b16 %v3906
        %v4600 = vunpack.c.h.b16 %v3906
        %v4601 = vunpack.c.l.b16 %v3907
        %v4602 = vunpack.c.h.b16 %v3907
        %v4603 = vunpack.c.l.b16 %v3908
        %v4604 = vunpack.c.h.b16 %v3908
        %v4605 = vunpack.c.l.b16 %v3909
        %v4606 = vunpack.c.h.b16 %v3909
        %v4607 = vunpack.c.l.b16 %v3910
        %v4608 = vunpack.c.h.b16 %v3910
        %v4609 = vunpack.c.l.b16 %v3911
        %v4610 = vunpack.c.h.b16 %v3911
        %v4611 = vunpack.c.l.b16 %v3912
        %v4612 = vunpack.c.h.b16 %v3912
        %v4613 = vunpack.c.l.b16 %v3913
        %v4614 = vunpack.c.h.b16 %v3913
        %v4615 = vunpack.c.l.b16 %v3914
        %v4616 = vunpack.c.h.b16 %v3914
        %v4617 = vunpack.c.l.b16 %v3915
        %v4618 = vunpack.c.h.b16 %v3915
        %v4619 = vunpack.c.l.b16 %v3916
        %v4620 = vunpack.c.h.b16 %v3916
        %v4621 = vunpack.c.l.b16 %v3917
        %v4622 = vunpack.c.h.b16 %v3917
        %v4623 = vunpack.c.l.b16 %v3918
        %v4624 = vunpack.c.h.b16 %v3918
        %v4625 = vunpack.c.l.b16 %v3919
        %v4626 = vunpack.c.h.b16 %v3919
        %v4627 = vunpack.c.l.b16 %v3920
        %v4628 = vunpack.c.h.b16 %v3920
        %v4629 = vunpack.c.l.b16 %v3921
        %v4630 = vunpack.c.h.b16 %v3921
        %v4631 = vunpack.c.l.b16 %v3922
        %v4632 = vunpack.c.h.b16 %v3922
        %v4633 = vunpack.c.l.b16 %v3923
        %v4634 = vunpack.c.h.b16 %v3923
        %v4635 = vunpack.c.l.b16 %v3924
        %v4636 = vunpack.c.h.b16 %v3924
        %v4637 = vunpack.c.l.b16 %v3925
        %v4638 = vunpack.c.h.b16 %v3925
        %v4639 = vunpack.c.l.b16 %v3926
        %v4640 = vunpack.c.h.b16 %v3926
        %v4641 = vunpack.c.l.b16 %v3927
        %v4642 = vunpack.c.h.b16 %v3927
        %v4643 = vunpack.c.l.b16 %v3928
        %v4644 = vunpack.c.h.b16 %v3928
        %v4645 = vunpack.c.l.b16 %v3929
        %v4646 = vunpack.c.h.b16 %v3929
        %v4647 = vunpack.c.l.b16 %v3930
        %v4648 = vunpack.c.h.b16 %v3930
        %v4649 = vunpack.c.l.b16 %v3931
        %v4650 = vunpack.c.h.b16 %v3931
        %v4651 = vunpack.c.l.b16 %v3932
        %v4652 = vunpack.c.h.b16 %v3932
        %v4653 = vunpack.c.l.b16 %v3933
        %v4654 = vunpack.c.h.b16 %v3933
        %v4655 = vunpack.c.l.b16 %v3934
        %v4656 = vunpack.c.h.b16 %v3934
        %v4657 = vunpack.c.l.b16 %v3935
        %v4658 = vunpack.c.h.b16 %v3935
        %v4659 = vunpack.c.l.b16 %v3936
        %v4660 = vunpack.c.h.b16 %v3936
        %v4661 = vunpack.c.l.b16 %v3937
        %v4662 = vunpack.c.h.b16 %v3937
        %v4663 = vunpack.c.l.b16 %v3938
        %v4664 = vunpack.c.h.b16 %v3938
        %v4665 = vunpack.c.l.b16 %v3939
        %v4666 = vunpack.c.h.b16 %v3939
        %v4667 = vunpack.c.l.b16 %v3940
        %v4668 = vunpack.c.h.b16 %v3940
        %v4669 = vunpack.c.l.b16 %v3941
        %v4670 = vunpack.c.h.b16 %v3941
        %v4671 = vunpack.c.l.b16 %v3942
        %v4672 = vunpack.c.h.b16 %v3942
        %v4673 = vunpack.c.l.b16 %v3943
        %v4674 = vunpack.c.h.b16 %v3943
        %v4675 = vunpack.c.l.b16 %v3944
        %v4676 = vunpack.c.h.b16 %v3944
        %v4677 = vunpack.c.l.b16 %v3945
        %v4678 = vunpack.c.h.b16 %v3945
        %v4679 = vunpack.c.l.b16 %v3946
        %v4680 = vunpack.c.h.b16 %v3946
        %v4681 = vunpack.c.l.b16 %v3947
        %v4682 = vunpack.c.h.b16 %v3947
        %v4683 = vunpack.c.l.b16 %v3948
        %v4684 = vunpack.c.h.b16 %v3948
        %v4685 = vunpack.c.l.b16 %v3949
        %v4686 = vunpack.c.h.b16 %v3949
        %v4687 = vunpack.c.l.b16 %v3950
        %v4688 = vunpack.c.h.b16 %v3950
        %v4689 = vunpack.c.l.b16 %v3951
        %v4690 = vunpack.c.h.b16 %v3951
        %v4691 = vunpack.c.l.b16 %v3952
        %v4692 = vunpack.c.h.b16 %v3952
        %v4693 = vunpack.c.l.b16 %v3953
        %v4694 = vunpack.c.h.b16 %v3953
        %v4695 = vunpack.c.l.b16 %v3954
        %v4696 = vunpack.c.h.b16 %v3954
        %v4697 = vunpack.c.l.b16 %v3955
        %v4698 = vunpack.c.h.b16 %v3955
        %v4699 = vunpack.c.l.b16 %v3956
        %v4700 = vunpack.c.h.b16 %v3956
        %v4701 = vunpack.c.l.b16 %v3957
        %v4702 = vunpack.c.h.b16 %v3957
        %v4703 = vunpack.c.l.b16 %v3958
        %v4704 = vunpack.c.h.b16 %v3958
        %v4705 = vunpack.c.l.b16 %v3959
        %v4706 = vunpack.c.h.b16 %v3959
        %v4707 = vunpack.c.l.b16 %v3960
        %v4708 = vunpack.c.h.b16 %v3960
        %v4709 = vunpack.c.l.b16 %v3961
        %v4710 = vunpack.c.h.b16 %v3961
        %v4711 = vunpack.c.l.b16 %v3962
        %v4712 = vunpack.c.h.b16 %v3962
        %v4713 = vunpack.c.l.b16 %v3963
        %v4714 = vunpack.c.h.b16 %v3963
        %v4715 = vunpack.c.l.b16 %v3964
        %v4716 = vunpack.c.h.b16 %v3964
        %v4717 = vunpack.c.l.b16 %v3965
        %v4718 = vunpack.c.h.b16 %v3965
        %v4719 = vunpack.c.l.b16 %v3966
        %v4720 = vunpack.c.h.b16 %v3966
        %v4721 = vunpack.c.l.b16 %v3967
        %v4722 = vunpack.c.h.b16 %v3967
        %v4723 = vunpack.c.l.b16 %v3968
        %v4724 = vunpack.c.h.b16 %v3968
        %v4725 = vunpack.c.l.b16 %v3969
        %v4726 = vunpack.c.h.b16 %v3969
        %v4727 = vunpack.c.l.b16 %v3970
        %v4728 = vunpack.c.h.b16 %v3970
        %v4729 = vunpack.c.l.b16 %v3971
        %v4730 = vunpack.c.h.b16 %v3971
        %v4731 = vunpack.c.l.b16 %v3972
        %v4732 = vunpack.c.h.b16 %v3972
        %v4733 = vunpack.c.l.b16 %v3973
        %v4734 = vunpack.c.h.b16 %v3973
        %v4735 = vunpack.c.l.b16 %v3974
        %v4736 = vunpack.c.h.b16 %v3974
        %v4737 = vunpack.c.l.b16 %v3975
        %v4738 = vunpack.c.h.b16 %v3975
        %v4739 = vunpack.c.l.b16 %v3976
        %v4740 = vunpack.c.h.b16 %v3976
        %v4741 = vunpack.c.l.b16 %v3977
        %v4742 = vunpack.c.h.b16 %v3977
        %v4743 = vunpack.c.l.b16 %v3978
        %v4744 = vunpack.c.h.b16 %v3978
        %v4745 = vunpack.c.l.b16 %v3979
        %v4746 = vunpack.c.h.b16 %v3979
        %v4747 = vunpack.c.l.b16 %v3980
        %v4748 = vunpack.c.h.b16 %v3980
        %v4749 = vunpack.c.l.b16 %v3981
        %v4750 = vunpack.c.h.b16 %v3981
        %v4751 = vunpack.c.l.b16 %v3982
        %v4752 = vunpack.c.h.b16 %v3982
        %v4753 = vunpack.c.l.b16 %v3983
        %v4754 = vunpack.c.h.b16 %v3983
        %v4755 = vunpack.c.l.b16 %v3984
        %v4756 = vunpack.c.h.b16 %v3984
        %v4757 = vunpack.c.l.b16 %v3985
        %v4758 = vunpack.c.h.b16 %v3985
        %v4759 = vunpack.c.l.b16 %v3986
        %v4760 = vunpack.c.h.b16 %v3986
        %v4761 = vunpack.c.l.b16 %v3987
        %v4762 = vunpack.c.h.b16 %v3987
        %v4763 = vunpack.c.l.b16 %v3988
        %v4764 = vunpack.c.h.b16 %v3988
        %v4765 = vunpack.c.l.b16 %v3989
        %v4766 = vunpack.c.h.b16 %v3989
        %v4767 = vunpack.c.l.b16 %v3990
        %v4768 = vunpack.c.h.b16 %v3990
        %v4769 = vunpack.c.l.b16 %v3991
        %v4770 = vunpack.c.h.b16 %v3991
        %v4771 = vunpack.c.l.b16 %v3992
        %v4772 = vunpack.c.h.b16 %v3992
        %v4773 = vunpack.c.l.b16 %v3993
        %v4774 = vunpack.c.h.b16 %v3993
        %v4775 = vunpack.c.l.b16 %v3994
        %v4776 = vunpack.c.h.b16 %v3994
        %v4777 = vunpack.c.l.b16 %v3995
        %v4778 = vunpack.c.h.b16 %v3995
        %v4779 = vunpack.c.l.b16 %v3996
        %v4780 = vunpack.c.h.b16 %v3996
        %v4781 = vpack.c.b16 %v4273, %v4269
        %v4782 = vpack.c.b16 %v4274, %v4270
        %v4783 = vpack.c.b16 %v4275, %v4271
        %v4784 = vpack.c.b16 %v4276, %v4272
        %v4785 = vpack.c.b16 %v4281, %v4277
        %v4786 = vpack.c.b16 %v4282, %v4278
        %v4787 = vpack.c.b16 %v4283, %v4279
        %v4788 = vpack.c.b16 %v4284, %v4280
        %v4789 = vpack.c.b16 %v4289, %v4285
        %v4790 = vpack.c.b16 %v4290, %v4286
        %v4791 = vpack.c.b16 %v4291, %v4287
        %v4792 = vpack.c.b16 %v4292, %v4288
        %v4793 = vpack.c.b16 %v4297, %v4293
        %v4794 = vpack.c.b16 %v4298, %v4294
        %v4795 = vpack.c.b16 %v4299, %v4295
        %v4796 = vpack.c.b16 %v4300, %v4296
        %v4797 = vpack.c.b16 %v4305, %v4301
        %v4798 = vpack.c.b16 %v4306, %v4302
        %v4799 = vpack.c.b16 %v4307, %v4303
        %v4800 = vpack.c.b16 %v4308, %v4304
        %v4801 = vpack.c.b16 %v4313, %v4309
        %v4802 = vpack.c.b16 %v4314, %v4310
        %v4803 = vpack.c.b16 %v4315, %v4311
        %v4804 = vpack.c.b16 %v4316, %v4312
        %v4805 = vpack.c.b16 %v4321, %v4317
        %v4806 = vpack.c.b16 %v4322, %v4318
        %v4807 = vpack.c.b16 %v4323, %v4319
        %v4808 = vpack.c.b16 %v4324, %v4320
        %v4809 = vpack.c.b16 %v4329, %v4325
        %v4810 = vpack.c.b16 %v4330, %v4326
        %v4811 = vpack.c.b16 %v4331, %v4327
        %v4812 = vpack.c.b16 %v4332, %v4328
        %v4813 = vpack.c.b16 %v4337, %v4333
        %v4814 = vpack.c.b16 %v4338, %v4334
        %v4815 = vpack.c.b16 %v4339, %v4335
        %v4816 = vpack.c.b16 %v4340, %v4336
        %v4817 = vpack.c.b16 %v4345, %v4341
        %v4818 = vpack.c.b16 %v4346, %v4342
        %v4819 = vpack.c.b16 %v4347, %v4343
        %v4820 = vpack.c.b16 %v4348, %v4344
        %v4821 = vpack.c.b16 %v4353, %v4349
        %v4822 = vpack.c.b16 %v4354, %v4350
        %v4823 = vpack.c.b16 %v4355, %v4351
        %v4824 = vpack.c.b16 %v4356, %v4352
        %v4825 = vpack.c.b16 %v4361, %v4357
        %v4826 = vpack.c.b16 %v4362, %v4358
        %v4827 = vpack.c.b16 %v4363, %v4359
        %v4828 = vpack.c.b16 %v4364, %v4360
        %v4829 = vpack.c.b16 %v4369, %v4365
        %v4830 = vpack.c.b16 %v4370, %v4366
        %v4831 = vpack.c.b16 %v4371, %v4367
        %v4832 = vpack.c.b16 %v4372, %v4368
        %v4833 = vpack.c.b16 %v4377, %v4373
        %v4834 = vpack.c.b16 %v4378, %v4374
        %v4835 = vpack.c.b16 %v4379, %v4375
        %v4836 = vpack.c.b16 %v4380, %v4376
        %v4837 = vpack.c.b16 %v4385, %v4381
        %v4838 = vpack.c.b16 %v4386, %v4382
        %v4839 = vpack.c.b16 %v4387, %v4383
        %v4840 = vpack.c.b16 %v4388, %v4384
        %v4841 = vpack.c.b16 %v4393, %v4389
        %v4842 = vpack.c.b16 %v4394, %v4390
        %v4843 = vpack.c.b16 %v4395, %v4391
        %v4844 = vpack.c.b16 %v4396, %v4392
        %v4845 = vpack.c.b16 %v4401, %v4397
        %v4846 = vpack.c.b16 %v4402, %v4398
        %v4847 = vpack.c.b16 %v4403, %v4399
        %v4848 = vpack.c.b16 %v4404, %v4400
        %v4849 = vpack.c.b16 %v4409, %v4405
        %v4850 = vpack.c.b16 %v4410, %v4406
        %v4851 = vpack.c.b16 %v4411, %v4407
        %v4852 = vpack.c.b16 %v4412, %v4408
        %v4853 = vpack.c.b16 %v4417, %v4413
        %v4854 = vpack.c.b16 %v4418, %v4414
        %v4855 = vpack.c.b16 %v4419, %v4415
        %v4856 = vpack.c.b16 %v4420, %v4416
        %v4857 = vpack.c.b16 %v4425, %v4421
        %v4858 = vpack.c.b16 %v4426, %v4422
        %v4859 = vpack.c.b16 %v4427, %v4423
        %v4860 = vpack.c.b16 %v4428, %v4424
        %v4861 = vpack.c.b16 %v4433, %v4429
        %v4862 = vpack.c.b16 %v4434, %v4430
        %v4863 = vpack.c.b16 %v4435, %v4431
        %v4864 = vpack.c.b16 %v4436, %v4432
        %v4865 = vpack.c.b16 %v4441, %v4437
        %v4866 = vpack.c.b16 %v4442, %v4438
        %v4867 = vpack.c.b16 %v4443, %v4439
        %v4868 = vpack.c.b16 %v4444, %v4440
        %v4869 = vpack.c.b16 %v4449, %v4445
        %v4870 = vpack.c.b16 %v4450, %v4446
        %v4871 = vpack.c.b16 %v4451, %v4447
        %v4872 = vpack.c.b16 %v4452, %v4448
        %v4873 = vpack.c.b16 %v4457, %v4453
        %v4874 = vpack.c.b16 %v4458, %v4454
        %v4875 = vpack.c.b16 %v4459, %v4455
        %v4876 = vpack.c.b16 %v4460, %v4456
        %v4877 = vpack.c.b16 %v4465, %v4461
        %v4878 = vpack.c.b16 %v4466, %v4462
        %v4879 = vpack.c.b16 %v4467, %v4463
        %v4880 = vpack.c.b16 %v4468, %v4464
        %v4881 = vpack.c.b16 %v4473, %v4469
        %v4882 = vpack.c.b16 %v4474, %v4470
        %v4883 = vpack.c.b16 %v4475, %v4471
        %v4884 = vpack.c.b16 %v4476, %v4472
        %v4885 = vpack.c.b16 %v4481, %v4477
        %v4886 = vpack.c.b16 %v4482, %v4478
        %v4887 = vpack.c.b16 %v4483, %v4479
        %v4888 = vpack.c.b16 %v4484, %v4480
        %v4889 = vpack.c.b16 %v4489, %v4485
        %v4890 = vpack.c.b16 %v4490, %v4486
        %v4891 = vpack.c.b16 %v4491, %v4487
        %v4892 = vpack.c.b16 %v4492, %v4488
        %v4893 = vpack.c.b16 %v4497, %v4493
        %v4894 = vpack.c.b16 %v4498, %v4494
        %v4895 = vpack.c.b16 %v4499, %v4495
        %v4896 = vpack.c.b16 %v4500, %v4496
        %v4897 = vpack.c.b16 %v4505, %v4501
        %v4898 = vpack.c.b16 %v4506, %v4502
        %v4899 = vpack.c.b16 %v4507, %v4503
        %v4900 = vpack.c.b16 %v4508, %v4504
        %v4901 = vpack.c.b16 %v4513, %v4509
        %v4902 = vpack.c.b16 %v4514, %v4510
        %v4903 = vpack.c.b16 %v4515, %v4511
        %v4904 = vpack.c.b16 %v4516, %v4512
        %v4905 = vpack.c.b16 %v4521, %v4517
        %v4906 = vpack.c.b16 %v4522, %v4518
        %v4907 = vpack.c.b16 %v4523, %v4519
        %v4908 = vpack.c.b16 %v4524, %v4520
        %v4909 = vpack.c.b16 %v4529, %v4525
        %v4910 = vpack.c.b16 %v4530, %v4526
        %v4911 = vpack.c.b16 %v4531, %v4527
        %v4912 = vpack.c.b16 %v4532, %v4528
        %v4913 = vpack.c.b16 %v4537, %v4533
        %v4914 = vpack.c.b16 %v4538, %v4534
        %v4915 = vpack.c.b16 %v4539, %v4535
        %v4916 = vpack.c.b16 %v4540, %v4536
        %v4917 = vpack.c.b16 %v4545, %v4541
        %v4918 = vpack.c.b16 %v4546, %v4542
        %v4919 = vpack.c.b16 %v4547, %v4543
        %v4920 = vpack.c.b16 %v4548, %v4544
        %v4921 = vpack.c.b16 %v4553, %v4549
        %v4922 = vpack.c.b16 %v4554, %v4550
        %v4923 = vpack.c.b16 %v4555, %v4551
        %v4924 = vpack.c.b16 %v4556, %v4552
        %v4925 = vpack.c.b16 %v4561, %v4557
        %v4926 = vpack.c.b16 %v4562, %v4558
        %v4927 = vpack.c.b16 %v4563, %v4559
        %v4928 = vpack.c.b16 %v4564, %v4560
        %v4929 = vpack.c.b16 %v4569, %v4565
        %v4930 = vpack.c.b16 %v4570, %v4566
        %v4931 = vpack.c.b16 %v4571, %v4567
        %v4932 = vpack.c.b16 %v4572, %v4568
        %v4933 = vpack.c.b16 %v4577, %v4573
        %v4934 = vpack.c.b16 %v4578, %v4574
        %v4935 = vpack.c.b16 %v4579, %v4575
        %v4936 = vpack.c.b16 %v4580, %v4576
        %v4937 = vpack.c.b16 %v4585, %v4581
        %v4938 = vpack.c.b16 %v4586, %v4582
        %v4939 = vpack.c.b16 %v4587, %v4583
        %v4940 = vpack.c.b16 %v4588, %v4584
        %v4941 = vpack.c.b16 %v4593, %v4589
        %v4942 = vpack.c.b16 %v4594, %v4590
        %v4943 = vpack.c.b16 %v4595, %v4591
        %v4944 = vpack.c.b16 %v4596, %v4592
        %v4945 = vpack.c.b16 %v4601, %v4597
        %v4946 = vpack.c.b16 %v4602, %v4598
        %v4947 = vpack.c.b16 %v4603, %v4599
        %v4948 = vpack.c.b16 %v4604, %v4600
        %v4949 = vpack.c.b16 %v4609, %v4605
        %v4950 = vpack.c.b16 %v4610, %v4606
        %v4951 = vpack.c.b16 %v4611, %v4607
        %v4952 = vpack.c.b16 %v4612, %v4608
        %v4953 = vpack.c.b16 %v4617, %v4613
        %v4954 = vpack.c.b16 %v4618, %v4614
        %v4955 = vpack.c.b16 %v4619, %v4615
        %v4956 = vpack.c.b16 %v4620, %v4616
        %v4957 = vpack.c.b16 %v4625, %v4621
        %v4958 = vpack.c.b16 %v4626, %v4622
        %v4959 = vpack.c.b16 %v4627, %v4623
        %v4960 = vpack.c.b16 %v4628, %v4624
        %v4961 = vpack.c.b16 %v4633, %v4629
        %v4962 = vpack.c.b16 %v4634, %v4630
        %v4963 = vpack.c.b16 %v4635, %v4631
        %v4964 = vpack.c.b16 %v4636, %v4632
        %v4965 = vpack.c.b16 %v4641, %v4637
        %v4966 = vpack.c.b16 %v4642, %v4638
        %v4967 = vpack.c.b16 %v4643, %v4639
        %v4968 = vpack.c.b16 %v4644, %v4640
        %v4969 = vpack.c.b16 %v4649, %v4645
        %v4970 = vpack.c.b16 %v4650, %v4646
        %v4971 = vpack.c.b16 %v4651, %v4647
        %v4972 = vpack.c.b16 %v4652, %v4648
        %v4973 = vpack.c.b16 %v4657, %v4653
        %v4974 = vpack.c.b16 %v4658, %v4654
        %v4975 = vpack.c.b16 %v4659, %v4655
        %v4976 = vpack.c.b16 %v4660, %v4656
        %v4977 = vpack.c.b16 %v4665, %v4661
        %v4978 = vpack.c.b16 %v4666, %v4662
        %v4979 = vpack.c.b16 %v4667, %v4663
        %v4980 = vpack.c.b16 %v4668, %v4664
        %v4981 = vpack.c.b16 %v4673, %v4669
        %v4982 = vpack.c.b16 %v4674, %v4670
        %v4983 = vpack.c.b16 %v4675, %v4671
        %v4984 = vpack.c.b16 %v4676, %v4672
        %v4985 = vpack.c.b16 %v4681, %v4677
        %v4986 = vpack.c.b16 %v4682, %v4678
        %v4987 = vpack.c.b16 %v4683, %v4679
        %v4988 = vpack.c.b16 %v4684, %v4680
        %v4989 = vpack.c.b16 %v4689, %v4685
        %v4990 = vpack.c.b16 %v4690, %v4686
        %v4991 = vpack.c.b16 %v4691, %v4687
        %v4992 = vpack.c.b16 %v4692, %v4688
        %v4993 = vpack.c.b16 %v4697, %v4693
        %v4994 = vpack.c.b16 %v4698, %v4694
        %v4995 = vpack.c.b16 %v4699, %v4695
        %v4996 = vpack.c.b16 %v4700, %v4696
        %v4997 = vpack.c.b16 %v4705, %v4701
        %v4998 = vpack.c.b16 %v4706, %v4702
        %v4999 = vpack.c.b16 %v4707, %v4703
        %v5000 = vpack.c.b16 %v4708, %v4704
        %v5001 = vpack.c.b16 %v4713, %v4709
        %v5002 = vpack.c.b16 %v4714, %v4710
        %v5003 = vpack.c.b16 %v4715, %v4711
        %v5004 = vpack.c.b16 %v4716, %v4712
        %v5005 = vpack.c.b16 %v4721, %v4717
        %v5006 = vpack.c.b16 %v4722, %v4718
        %v5007 = vpack.c.b16 %v4723, %v4719
        %v5008 = vpack.c.b16 %v4724, %v4720
        %v5009 = vpack.c.b16 %v4729, %v4725
        %v5010 = vpack.c.b16 %v4730, %v4726
        %v5011 = vpack.c.b16 %v4731, %v4727
        %v5012 = vpack.c.b16 %v4732, %v4728
        %v5013 = vpack.c.b16 %v4737, %v4733
        %v5014 = vpack.c.b16 %v4738, %v4734
        %v5015 = vpack.c.b16 %v4739, %v4735
        %v5016 = vpack.c.b16 %v4740, %v4736
        %v5017 = vpack.c.b16 %v4745, %v4741
        %v5018 = vpack.c.b16 %v4746, %v4742
        %v5019 = vpack.c.b16 %v4747, %v4743
        %v5020 = vpack.c.b16 %v4748, %v4744
        %v5021 = vpack.c.b16 %v4753, %v4749
        %v5022 = vpack.c.b16 %v4754, %v4750
        %v5023 = vpack.c.b16 %v4755, %v4751
        %v5024 = vpack.c.b16 %v4756, %v4752
        %v5025 = vpack.c.b16 %v4761, %v4757
        %v5026 = vpack.c.b16 %v4762, %v4758
        %v5027 = vpack.c.b16 %v4763, %v4759
        %v5028 = vpack.c.b16 %v4764, %v4760
        %v5029 = vpack.c.b16 %v4769, %v4765
        %v5030 = vpack.c.b16 %v4770, %v4766
        %v5031 = vpack.c.b16 %v4771, %v4767
        %v5032 = vpack.c.b16 %v4772, %v4768
        %v5033 = vpack.c.b16 %v4777, %v4773
        %v5034 = vpack.c.b16 %v4778, %v4774
        %v5035 = vpack.c.b16 %v4779, %v4775
        %v5036 = vpack.c.b16 %v4780, %v4776
        %5293 = vmatprep.subr.bf16.mxu0 %v4782
        %5294 = vmatpush1.bf16.msra.mxu0 %v4781
        %5295 = vmatprep.subr.bf16.mxu0 %v4786
        %5296 = vmatpush1.bf16.msra.mxu0 %v4785
        %5297 = vmatprep.subr.bf16.mxu0 %v4790
        %5298 = vmatpush1.bf16.msra.mxu0 %v4789
        %5299 = vmatprep.subr.bf16.mxu0 %v4794
        %5300 = vmatpush1.bf16.msra.mxu0 %v4793
        %5301 = vmatprep.subr.bf16.mxu0 %v4798
        %5302 = vmatpush1.bf16.msra.mxu0 %v4797
        %5303 = vmatprep.subr.bf16.mxu0 %v4802
        %5304 = vmatpush1.bf16.msra.mxu0 %v4801
        %5305 = vmatprep.subr.bf16.mxu0 %v4806
        %5306 = vmatpush1.bf16.msra.mxu0 %v4805
        %5307 = vmatprep.subr.bf16.mxu0 %v4810
        %5308 = vmatpush1.bf16.msra.mxu0 %v4809
        %5309 = vmatprep.subr.bf16.mxu0 %v4814
        %5310 = vmatpush1.bf16.msra.mxu0 %v4813
        %5311 = vmatprep.subr.bf16.mxu0 %v4818
        %5312 = vmatpush1.bf16.msra.mxu0 %v4817
        %5313 = vmatprep.subr.bf16.mxu0 %v4822
        %5314 = vmatpush1.bf16.msra.mxu0 %v4821
        %5315 = vmatprep.subr.bf16.mxu0 %v4826
        %5316 = vmatpush1.bf16.msra.mxu0 %v4825
        %5317 = vmatprep.subr.bf16.mxu0 %v4830
        %5318 = vmatpush1.bf16.msra.mxu0 %v4829
        %5319 = vmatprep.subr.bf16.mxu0 %v4834
        %5320 = vmatpush1.bf16.msra.mxu0 %v4833
        %5321 = vmatprep.subr.bf16.mxu0 %v4838
        %5322 = vmatpush1.bf16.msra.mxu0 %v4837
        %5323 = vmatprep.subr.bf16.mxu0 %v4842
        %5324 = vmatpush1.bf16.msra.mxu0 %v4841
        %5325 = vmatprep.mubr.bf16.mxu0 %v3734
        %5326 = vmatmul.mubr.bf16.gmra.mrb[0].mxu0 %v3733
        %v5327 = vpop.f32.mrb[0].mxu0
        %v5328 = vadd.f32 %v4000, %v5327
        %v5329 = vpop.f32.mrb[0].mxu0
        %v5330 = vadd.f32 %v4004, %v5329
        %v5331 = vpop.f32.mrb[0].mxu0
        %v5332 = vpop.f32.mrb[0].mxu0
        %5333 = vdwg.mxu0
        %5334 = vmatprep.subr.bf16.mxu0 %v4846
        %5335 = vmatpush1.bf16.msra.mxu0 %v4845
        %5336 = vmatprep.subr.bf16.mxu0 %v4850
        %5337 = vmatpush1.bf16.msra.mxu0 %v4849
        %5338 = vmatprep.subr.bf16.mxu0 %v4854
        %5339 = vmatpush1.bf16.msra.mxu0 %v4853
        %5340 = vmatprep.subr.bf16.mxu0 %v4858
        %5341 = vmatpush1.bf16.msra.mxu0 %v4857
        %5342 = vmatprep.subr.bf16.mxu0 %v4862
        %5343 = vmatpush1.bf16.msra.mxu0 %v4861
        %5344 = vmatprep.subr.bf16.mxu0 %v4866
        %5345 = vmatpush1.bf16.msra.mxu0 %v4865
        %5346 = vmatprep.subr.bf16.mxu0 %v4870
        %5347 = vmatpush1.bf16.msra.mxu0 %v4869
        %5348 = vmatprep.subr.bf16.mxu0 %v4874
        %5349 = vmatpush1.bf16.msra.mxu0 %v4873
        %5350 = vmatprep.subr.bf16.mxu0 %v4878
        %5351 = vmatpush1.bf16.msra.mxu0 %v4877
        %5352 = vmatprep.subr.bf16.mxu0 %v4882
        %5353 = vmatpush1.bf16.msra.mxu0 %v4881
        %5354 = vmatprep.subr.bf16.mxu0 %v4886
        %5355 = vmatpush1.bf16.msra.mxu0 %v4885
        %5356 = vmatprep.subr.bf16.mxu0 %v4890
        %5357 = vmatpush1.bf16.msra.mxu0 %v4889
        %5358 = vmatprep.subr.bf16.mxu0 %v4894
        %5359 = vmatpush1.bf16.msra.mxu0 %v4893
        %5360 = vmatprep.subr.bf16.mxu0 %v4898
        %5361 = vmatpush1.bf16.msra.mxu0 %v4897
        %5362 = vmatprep.subr.bf16.mxu0 %v4902
        %5363 = vmatpush1.bf16.msra.mxu0 %v4901
        %5364 = vmatprep.subr.bf16.mxu0 %v4906
        %5365 = vmatpush1.bf16.msra.mxu0 %v4905
        %5366 = vmatprep.mubr.bf16.mxu0 %v3736
        %5367 = vmatmul.mubr.bf16.gmra.mrb[0].mxu0 %v3735
        %v5368 = vpop.f32.mrb[0].mxu0
        %v5369 = vadd.f32 %v5328, %v5368
        %v5370 = vpop.f32.mrb[0].mxu0
        %v5371 = vadd.f32 %v5330, %v5370
        %v5372 = vpop.f32.mrb[0].mxu0
        %v5373 = vpop.f32.mrb[0].mxu0
        %5374 = vdwg.mxu0
        %5375 = vmatprep.subr.bf16.mxu0 %v4910
        %5376 = vmatpush1.bf16.msra.mxu0 %v4909
        %5377 = vmatprep.subr.bf16.mxu0 %v4914
        %5378 = vmatpush1.bf16.msra.mxu0 %v4913
        %5379 = vmatprep.subr.bf16.mxu0 %v4918
        %5380 = vmatpush1.bf16.msra.mxu0 %v4917
        %5381 = vmatprep.subr.bf16.mxu0 %v4922
        %5382 = vmatpush1.bf16.msra.mxu0 %v4921
        %5383 = vmatprep.subr.bf16.mxu0 %v4926
        %5384 = vmatpush1.bf16.msra.mxu0 %v4925
        %5385 = vmatprep.subr.bf16.mxu0 %v4930
        %5386 = vmatpush1.bf16.msra.mxu0 %v4929
        %5387 = vmatprep.subr.bf16.mxu0 %v4934
        %5388 = vmatpush1.bf16.msra.mxu0 %v4933
        %5389 = vmatprep.subr.bf16.mxu0 %v4938
        %5390 = vmatpush1.bf16.msra.mxu0 %v4937
        %5391 = vmatprep.subr.bf16.mxu0 %v4942
        %5392 = vmatpush1.bf16.msra.mxu0 %v4941
        %5393 = vmatprep.subr.bf16.mxu0 %v4946
        %5394 = vmatpush1.bf16.msra.mxu0 %v4945
        %5395 = vmatprep.subr.bf16.mxu0 %v4950
        %5396 = vmatpush1.bf16.msra.mxu0 %v4949
        %5397 = vmatprep.subr.bf16.mxu0 %v4954
        %5398 = vmatpush1.bf16.msra.mxu0 %v4953
        %5399 = vmatprep.subr.bf16.mxu0 %v4958
        %5400 = vmatpush1.bf16.msra.mxu0 %v4957
        %5401 = vmatprep.subr.bf16.mxu0 %v4962
        %5402 = vmatpush1.bf16.msra.mxu0 %v4961
        %5403 = vmatprep.subr.bf16.mxu0 %v4966
        %5404 = vmatpush1.bf16.msra.mxu0 %v4965
        %5405 = vmatprep.subr.bf16.mxu0 %v4970
        %5406 = vmatpush1.bf16.msra.mxu0 %v4969
        %5407 = vmatprep.mubr.bf16.mxu0 %v3738
        %5408 = vmatmul.mubr.bf16.gmra.mrb[0].mxu0 %v3737
        %v5409 = vpop.f32.mrb[0].mxu0
        %v5410 = vadd.f32 %v5369, %v5409
        %v5411 = vpop.f32.mrb[0].mxu0
        %v5412 = vadd.f32 %v5371, %v5411
        %v5413 = vpop.f32.mrb[0].mxu0
        %v5414 = vpop.f32.mrb[0].mxu0
        %5415 = vdwg.mxu0
        %5416 = vmatprep.subr.bf16.mxu0 %v4974
        %5417 = vmatpush1.bf16.msra.mxu0 %v4973
        %5418 = vmatprep.subr.bf16.mxu0 %v4978
        %5419 = vmatpush1.bf16.msra.mxu0 %v4977
        %5420 = vmatprep.subr.bf16.mxu0 %v4982
        %5421 = vmatpush1.bf16.msra.mxu0 %v4981
        %5422 = vmatprep.subr.bf16.mxu0 %v4986
        %5423 = vmatpush1.bf16.msra.mxu0 %v4985
        %5424 = vmatprep.subr.bf16.mxu0 %v4990
        %5425 = vmatpush1.bf16.msra.mxu0 %v4989
        %5426 = vmatprep.subr.bf16.mxu0 %v4994
        %5427 = vmatpush1.bf16.msra.mxu0 %v4993
        %5428 = vmatprep.subr.bf16.mxu0 %v4998
        %5429 = vmatpush1.bf16.msra.mxu0 %v4997
        %5430 = vmatprep.subr.bf16.mxu0 %v5002
        %5431 = vmatpush1.bf16.msra.mxu0 %v5001
        %5432 = vmatprep.subr.bf16.mxu0 %v5006
        %5433 = vmatpush1.bf16.msra.mxu0 %v5005
        %5434 = vmatprep.subr.bf16.mxu0 %v5010
        %5435 = vmatpush1.bf16.msra.mxu0 %v5009
        %5436 = vmatprep.subr.bf16.mxu0 %v5014
        %5437 = vmatpush1.bf16.msra.mxu0 %v5013
        %5438 = vmatprep.subr.bf16.mxu0 %v5018
        %5439 = vmatpush1.bf16.msra.mxu0 %v5017
        %5440 = vmatprep.subr.bf16.mxu0 %v5022
        %5441 = vmatpush1.bf16.msra.mxu0 %v5021
        %5442 = vmatprep.subr.bf16.mxu0 %v5026
        %5443 = vmatpush1.bf16.msra.mxu0 %v5025
        %5444 = vmatprep.subr.bf16.mxu0 %v5030
        %5445 = vmatpush1.bf16.msra.mxu0 %v5029
        %5446 = vmatprep.subr.bf16.mxu0 %v5034
        %5447 = vmatpush1.bf16.msra.mxu0 %v5033
        %5448 = vmatprep.mubr.bf16.mxu0 %v3740
        %5449 = vmatmul.mubr.bf16.gmra.mrb[0].mxu0 %v3739
        %v5450 = vpop.f32.mrb[0].mxu0
        %v5451 = vadd.f32 %v5410, %v5450
        %v5452 = vpop.f32.mrb[0].mxu0
        %v5453 = vadd.f32 %v5412, %v5452
        %v5454 = vpop.f32.mrb[0].mxu0
        %v5455 = vpop.f32.mrb[0].mxu0
        %5456 = vdwg.mxu0
        %5457 = vmatprep.subr.bf16.mxu0 %v4784
        %5458 = vmatpush1.bf16.msra.mxu0 %v4783
        %5459 = vmatprep.subr.bf16.mxu0 %v4788
        %5460 = vmatpush1.bf16.msra.mxu0 %v4787
        %5461 = vmatprep.subr.bf16.mxu0 %v4792
        %5462 = vmatpush1.bf16.msra.mxu0 %v4791
        %5463 = vmatprep.subr.bf16.mxu0 %v4796
        %5464 = vmatpush1.bf16.msra.mxu0 %v4795
        %5465 = vmatprep.subr.bf16.mxu0 %v4800
        %5466 = vmatpush1.bf16.msra.mxu0 %v4799
        %5467 = vmatprep.subr.bf16.mxu0 %v4804
        %5468 = vmatpush1.bf16.msra.mxu0 %v4803
        %5469 = vmatprep.subr.bf16.mxu0 %v4808
        %5470 = vmatpush1.bf16.msra.mxu0 %v4807
        %5471 = vmatprep.subr.bf16.mxu0 %v4812
        %5472 = vmatpush1.bf16.msra.mxu0 %v4811
        %5473 = vmatprep.subr.bf16.mxu0 %v4816
        %5474 = vmatpush1.bf16.msra.mxu0 %v4815
        %5475 = vmatprep.subr.bf16.mxu0 %v4820
        %5476 = vmatpush1.bf16.msra.mxu0 %v4819
        %5477 = vmatprep.subr.bf16.mxu0 %v4824
        %5478 = vmatpush1.bf16.msra.mxu0 %v4823
        %5479 = vmatprep.subr.bf16.mxu0 %v4828
        %5480 = vmatpush1.bf16.msra.mxu0 %v4827
        %5481 = vmatprep.subr.bf16.mxu0 %v4832
        %5482 = vmatpush1.bf16.msra.mxu0 %v4831
        %5483 = vmatprep.subr.bf16.mxu0 %v4836
        %5484 = vmatpush1.bf16.msra.mxu0 %v4835
        %5485 = vmatprep.subr.bf16.mxu0 %v4840
        %5486 = vmatpush1.bf16.msra.mxu0 %v4839
        %5487 = vmatprep.subr.bf16.mxu0 %v4844
        %5488 = vmatpush1.bf16.msra.mxu0 %v4843
        %5489 = vmatprep.mubr.bf16.mxu0 %v3734
        %5490 = vmatmul.mubr.bf16.gmra.mrb[0].mxu0 %v3733
        %v5491 = vpop.f32.mrb[0].mxu0
        %v5492 = vadd.f32 %v4008, %v5491
        %v5493 = vpop.f32.mrb[0].mxu0
        %v5494 = vadd.f32 %v4012, %v5493
        %v5495 = vpop.f32.mrb[0].mxu0
        %v5496 = vpop.f32.mrb[0].mxu0
        %5497 = vdwg.mxu0
        %5498 = vmatprep.subr.bf16.mxu0 %v4848
        %5499 = vmatpush1.bf16.msra.mxu0 %v4847
        %5500 = vmatprep.subr.bf16.mxu0 %v4852
        %5501 = vmatpush1.bf16.msra.mxu0 %v4851
        %5502 = vmatprep.subr.bf16.mxu0 %v4856
        %5503 = vmatpush1.bf16.msra.mxu0 %v4855
        %5504 = vmatprep.subr.bf16.mxu0 %v4860
        %5505 = vmatpush1.bf16.msra.mxu0 %v4859
        %5506 = vmatprep.subr.bf16.mxu0 %v4864
        %5507 = vmatpush1.bf16.msra.mxu0 %v4863
        %5508 = vmatprep.subr.bf16.mxu0 %v4868
        %5509 = vmatpush1.bf16.msra.mxu0 %v4867
        %5510 = vmatprep.subr.bf16.mxu0 %v4872
        %5511 = vmatpush1.bf16.msra.mxu0 %v4871
        %5512 = vmatprep.subr.bf16.mxu0 %v4876
        %5513 = vmatpush1.bf16.msra.mxu0 %v4875
        %5514 = vmatprep.subr.bf16.mxu0 %v4880
        %5515 = vmatpush1.bf16.msra.mxu0 %v4879
        %5516 = vmatprep.subr.bf16.mxu0 %v4884
        %5517 = vmatpush1.bf16.msra.mxu0 %v4883
        %5518 = vmatprep.subr.bf16.mxu0 %v4888
        %5519 = vmatpush1.bf16.msra.mxu0 %v4887
        %5520 = vmatprep.subr.bf16.mxu0 %v4892
        %5521 = vmatpush1.bf16.msra.mxu0 %v4891
        %5522 = vmatprep.subr.bf16.mxu0 %v4896
        %5523 = vmatpush1.bf16.msra.mxu0 %v4895
        %5524 = vmatprep.subr.bf16.mxu0 %v4900
        %5525 = vmatpush1.bf16.msra.mxu0 %v4899
        %5526 = vmatprep.subr.bf16.mxu0 %v4904
        %5527 = vmatpush1.bf16.msra.mxu0 %v4903
        %5528 = vmatprep.subr.bf16.mxu0 %v4908
        %5529 = vmatpush1.bf16.msra.mxu0 %v4907
        %5530 = vmatprep.mubr.bf16.mxu0 %v3736
        %5531 = vmatmul.mubr.bf16.gmra.mrb[0].mxu0 %v3735
        %v5532 = vpop.f32.mrb[0].mxu0
        %v5533 = vadd.f32 %v5492, %v5532
        %v5534 = vpop.f32.mrb[0].mxu0
        %v5535 = vadd.f32 %v5494, %v5534
        %v5536 = vpop.f32.mrb[0].mxu0
        %v5537 = vpop.f32.mrb[0].mxu0
        %5538 = vdwg.mxu0
        %5539 = vmatprep.subr.bf16.mxu0 %v4912
        %5540 = vmatpush1.bf16.msra.mxu0 %v4911
        %5541 = vmatprep.subr.bf16.mxu0 %v4916
        %5542 = vmatpush1.bf16.msra.mxu0 %v4915
        %5543 = vmatprep.subr.bf16.mxu0 %v4920
        %5544 = vmatpush1.bf16.msra.mxu0 %v4919
        %5545 = vmatprep.subr.bf16.mxu0 %v4924
        %5546 = vmatpush1.bf16.msra.mxu0 %v4923
        %5547 = vmatprep.subr.bf16.mxu0 %v4928
        %5548 = vmatpush1.bf16.msra.mxu0 %v4927
        %5549 = vmatprep.subr.bf16.mxu0 %v4932
        %5550 = vmatpush1.bf16.msra.mxu0 %v4931
        %5551 = vmatprep.subr.bf16.mxu0 %v4936
        %5552 = vmatpush1.bf16.msra.mxu0 %v4935
        %5553 = vmatprep.subr.bf16.mxu0 %v4940
        %5554 = vmatpush1.bf16.msra.mxu0 %v4939
        %5555 = vmatprep.subr.bf16.mxu0 %v4944
        %5556 = vmatpush1.bf16.msra.mxu0 %v4943
        %5557 = vmatprep.subr.bf16.mxu0 %v4948
        %5558 = vmatpush1.bf16.msra.mxu0 %v4947
        %5559 = vmatprep.subr.bf16.mxu0 %v4952
        %5560 = vmatpush1.bf16.msra.mxu0 %v4951
        %5561 = vmatprep.subr.bf16.mxu0 %v4956
        %5562 = vmatpush1.bf16.msra.mxu0 %v4955
        %5563 = vmatprep.subr.bf16.mxu0 %v4960
        %5564 = vmatpush1.bf16.msra.mxu0 %v4959
        %5565 = vmatprep.subr.bf16.mxu0 %v4964
        %5566 = vmatpush1.bf16.msra.mxu0 %v4963
        %5567 = vmatprep.subr.bf16.mxu0 %v4968
        %5568 = vmatpush1.bf16.msra.mxu0 %v4967
        %5569 = vmatprep.subr.bf16.mxu0 %v4972
        %5570 = vmatpush1.bf16.msra.mxu0 %v4971
        %5571 = vmatprep.mubr.bf16.mxu0 %v3738
        %5572 = vmatmul.mubr.bf16.gmra.mrb[0].mxu0 %v3737
        %v5573 = vpop.f32.mrb[0].mxu0
        %v5574 = vadd.f32 %v5533, %v5573
        %v5575 = vpop.f32.mrb[0].mxu0
        %v5576 = vadd.f32 %v5535, %v5575
        %v5577 = vpop.f32.mrb[0].mxu0
        %v5578 = vpop.f32.mrb[0].mxu0
        %5579 = vdwg.mxu0
        %5580 = vmatprep.subr.bf16.mxu0 %v4976
        %5581 = vmatpush1.bf16.msra.mxu0 %v4975
        %5582 = vmatprep.subr.bf16.mxu0 %v4980
        %5583 = vmatpush1.bf16.msra.mxu0 %v4979
        %5584 = vmatprep.subr.bf16.mxu0 %v4984
        %5585 = vmatpush1.bf16.msra.mxu0 %v4983
        %5586 = vmatprep.subr.bf16.mxu0 %v4988
        %5587 = vmatpush1.bf16.msra.mxu0 %v4987
        %5588 = vmatprep.subr.bf16.mxu0 %v4992
        %5589 = vmatpush1.bf16.msra.mxu0 %v4991
        %5590 = vmatprep.subr.bf16.mxu0 %v4996
        %5591 = vmatpush1.bf16.msra.mxu0 %v4995
        %5592 = vmatprep.subr.bf16.mxu0 %v5000
        %5593 = vmatpush1.bf16.msra.mxu0 %v4999
        %5594 = vmatprep.subr.bf16.mxu0 %v5004
        %5595 = vmatpush1.bf16.msra.mxu0 %v5003
        %5596 = vmatprep.subr.bf16.mxu0 %v5008
        %5597 = vmatpush1.bf16.msra.mxu0 %v5007
        %5598 = vmatprep.subr.bf16.mxu0 %v5012
        %5599 = vmatpush1.bf16.msra.mxu0 %v5011
        %5600 = vmatprep.subr.bf16.mxu0 %v5016
        %5601 = vmatpush1.bf16.msra.mxu0 %v5015
        %5602 = vmatprep.subr.bf16.mxu0 %v5020
        %5603 = vmatpush1.bf16.msra.mxu0 %v5019
        %5604 = vmatprep.subr.bf16.mxu0 %v5024
        %5605 = vmatpush1.bf16.msra.mxu0 %v5023
        %5606 = vmatprep.subr.bf16.mxu0 %v5028
        %5607 = vmatpush1.bf16.msra.mxu0 %v5027
        %5608 = vmatprep.subr.bf16.mxu0 %v5032
        %5609 = vmatpush1.bf16.msra.mxu0 %v5031
        %5610 = vmatprep.subr.bf16.mxu0 %v5036
        %5611 = vmatpush1.bf16.msra.mxu0 %v5035
        %5612 = vmatprep.mubr.bf16.mxu0 %v3740
        %5613 = vmatmul.mubr.bf16.gmra.mrb[0].mxu0 %v3739
        %v5614 = vpop.f32.mrb[0].mxu0
        %v5615 = vadd.f32 %v5574, %v5614
        %v5616 = vpop.f32.mrb[0].mxu0
        %v5617 = vadd.f32 %v5576, %v5616
        %v5618 = vpop.f32.mrb[0].mxu0
        %v5619 = vpop.f32.mrb[0].mxu0
        %5620 = vdwg.mxu0
        %v5621 = vadd.f32 %v1811, %v5451
        %v5622 = vadd.f32 %v1812, %v5453
        %v5623 = vadd.f32 %v1813, %v5615
        %v5624 = vadd.f32 %v1814, %v5617
        %v5625 = vadd.f32 %v5621, %v5622
        %v5626 = vadd.f32 %v5625, %v5623
        %v5627 = vadd.f32 %v5626, %v5624
        %5628 = vadd.xlane.f32.xlu0 %v5627
        %v5629 = vpop.xlane.xlu0 %5628
        %v5630 = vmul.f32 %v5629, %v1753
        %v5631 = vsub.f32 %v5621, %v5630
        %v5632 = vsub.f32 %v5622, %v5630
        %v5633 = vsub.f32 %v5623, %v5630
        %v5634 = vsub.f32 %v5624, %v5630
        %v5635 = vmul.f32 %v5631, %v5631
        %v5636 = vmul.f32 %v5632, %v5632
        %v5637 = vmul.f32 %v5633, %v5633
        %v5638 = vmul.f32 %v5634, %v5634
        %v5639 = vadd.f32 %v5635, %v5636
        %v5640 = vadd.f32 %v5639, %v5637
        %v5641 = vadd.f32 %v5640, %v5638
        %5642 = vadd.xlane.f32.xlu0 %v5641
        %v5643 = vpop.xlane.xlu0 %5642
        %v5644 = vmul.f32 %v5643, %v1753
        %v5645 = vadd.f32 %v5644, 1e-05
        %v5646 = vrsqrt.pop %v5645
        %v5647 = vmul.f32 %v5631, %v5646
        %v5648 = vmul.f32 %v5632, %v5646
        %v5649 = vmul.f32 %v5633, %v5646
        %v5650 = vmul.f32 %v5634, %v5646
        %v5651 = vlaneseq
        %v5652 = vshrl.u32 %v5651, 7
        %v5653 = vsub.s32 4, %v5652
        %v5654 = vrot.slane %v788, %v5653
        %v5655 = vlaneseq
        %v5656 = vshrl.u32 %v5655, 7
        %v5657 = vsub.s32 4, %v5656
        %v5658 = vrot.slane %v789, %v5657
        %v5659 = vlaneseq
        %v5660 = vshrl.u32 %v5659, 7
        %v5661 = vsub.s32 4, %v5660
        %v5662 = vrot.slane %v790, %v5661
        %v5663 = vlaneseq
        %v5664 = vshrl.u32 %v5663, 7
        %v5665 = vsub.s32 4, %v5664
        %v5666 = vrot.slane %v791, %v5665
        %v5667 = vmul.f32 %v5647, %v5654
        %v5668 = vmul.f32 %v5648, %v5658
        %v5669 = vmul.f32 %v5649, %v5662
        %v5670 = vmul.f32 %v5650, %v5666
        %v5671 = vlaneseq
        %v5672 = vshrl.u32 %v5671, 7
        %v5673 = vsub.s32 5, %v5672
        %v5674 = vrot.slane %v788, %v5673
        %v5675 = vlaneseq
        %v5676 = vshrl.u32 %v5675, 7
        %v5677 = vsub.s32 5, %v5676
        %v5678 = vrot.slane %v789, %v5677
        %v5679 = vlaneseq
        %v5680 = vshrl.u32 %v5679, 7
        %v5681 = vsub.s32 5, %v5680
        %v5682 = vrot.slane %v790, %v5681
        %v5683 = vlaneseq
        %v5684 = vshrl.u32 %v5683, 7
        %v5685 = vsub.s32 5, %v5684
        %v5686 = vrot.slane %v791, %v5685
        %v5687 = vadd.f32 %v5667, %v5674
        %v5688 = vadd.f32 %v5668, %v5678
        %v5689 = vadd.f32 %v5669, %v5682
        %v5690 = vadd.f32 %v5670, %v5686
        %5691 = vst [vmem:[#allocation2] sm:$0xff] %v5687
        %5692 = vst [vmem:[#allocation2 + $0x8] sm:$0xff] %v5688
        %5693 = vst [vmem:[#allocation2 + $0x10] sm:$0xff] %v5689
        %5694 = vst [vmem:[#allocation2 + $0x18] sm:$0xff] %v5690
        %p5695 = scmp.eq.s32.totalorder %s34, 3
        // Predicated region
        $region101: #{text_trans_forward.1} parent=59 // pred_check
          %p5696 = pneg %p5695
        $region102: #{text_trans_forward.1} parent=59 // pred_check_branch
          %5698 = sbr.rel (%p5696) target = $region104
        $region103: #{text_trans_forward.1} parent=59 // pred_region
          %v5699 = vld [vmem:[#allocation17] sm:$0xf]
          %v5701 = vlaneseq
          %v5702 = vshrl.u32 %v5701, 7
          %v5703 = vsub.s32 0, %v5702
          %v5704 = vrot.slane %v5699, %v5703
          %v5705 = vlaneseq
          %v5706 = vshrl.u32 %v5705, 7
          %v5707 = vsub.s32 1, %v5706
          %v5708 = vrot.slane %v5699, %v5707
          %v5709 = vlaneseq
          %v5710 = vshrl.u32 %v5709, 7
          %v5711 = vsub.s32 2, %v5710
          %v5712 = vrot.slane %v5699, %v5711
          %v5713 = vlaneseq
          %v5714 = vshrl.u32 %v5713, 7
          %v5715 = vsub.s32 3, %v5714
          %v5716 = vrot.slane %v5699, %v5715
          %v5721 = vmul.f32 %v5687, %v5704
          %v5722 = vmul.f32 %v5688, %v5708
          %v5723 = vmul.f32 %v5689, %v5712
          %v5724 = vmul.f32 %v5690, %v5716
          %v5725 = vadd.f32 %v5721, %v5722
          %v5726 = vadd.f32 %v5725, %v5723
          %v5727 = vadd.f32 %v5726, %v5724
          %5728 = vadd.xlane.f32.xlu0 %v5727
          %v5729 = vpop.xlane.xlu0 %5728
          %v5730 = vld [vmem:[#allocation3] sm:$0x1]
          %v5732 = vlaneseq
          %v5733 = vshrl.u32 %v5732, 7
          %v5734 = vsub.s32 0, %v5733
          %v5735 = vrot.slane %v5730, %v5734
          %v5737 = vadd.f32 %v5729, %v5735
          %v5738 = vxor.u32 %v5737, 2147483648
          %v5739 = vmul.f32 %v5738, 1.442695
          %v5740 = vpow.pop %v5739
          %v5741 = vadd.f32 %v5740, 1.0
          %v5742 = vrcp.pop %v5741
          %v5743 = vmul.f32 1.0, %v5742
          %vm5744 = vcmask 7168
          %5745 = vst.msk [vmem:[%s10] sm:$0xff] %vm5744, %v5743
        $region104: #{text_trans_forward.1} parent=59 // pred_fallthru
          _
        // Predicated region
        $region105: #{text_trans_forward.1} parent=59 // pred_check
          %p5746 = pneg %p282
        $region106: #{text_trans_forward.1} parent=59 // pred_check_branch
          %5748 = sbr.rel (%p5746) target = $region108
        $region107: #{text_trans_forward.1} parent=59 // pred_region
          _
        $region108: #{text_trans_forward.1} parent=59 // pred_fallthru
          _
        // Predicated region
        $region109: #{text_trans_forward.1} parent=59 // pred_check
          %p5749 = pneg %p282
        $region110: #{text_trans_forward.1} parent=59 // pred_check_branch
          %5751 = sbr.rel (%p5749) target = $region112
        $region111: #{text_trans_forward.1} parent=59 // pred_region
          _
        $region112: #{text_trans_forward.1} parent=59 // pred_fallthru
          _
      $region60: #{text_trans_forward.1} parent=5 // pred_fallthru
        _
      %p5752 = scmp.le.s32.totalorder 2, %s29
      // Predicated region
      $region113: #{text_trans_forward.1} parent=5 // pred_check
        %p5753 = pneg %p5752
      $region114: #{text_trans_forward.1} parent=5 // pred_check_branch
        %5755 = sbr.rel (%p5753) target = $region116
      $region115: #{text_trans_forward.1} parent=5 // pred_region
        %s5756 = ssub.s32 %s29, 2
      $region116: #{text_trans_forward.1} parent=5 // pred_fallthru
        _
    $region6: #{text_trans_forward.1} parent=1 // loop_footer
      %s33 = sadd.s32 1, %s29
    $region7: #{text_trans_forward.1} parent=1 // loop_footer_branch
      %28 = sbr.rel target = $region3
    $region8: #{text_trans_forward.1} parent=1 // loop_exit
      _
    %5757 = vsyncpa [#allocation5], 1
    %s5758 = scalar_lea.sflag [#allocation5], 1
    %5759 = vsyncpa %s5758, 1
    %5760 = vsyncpa [#allocation7], 1
    %5761 = vsyncpa [#allocation10], 1
    %s5762 = scalar_lea.sflag [#allocation10], 1
    %5763 = vsyncpa %s5762, 1
    %5764 = vsyncpa [#allocation13], 1
    %s5765 = scalar_lea.sflag [#allocation13], 1
    %5766 = vsyncpa %s5765, 1
    %5767 = vsyncpa [#allocation16], 1
    %s5768 = scalar_lea.sflag [#allocation16], 1
    %5769 = vsyncpa %s5768, 1

</llo_original>
